<compile_context>
chip_gen: v7x
topology: tpu7x:2x2x1
jax: 0.10.0
libtpu: 0.0.40
codegen_flags: <defaults>
</compile_context>

<pallas_src>
import functools

import numpy as np
import jax
import jax.numpy as jnp
from jax import lax
from jax.experimental import pallas as pl
from jax.experimental.pallas import tpu as pltpu


_WEIGHTS = [1.0 / 32, 1.0 / 16, 1.0 / 8, 1.0 / 4, 1.0]
_VMEM_LIMIT = 32 * 1024 * 1024


def _pick_tile(r, max_tile=512):
    """Largest divisor of r that is <= max_tile and a multiple of 8 (or r itself)."""
    for t in range(min(r, max_tile), 0, -1):
        if r % t == 0 and (t % 8 == 0 or t == r):
            return t
    return r


# ----------------------------- Pallas kernels (hot path) -----------------------------

def _conv_mm_relu_kernel(xcol_ref, w_ref, b_ref, o_ref):
    """3x3 'same' conv + bias + ReLU as one deep-K MXU matmul per row tile.

    xcol_ref: (TILE_R, 9*Cin)  im2col slab tile
    w_ref:    (9*Cin, Cout)
    b_ref:    (1, Cout)
    o_ref:    (TILE_R, Cout)
    """
    y = jnp.dot(xcol_ref[...], w_ref[...], preferred_element_type=jnp.float32)
    o_ref[...] = jnp.maximum(y + b_ref[...], 0.0).astype(o_ref.dtype)


def _maxpool2x2_kernel(x_ref, o_ref, *, c):
    """2x2 / stride-2 max pool on a lane-dense view (no slab stacking).

    x_ref: (TILE, 2, Wo, 2*C)  -- dim1 = row parity, lane dim packs (w-parity, C)
    o_ref: (TILE, Wo, C)
    """
    top = x_ref[:, 0]                       # (TILE, Wo, 2C) even image rows
    bot = x_ref[:, 1]                       # odd image rows
    m = jnp.maximum(top, bot)
    o_ref[...] = jnp.maximum(m[..., :c], m[..., c:])


def _contrastive_ratio_kernel(o_ref, p_ref, n_ref, n2_ref, out_ref, acc_ref, *, weight):
    """weight * sum|o-p| / (sum|o-n| + sum|o-n2|), accumulated over row tiles.

    All L1Loss means share the same element count, so the ratio of sums equals
    the PyTorch ratio of means exactly.
    o/p/n/n2_ref: (TILE, 128) lane-dense VMEM tiles; out_ref: (1,1) SMEM;
    acc_ref: SMEM (3,) scratch accumulators (num, den1, den2).
    """
    i = pl.program_id(0)

    @pl.when(i == 0)
    def _():
        acc_ref[0] = jnp.float32(0.0)
        acc_ref[1] = jnp.float32(0.0)
        acc_ref[2] = jnp.float32(0.0)

    o = o_ref[...]
    acc_ref[0] = acc_ref[0] + jnp.sum(jnp.abs(o - p_ref[...]))
    acc_ref[1] = acc_ref[1] + jnp.sum(jnp.abs(o - n_ref[...]))
    acc_ref[2] = acc_ref[2] + jnp.sum(jnp.abs(o - n2_ref[...]))

    @pl.when(i == pl.num_programs(0) - 1)
    def _():
        out_ref[0, 0] = weight * acc_ref[0] / (acc_ref[1] + acc_ref[2])


# ------------------------------- wrappers (glue + pallas_call) -------------------------------

def conv3x3_relu(x, w, b):
    """x: (B,H,W,Cin) f32, w: (3,3,Cin,Cout), b: (Cout,) -> (B,H,W,Cout)."""
    B, H, W, Cin = x.shape
    Cout = w.shape[-1]
    R = B * H * W
    K = 9 * Cin
    # TODO(synk): form the shifted 3x3 windows inside the kernel (halo reads) instead of
    # materializing the (R, 9*Cin) im2col slab in HBM via XLA glue.
    xp = jnp.pad(x, ((0, 0), (1, 1), (1, 1), (0, 0)))
    cols = [xp[:, dy:dy + H, dx:dx + W, :].reshape(R, Cin)
            for dy in range(3) for dx in range(3)]
    xcol = jnp.concatenate(cols, axis=-1)                 # (R, 9*Cin), tap-major channels
    wf = w.reshape(K, Cout)                               # matches (ky,kx,cin) ordering
    bf = b.reshape(1, Cout)

    tile_r = _pick_tile(R)
    out = pl.pallas_call(
        _conv_mm_relu_kernel,
        out_shape=jax.ShapeDtypeStruct((R, Cout), jnp.float32),
        grid=(R // tile_r,),
        in_specs=[
            pl.BlockSpec((tile_r, K), lambda i: (i, 0)),
            pl.BlockSpec((K, Cout), lambda i: (0, 0)),
            pl.BlockSpec((1, Cout), lambda i: (0, 0)),
        ],
        out_specs=pl.BlockSpec((tile_r, Cout), lambda i: (i, 0)),
        compiler_params=pltpu.CompilerParams(
            dimension_semantics=("parallel",),
            vmem_limit_bytes=_VMEM_LIMIT),
    )(xcol, wf, bf)
    return out.reshape(B, H, W, Cout)


def maxpool2x2(x):
    """x: (B,H,W,C) -> (B,H//2,W//2,C).  Input is viewed lane-dense as
    (B*Ho, 2, Wo, 2*C) — a free, contiguous reshape — so the kernel needs no
    strided gathers and no wrapper-side slab duplication."""
    B, H, W, C = x.shape
    Ho, Wo = H // 2, W // 2
    xr = x.reshape(B * Ho, 2, Wo, 2 * C)
    Rp = B * Ho
    tile = _pick_tile(Rp)
    out = pl.pallas_call(
        functools.partial(_maxpool2x2_kernel, c=C),
        out_shape=jax.ShapeDtypeStruct((Rp, Wo, C), x.dtype),
        grid=(Rp // tile,),
        in_specs=[pl.BlockSpec((tile, 2, Wo, 2 * C), lambda i: (i, 0, 0, 0))],
        out_specs=pl.BlockSpec((tile, Wo, C), lambda i: (i, 0, 0)),
        compiler_params=pltpu.CompilerParams(
            dimension_semantics=("parallel",),
            vmem_limit_bytes=_VMEM_LIMIT),
    )(xr)
    return out.reshape(B, Ho, Wo, C)


def contrastive_ratio(o, p, n, n2, weight):
    """Scalar weight * L1(o,p) / (L1(o,n) + L1(o,n2)) in one Pallas reduction kernel."""
    total = o.size
    lanes = 128 if total % 128 == 0 else o.shape[-1]      # lane-dense when possible
    rows = total // lanes
    flat = lambda t: t.reshape(rows, lanes)
    tile = _pick_tile(rows)
    out = pl.pallas_call(
        functools.partial(_contrastive_ratio_kernel, weight=weight),
        out_shape=jax.ShapeDtypeStruct((1, 1), jnp.float32),
        grid=(rows // tile,),
        in_specs=[pl.BlockSpec((tile, lanes), lambda i: (i, 0))] * 4,
        out_specs=pl.BlockSpec(memory_space=pltpu.MemorySpace.SMEM),
        scratch_shapes=[pltpu.SMEM((3,), jnp.float32)],
        compiler_params=pltpu.CompilerParams(
            dimension_semantics=("arbitrary",),
            vmem_limit_bytes=_VMEM_LIMIT),
    )(flat(o), flat(p), flat(n), flat(n2))
    return out[0, 0]


# ------------------------------- VGG19 prefix (relu1_1 / relu2_1 taps) -------------------------------

def init_vgg_params(key):
    """He-initialized VGG19 conv1_1 / conv1_2 / conv2_1 (no pretrained weights provided)."""
    def he(k, cin, cout):
        return (jax.random.normal(k, (3, 3, cin, cout), jnp.float32)
                * np.float32(np.sqrt(2.0 / (9.0 * cin))))
    k1, k2, k3 = jax.random.split(key, 3)
    return {
        "w11": he(k1, 3, 64),   "b11": jnp.zeros((64,), jnp.float32),
        "w12": he(k2, 64, 64),  "b12": jnp.zeros((64,), jnp.float32),
        "w21": he(k3, 64, 128), "b21": jnp.zeros((128,), jnp.float32),
    }


def contrastive_loss_local2(negative, negative2, output, positive, params, crop_hw):
    """Forward pass of ContrastiveLoss_local2 (inputs in PyTorch NCHW)."""
    to_nhwc = lambda t: jnp.transpose(t, (0, 2, 3, 1)).astype(jnp.float32)
    N, _, H, W = output.shape
    h2 = H // 2
    nh, nw = crop_hw                                            # crop_batches offsets (host RNG)
    o_crop = to_nhwc(output[:, :, nh:nh + h2, nw:nw + h2])      # spec uses h//2 for both dims

    # o_vgg[0]: relu1_1 of the cropped output (64 ch, h//2 res).
    o0 = conv3x3_relu(o_crop, params["w11"], params["b11"])

    # {p,n,n2}_vgg[1]: relu2_1 of the full-size streams, batched into one pass (3N).
    # Only channels 0:64 of tap 1 feed the loss, so conv2_1 computes just those.
    s = jnp.concatenate(
        [to_nhwc(positive), to_nhwc(negative), to_nhwc(negative2)], axis=0)
    t = conv3x3_relu(s, params["w11"], params["b11"])
    t = conv3x3_relu(t, params["w12"], params["b12"])
    t = maxpool2x2(t)
    f = conv3x3_relu(t, params["w21"][..., :64], params["b21"][:64])
    p1, n1, n21 = f[:N], f[N:2 * N], f[2 * N:]

    # weights[0] * L1(o,p) / (L1(o,n) + L1(o,n2)); detach() is gradient-only.
    return contrastive_ratio(o0, p1, n1, n21, _WEIGHTS[0])


# ------------------------------- pure-JAX reference (for checking) -------------------------------

def _conv_ref(x, w, b):
    y = lax.conv_general_dilated(x, w, (1, 1), "SAME",
                                 dimension_numbers=("NHWC", "HWIO", "NHWC"))
    return jnp.maximum(y + b, 0.0)


def _pool_ref(x):
    return lax.reduce_window(x, -jnp.inf, lax.max, (1, 2, 2, 1), (1, 2, 2, 1), "VALID")


def contrastive_loss_ref(negative, negative2, output, positive, params, crop_hw):
    to_nhwc = lambda t: jnp.transpose(t, (0, 2, 3, 1)).astype(jnp.float32)
    N, _, H, W = output.shape
    h2 = H // 2
    nh, nw = crop_hw
    o_crop = to_nhwc(output[:, :, nh:nh + h2, nw:nw + h2])

    def tap0(x):
        return _conv_ref(x, params["w11"], params["b11"])

    def tap1(x):
        h = _conv_ref(x, params["w11"], params["b11"])
        h = _conv_ref(h, params["w12"], params["b12"])
        h = _pool_ref(h)
        return _conv_ref(h, params["w21"], params["b21"])

    o0 = tap0(o_crop)
    p1 = tap1(to_nhwc(positive))[..., :64]
    n1 = tap1(to_nhwc(negative))[..., :64]
    n21 = tap1(to_nhwc(negative2))[..., :64]
    l1 = lambda a, b: jnp.mean(jnp.abs(a - b))
    return _WEIGHTS[0] * l1(o0, p1) / (l1(o0, n1) + l1(o0, n21))


# ------------------------------------------- main -------------------------------------------

if __name__ == "__main__":
    key = jax.random.PRNGKey(0)
    k1, k2, k3, k4, kp = jax.random.split(key, 5)
    params = init_vgg_params(kp)

    shape = (2, 3, 16, 16)  # NCHW, matching the PyTorch conv-input convention
    negative = jax.random.uniform(k1, shape, jnp.float32)
    negative2 = jax.random.uniform(k2, shape, jnp.float32)
    output = jax.random.uniform(k3, shape, jnp.float32)
    positive = jax.random.uniform(k4, shape, jnp.float32)

    # crop_batches: per-forward random crop offsets from the host RNG (deterministic seed).
    rng = np.random.RandomState(0)
    _, _, H, W = shape
    crop_hw = (int(rng.randint(0, H - H // 2)), int(rng.randint(0, W - W // 2)))

    loss_fn = jax.jit(lambda n, n2, o, p: contrastive_loss_local2(n, n2, o, p, params, crop_hw))
    loss = jax.block_until_ready(loss_fn(negative, negative2, output, positive))

    loss_ref = contrastive_loss_ref(negative, negative2, output, positive, params, crop_hw)
    np.testing.assert_allclose(float(loss), float(loss_ref), rtol=2e-3, atol=1e-6)

    print("KERNEL_OK")
</pallas_src>

<mosaic_0001>
module attributes {stable_mosaic.version = 11 : i64} {
  func.func @_conv_mm_relu_kernel(%arg0: i32, %arg1: memref<512x27xf32, #tpu.memory_space<vmem>>, %arg2: memref<27x64xf32, #tpu.memory_space<vmem>>, %arg3: memref<1x64xf32, #tpu.memory_space<vmem>>, %arg4: memref<512x64xf32, #tpu.memory_space<vmem>>) attributes {dimension_semantics = [#tpu.dimension_semantics<parallel>], iteration_bounds = array<i64: 3>, scalar_prefetch = 0 : i64, scratch_operands = 0 : i64, tpu.core_type = #tpu.core_type<tc>, window_params = [{transform_indices = @transform_0, window_bounds = array<i64: 512, 27>}, {pipeline_mode = #tpu.pipeline_mode<synchronous>, transform_indices = @transform_1, window_bounds = array<i64: 27, 64>}, {pipeline_mode = #tpu.pipeline_mode<synchronous>, transform_indices = @transform_2, window_bounds = array<i64: 1, 64>}, {transform_indices = @transform_3, window_bounds = array<i64: 512, 64>}]} {
    %c0 = arith.constant 0 : index
    %c0_0 = arith.constant 0 : index
    %0 = vector.load %arg1[%c0, %c0_0] : memref<512x27xf32, #tpu.memory_space<vmem>>, vector<512x27xf32>
    %c0_1 = arith.constant 0 : index
    %c0_2 = arith.constant 0 : index
    %1 = vector.load %arg2[%c0_1, %c0_2] : memref<27x64xf32, #tpu.memory_space<vmem>>, vector<27x64xf32>
    %cst = arith.constant dense<0.000000e+00> : vector<512x64xf32>
    %2 = tpu.matmul %0, %1, %cst {dimension_numbers = #tpu.dot_dimension_numbers<[1], [0], [0], [1], [0, 0, 1, 1], [], []>} : vector<512x27xf32>, vector<27x64xf32>, vector<512x64xf32> -> vector<512x64xf32>
    %c0_3 = arith.constant 0 : index
    %c0_4 = arith.constant 0 : index
    %3 = vector.load %arg3[%c0_3, %c0_4] : memref<1x64xf32, #tpu.memory_space<vmem>>, vector<1x64xf32>
    %4 = vector.broadcast %3 : vector<1x64xf32> to vector<512x64xf32>
    %5 = arith.addf %2, %4 : vector<512x64xf32>
    %cst_5 = arith.constant 0.000000e+00 : f32
    %6 = vector.broadcast %cst_5 : f32 to vector<512x64xf32>
    %7 = arith.maximumf %5, %6 : vector<512x64xf32>
    %c0_6 = arith.constant 0 : index
    %c0_7 = arith.constant 0 : index
    %8 = vector.load %arg4[%c0_6, %c0_7] : memref<512x64xf32, #tpu.memory_space<vmem>>, vector<512x64xf32>
    tpu.vector_store %arg4[%c0_6, %c0_7], %7 {strides = array<i32>} : memref<512x64xf32, #tpu.memory_space<vmem>>, vector<512x64xf32>,
    return
  }
  func.func @transform_0(%arg0: i32) -> (i32, i32) {
    %c0_i32 = arith.constant 0 : i32
    %c0_i32_0 = arith.constant 0 : i32
    return %arg0, %c0_i32 : i32, i32
  }
  func.func @transform_1(%arg0: i32) -> (i32, i32) {
    %c0_i32 = arith.constant 0 : i32
    %c0_i32_0 = arith.constant 0 : i32
    %c0_i32_1 = arith.constant 0 : i32
    return %c0_i32, %c0_i32_0 : i32, i32
  }
  func.func @transform_2(%arg0: i32) -> (i32, i32) {
    %c0_i32 = arith.constant 0 : i32
    %c0_i32_0 = arith.constant 0 : i32
    %c0_i32_1 = arith.constant 0 : i32
    return %c0_i32, %c0_i32_0 : i32, i32
  }
  func.func @transform_3(%arg0: i32) -> (i32, i32) {
    %c0_i32 = arith.constant 0 : i32
    %c0_i32_0 = arith.constant 0 : i32
    return %arg0, %c0_i32 : i32, i32
  }
}

module attributes {stable_mosaic.version = 11 : i64} {
  func.func @_conv_mm_relu_kernel(%arg0: i32, %arg1: memref<512x576xf32, #tpu.memory_space<vmem>>, %arg2: memref<576x64xf32, #tpu.memory_space<vmem>>, %arg3: memref<1x64xf32, #tpu.memory_space<vmem>>, %arg4: memref<512x64xf32, #tpu.memory_space<vmem>>) attributes {dimension_semantics = [#tpu.dimension_semantics<parallel>], iteration_bounds = array<i64: 3>, scalar_prefetch = 0 : i64, scratch_operands = 0 : i64, tpu.core_type = #tpu.core_type<tc>, window_params = [{transform_indices = @transform_0, window_bounds = array<i64: 512, 576>}, {pipeline_mode = #tpu.pipeline_mode<synchronous>, transform_indices = @transform_1, window_bounds = array<i64: 576, 64>}, {pipeline_mode = #tpu.pipeline_mode<synchronous>, transform_indices = @transform_2, window_bounds = array<i64: 1, 64>}, {transform_indices = @transform_3, window_bounds = array<i64: 512, 64>}]} {
    %c0 = arith.constant 0 : index
    %c0_0 = arith.constant 0 : index
    %0 = vector.load %arg1[%c0, %c0_0] : memref<512x576xf32, #tpu.memory_space<vmem>>, vector<512x576xf32>
    %c0_1 = arith.constant 0 : index
    %c0_2 = arith.constant 0 : index
    %1 = vector.load %arg2[%c0_1, %c0_2] : memref<576x64xf32, #tpu.memory_space<vmem>>, vector<576x64xf32>
    %cst = arith.constant dense<0.000000e+00> : vector<512x64xf32>
    %2 = tpu.matmul %0, %1, %cst {dimension_numbers = #tpu.dot_dimension_numbers<[1], [0], [0], [1], [0, 0, 1, 1], [], []>} : vector<512x576xf32>, vector<576x64xf32>, vector<512x64xf32> -> vector<512x64xf32>
    %c0_3 = arith.constant 0 : index
    %c0_4 = arith.constant 0 : index
    %3 = vector.load %arg3[%c0_3, %c0_4] : memref<1x64xf32, #tpu.memory_space<vmem>>, vector<1x64xf32>
    %4 = vector.broadcast %3 : vector<1x64xf32> to vector<512x64xf32>
    %5 = arith.addf %2, %4 : vector<512x64xf32>
    %cst_5 = arith.constant 0.000000e+00 : f32
    %6 = vector.broadcast %cst_5 : f32 to vector<512x64xf32>
    %7 = arith.maximumf %5, %6 : vector<512x64xf32>
    %c0_6 = arith.constant 0 : index
    %c0_7 = arith.constant 0 : index
    %8 = vector.load %arg4[%c0_6, %c0_7] : memref<512x64xf32, #tpu.memory_space<vmem>>, vector<512x64xf32>
    tpu.vector_store %arg4[%c0_6, %c0_7], %7 {strides = array<i32>} : memref<512x64xf32, #tpu.memory_space<vmem>>, vector<512x64xf32>,
    return
  }
  func.func @transform_0(%arg0: i32) -> (i32, i32) {
    %c0_i32 = arith.constant 0 : i32
    %c0_i32_0 = arith.constant 0 : i32
    return %arg0, %c0_i32 : i32, i32
  }
  func.func @transform_1(%arg0: i32) -> (i32, i32) {
    %c0_i32 = arith.constant 0 : i32
    %c0_i32_0 = arith.constant 0 : i32
    %c0_i32_1 = arith.constant 0 : i32
    return %c0_i32, %c0_i32_0 : i32, i32
  }
  func.func @transform_2(%arg0: i32) -> (i32, i32) {
    %c0_i32 = arith.constant 0 : i32
    %c0_i32_0 = arith.constant 0 : i32
    %c0_i32_1 = arith.constant 0 : i32
    return %c0_i32, %c0_i32_0 : i32, i32
  }
  func.func @transform_3(%arg0: i32) -> (i32, i32) {
    %c0_i32 = arith.constant 0 : i32
    %c0_i32_0 = arith.constant 0 : i32
    return %arg0, %c0_i32 : i32, i32
  }
}

module attributes {stable_mosaic.version = 11 : i64} {
  func.func @_maxpool2x2_kernel(%arg0: i32, %arg1: memref<48x2x8x128xf32, #tpu.memory_space<vmem>>, %arg2: memref<48x8x64xf32, #tpu.memory_space<vmem>>) attributes {dimension_semantics = [#tpu.dimension_semantics<parallel>], iteration_bounds = array<i64: 1>, scalar_prefetch = 0 : i64, scratch_operands = 0 : i64, tpu.core_type = #tpu.core_type<tc>, window_params = [{transform_indices = @transform_0, window_bounds = array<i64: 48, 2, 8, 128>}, {transform_indices = @transform_1, window_bounds = array<i64: 48, 8, 64>}]} {
    %c0 = arith.constant 0 : index
    %c0_0 = arith.constant 0 : index
    %c0_1 = arith.constant 0 : index
    %c0_2 = arith.constant 0 : index
    %0 = vector.load %arg1[%c0, %c0_0, %c0_1, %c0_2] : memref<48x2x8x128xf32, #tpu.memory_space<vmem>>, vector<48x1x8x128xf32>
    %1 = vector.shape_cast %0 : vector<48x1x8x128xf32> to vector<48x8x128xf32>
    %c0_3 = arith.constant 0 : index
    %c1 = arith.constant 1 : index
    %c0_4 = arith.constant 0 : index
    %c0_5 = arith.constant 0 : index
    %2 = vector.load %arg1[%c0_3, %c1, %c0_4, %c0_5] : memref<48x2x8x128xf32, #tpu.memory_space<vmem>>, vector<48x1x8x128xf32>
    %3 = vector.shape_cast %2 : vector<48x1x8x128xf32> to vector<48x8x128xf32>
    %4 = arith.maximumf %1, %3 : vector<48x8x128xf32>
    %5 = vector.extract_strided_slice %4 {offsets = [0, 0, 0], sizes = [48, 8, 64], strides = [1, 1, 1]} : vector<48x8x128xf32> to vector<48x8x64xf32>
    %6 = vector.extract_strided_slice %4 {offsets = [0, 0, 64], sizes = [48, 8, 64], strides = [1, 1, 1]} : vector<48x8x128xf32> to vector<48x8x64xf32>
    %7 = arith.maximumf %5, %6 : vector<48x8x64xf32>
    %c0_6 = arith.constant 0 : index
    %c0_7 = arith.constant 0 : index
    %c0_8 = arith.constant 0 : index
    %8 = vector.load %arg2[%c0_6, %c0_7, %c0_8] : memref<48x8x64xf32, #tpu.memory_space<vmem>>, vector<48x8x64xf32>
    tpu.vector_store %arg2[%c0_6, %c0_7, %c0_8], %7 {strides = array<i32>} : memref<48x8x64xf32, #tpu.memory_space<vmem>>, vector<48x8x64xf32>,
    return
  }
  func.func @transform_0(%arg0: i32) -> (i32, i32, i32, i32) {
    %c0_i32 = arith.constant 0 : i32
    %c0_i32_0 = arith.constant 0 : i32
    %c0_i32_1 = arith.constant 0 : i32
    %c0_i32_2 = arith.constant 0 : i32
    return %arg0, %c0_i32, %c0_i32_0, %c0_i32_1 : i32, i32, i32, i32
  }
  func.func @transform_1(%arg0: i32) -> (i32, i32, i32) {
    %c0_i32 = arith.constant 0 : i32
    %c0_i32_0 = arith.constant 0 : i32
    %c0_i32_1 = arith.constant 0 : i32
    return %arg0, %c0_i32, %c0_i32_0 : i32, i32, i32
  }
}

module attributes {stable_mosaic.version = 11 : i64} {
  func.func @_conv_mm_relu_kernel(%arg0: i32, %arg1: memref<384x576xf32, #tpu.memory_space<vmem>>, %arg2: memref<576x64xf32, #tpu.memory_space<vmem>>, %arg3: memref<1x64xf32, #tpu.memory_space<vmem>>, %arg4: memref<384x64xf32, #tpu.memory_space<vmem>>) attributes {dimension_semantics = [#tpu.dimension_semantics<parallel>], iteration_bounds = array<i64: 1>, scalar_prefetch = 0 : i64, scratch_operands = 0 : i64, tpu.core_type = #tpu.core_type<tc>, window_params = [{transform_indices = @transform_0, window_bounds = array<i64: 384, 576>}, {pipeline_mode = #tpu.pipeline_mode<synchronous>, transform_indices = @transform_1, window_bounds = array<i64: 576, 64>}, {pipeline_mode = #tpu.pipeline_mode<synchronous>, transform_indices = @transform_2, window_bounds = array<i64: 1, 64>}, {transform_indices = @transform_3, window_bounds = array<i64: 384, 64>}]} {
    %c0 = arith.constant 0 : index
    %c0_0 = arith.constant 0 : index
    %0 = vector.load %arg1[%c0, %c0_0] : memref<384x576xf32, #tpu.memory_space<vmem>>, vector<384x576xf32>
    %c0_1 = arith.constant 0 : index
    %c0_2 = arith.constant 0 : index
    %1 = vector.load %arg2[%c0_1, %c0_2] : memref<576x64xf32, #tpu.memory_space<vmem>>, vector<576x64xf32>
    %cst = arith.constant dense<0.000000e+00> : vector<384x64xf32>
    %2 = tpu.matmul %0, %1, %cst {dimension_numbers = #tpu.dot_dimension_numbers<[1], [0], [0], [1], [0, 0, 1, 1], [], []>} : vector<384x576xf32>, vector<576x64xf32>, vector<384x64xf32> -> vector<384x64xf32>
    %c0_3 = arith.constant 0 : index
    %c0_4 = arith.constant 0 : index
    %3 = vector.load %arg3[%c0_3, %c0_4] : memref<1x64xf32, #tpu.memory_space<vmem>>, vector<1x64xf32>
    %4 = vector.broadcast %3 : vector<1x64xf32> to vector<384x64xf32>
    %5 = arith.addf %2, %4 : vector<384x64xf32>
    %cst_5 = arith.constant 0.000000e+00 : f32
    %6 = vector.broadcast %cst_5 : f32 to vector<384x64xf32>
    %7 = arith.maximumf %5, %6 : vector<384x64xf32>
    %c0_6 = arith.constant 0 : index
    %c0_7 = arith.constant 0 : index
    %8 = vector.load %arg4[%c0_6, %c0_7] : memref<384x64xf32, #tpu.memory_space<vmem>>, vector<384x64xf32>
    tpu.vector_store %arg4[%c0_6, %c0_7], %7 {strides = array<i32>} : memref<384x64xf32, #tpu.memory_space<vmem>>, vector<384x64xf32>,
    return
  }
  func.func @transform_0(%arg0: i32) -> (i32, i32) {
    %c0_i32 = arith.constant 0 : i32
    %c0_i32_0 = arith.constant 0 : i32
    return %arg0, %c0_i32 : i32, i32
  }
  func.func @transform_1(%arg0: i32) -> (i32, i32) {
    %c0_i32 = arith.constant 0 : i32
    %c0_i32_0 = arith.constant 0 : i32
    %c0_i32_1 = arith.constant 0 : i32
    return %c0_i32, %c0_i32_0 : i32, i32
  }
  func.func @transform_2(%arg0: i32) -> (i32, i32) {
    %c0_i32 = arith.constant 0 : i32
    %c0_i32_0 = arith.constant 0 : i32
    %c0_i32_1 = arith.constant 0 : i32
    return %c0_i32, %c0_i32_0 : i32, i32
  }
  func.func @transform_3(%arg0: i32) -> (i32, i32) {
    %c0_i32 = arith.constant 0 : i32
    %c0_i32_0 = arith.constant 0 : i32
    return %arg0, %c0_i32 : i32, i32
  }
}

module attributes {stable_mosaic.version = 11 : i64} {
  func.func @_conv_mm_relu_kernel(%arg0: i32, %arg1: memref<128x27xf32, #tpu.memory_space<vmem>>, %arg2: memref<27x64xf32, #tpu.memory_space<vmem>>, %arg3: memref<1x64xf32, #tpu.memory_space<vmem>>, %arg4: memref<128x64xf32, #tpu.memory_space<vmem>>) attributes {dimension_semantics = [#tpu.dimension_semantics<parallel>], iteration_bounds = array<i64: 1>, scalar_prefetch = 0 : i64, scratch_operands = 0 : i64, tpu.core_type = #tpu.core_type<tc>, window_params = [{transform_indices = @transform_0, window_bounds = array<i64: 128, 27>}, {pipeline_mode = #tpu.pipeline_mode<synchronous>, transform_indices = @transform_1, window_bounds = array<i64: 27, 64>}, {pipeline_mode = #tpu.pipeline_mode<synchronous>, transform_indices = @transform_2, window_bounds = array<i64: 1, 64>}, {transform_indices = @transform_3, window_bounds = array<i64: 128, 64>}]} {
    %c0 = arith.constant 0 : index
    %c0_0 = arith.constant 0 : index
    %0 = vector.load %arg1[%c0, %c0_0] : memref<128x27xf32, #tpu.memory_space<vmem>>, vector<128x27xf32>
    %c0_1 = arith.constant 0 : index
    %c0_2 = arith.constant 0 : index
    %1 = vector.load %arg2[%c0_1, %c0_2] : memref<27x64xf32, #tpu.memory_space<vmem>>, vector<27x64xf32>
    %cst = arith.constant dense<0.000000e+00> : vector<128x64xf32>
    %2 = tpu.matmul %0, %1, %cst {dimension_numbers = #tpu.dot_dimension_numbers<[1], [0], [0], [1], [0, 0, 1, 1], [], []>} : vector<128x27xf32>, vector<27x64xf32>, vector<128x64xf32> -> vector<128x64xf32>
    %c0_3 = arith.constant 0 : index
    %c0_4 = arith.constant 0 : index
    %3 = vector.load %arg3[%c0_3, %c0_4] : memref<1x64xf32, #tpu.memory_space<vmem>>, vector<1x64xf32>
    %4 = vector.broadcast %3 : vector<1x64xf32> to vector<128x64xf32>
    %5 = arith.addf %2, %4 : vector<128x64xf32>
    %cst_5 = arith.constant 0.000000e+00 : f32
    %6 = vector.broadcast %cst_5 : f32 to vector<128x64xf32>
    %7 = arith.maximumf %5, %6 : vector<128x64xf32>
    %c0_6 = arith.constant 0 : index
    %c0_7 = arith.constant 0 : index
    %8 = vector.load %arg4[%c0_6, %c0_7] : memref<128x64xf32, #tpu.memory_space<vmem>>, vector<128x64xf32>
    tpu.vector_store %arg4[%c0_6, %c0_7], %7 {strides = array<i32>} : memref<128x64xf32, #tpu.memory_space<vmem>>, vector<128x64xf32>,
    return
  }
  func.func @transform_0(%arg0: i32) -> (i32, i32) {
    %c0_i32 = arith.constant 0 : i32
    %c0_i32_0 = arith.constant 0 : i32
    return %arg0, %c0_i32 : i32, i32
  }
  func.func @transform_1(%arg0: i32) -> (i32, i32) {
    %c0_i32 = arith.constant 0 : i32
    %c0_i32_0 = arith.constant 0 : i32
    %c0_i32_1 = arith.constant 0 : i32
    return %c0_i32, %c0_i32_0 : i32, i32
  }
  func.func @transform_2(%arg0: i32) -> (i32, i32) {
    %c0_i32 = arith.constant 0 : i32
    %c0_i32_0 = arith.constant 0 : i32
    %c0_i32_1 = arith.constant 0 : i32
    return %c0_i32, %c0_i32_0 : i32, i32
  }
  func.func @transform_3(%arg0: i32) -> (i32, i32) {
    %c0_i32 = arith.constant 0 : i32
    %c0_i32_0 = arith.constant 0 : i32
    return %arg0, %c0_i32 : i32, i32
  }
}

module attributes {stable_mosaic.version = 11 : i64} {
  func.func @_contrastive_ratio_kernel(%arg0: i32, %arg1: memref<64x128xf32, #tpu.memory_space<vmem>>, %arg2: memref<64x128xf32, #tpu.memory_space<vmem>>, %arg3: memref<64x128xf32, #tpu.memory_space<vmem>>, %arg4: memref<64x128xf32, #tpu.memory_space<vmem>>, %arg5: memref<1x1xf32, #tpu.memory_space<smem>>, %arg6: memref<3xf32, #tpu.memory_space<smem>>) attributes {dimension_semantics = [#tpu.dimension_semantics<arbitrary>], iteration_bounds = array<i64: 1>, scalar_prefetch = 0 : i64, scratch_operands = 1 : i64, tpu.core_type = #tpu.core_type<tc>, window_params = [{transform_indices = @transform_0, window_bounds = array<i64: 64, 128>}, {transform_indices = @transform_1, window_bounds = array<i64: 64, 128>}, {transform_indices = @transform_2, window_bounds = array<i64: 64, 128>}, {transform_indices = @transform_3, window_bounds = array<i64: 64, 128>}, {transform_indices = @transform_4, window_bounds = array<i64: 1, 1>}]} {
    %c0_i32 = arith.constant 0 : i32
    %0 = arith.cmpi eq, %arg0, %c0_i32 : i32
    %1 = arith.extui %0 : i1 to i32
    %c0_i32_0 = arith.constant 0 : i32
    %2 = arith.cmpi ne, %1, %c0_i32_0 : i32
    scf.if %2 {
      %cst_16 = arith.constant 0.000000e+00 : f32
      %c0_17 = arith.constant 0 : index
      %37 = memref.load %arg6[%c0_17] : memref<3xf32, #tpu.memory_space<smem>>
      memref.store %cst_16, %arg6[%c0_17] : memref<3xf32, #tpu.memory_space<smem>>
      %cst_18 = arith.constant 0.000000e+00 : f32
      %c1_19 = arith.constant 1 : index
      %38 = memref.load %arg6[%c1_19] : memref<3xf32, #tpu.memory_space<smem>>
      memref.store %cst_18, %arg6[%c1_19] : memref<3xf32, #tpu.memory_space<smem>>
      %cst_20 = arith.constant 0.000000e+00 : f32
      %c2_21 = arith.constant 2 : index
      %39 = memref.load %arg6[%c2_21] : memref<3xf32, #tpu.memory_space<smem>>
      memref.store %cst_20, %arg6[%c2_21] : memref<3xf32, #tpu.memory_space<smem>>
    } else {
    }
    %c0 = arith.constant 0 : index
    %c0_1 = arith.constant 0 : index
    %3 = vector.load %arg1[%c0, %c0_1] : memref<64x128xf32, #tpu.memory_space<vmem>>, vector<64x128xf32>
    %c0_2 = arith.constant 0 : index
    %4 = memref.load %arg6[%c0_2] : memref<3xf32, #tpu.memory_space<smem>>
    %c0_3 = arith.constant 0 : index
    %c0_4 = arith.constant 0 : index
    %5 = vector.load %arg2[%c0_3, %c0_4] : memref<64x128xf32, #tpu.memory_space<vmem>>, vector<64x128xf32>
    %6 = arith.subf %3, %5 : vector<64x128xf32>
    %7 = math.absf %6 : vector<64x128xf32>
    %8 = vector.shape_cast %7 : vector<64x128xf32> to vector<1x64x128xf32>
    %cst = arith.constant dense<0.000000e+00> : vector<1xf32>
    %9 = vector.multi_reduction <add>, %8, %cst [1, 2] : vector<1x64x128xf32> to vector<1xf32>
    %10 = vector.shape_cast %9 : vector<1xf32> to vector<1x1x1xf32>
    %11 = vector.extract %10[0, 0, 0] : f32 from vector<1x1x1xf32>
    %12 = arith.addf %4, %11 : f32
    %c0_5 = arith.constant 0 : index
    %13 = memref.load %arg6[%c0_5] : memref<3xf32, #tpu.memory_space<smem>>
    memref.store %12, %arg6[%c0_5] : memref<3xf32, #tpu.memory_space<smem>>
    %c1 = arith.constant 1 : index
    %14 = memref.load %arg6[%c1] : memref<3xf32, #tpu.memory_space<smem>>
    %c0_6 = arith.constant 0 : index
    %c0_7 = arith.constant 0 : index
    %15 = vector.load %arg3[%c0_6, %c0_7] : memref<64x128xf32, #tpu.memory_space<vmem>>, vector<64x128xf32>
    %16 = arith.subf %3, %15 : vector<64x128xf32>
    %17 = math.absf %16 : vector<64x128xf32>
    %18 = vector.shape_cast %17 : vector<64x128xf32> to vector<1x64x128xf32>
    %cst_8 = arith.constant dense<0.000000e+00> : vector<1xf32>
    %19 = vector.multi_reduction <add>, %18, %cst_8 [1, 2] : vector<1x64x128xf32> to vector<1xf32>
    %20 = vector.shape_cast %19 : vector<1xf32> to vector<1x1x1xf32>
    %21 = vector.extract %20[0, 0, 0] : f32 from vector<1x1x1xf32>
    %22 = arith.addf %14, %21 : f32
    %c1_9 = arith.constant 1 : index
    %23 = memref.load %arg6[%c1_9] : memref<3xf32, #tpu.memory_space<smem>>
    memref.store %22, %arg6[%c1_9] : memref<3xf32, #tpu.memory_space<smem>>
    %c2 = arith.constant 2 : index
    %24 = memref.load %arg6[%c2] : memref<3xf32, #tpu.memory_space<smem>>
    %c0_10 = arith.constant 0 : index
    %c0_11 = arith.constant 0 : index
    %25 = vector.load %arg4[%c0_10, %c0_11] : memref<64x128xf32, #tpu.memory_space<vmem>>, vector<64x128xf32>
    %26 = arith.subf %3, %25 : vector<64x128xf32>
    %27 = math.absf %26 : vector<64x128xf32>
    %28 = vector.shape_cast %27 : vector<64x128xf32> to vector<1x64x128xf32>
    %cst_12 = arith.constant dense<0.000000e+00> : vector<1xf32>
    %29 = vector.multi_reduction <add>, %28, %cst_12 [1, 2] : vector<1x64x128xf32> to vector<1xf32>
    %30 = vector.shape_cast %29 : vector<1xf32> to vector<1x1x1xf32>
    %31 = vector.extract %30[0, 0, 0] : f32 from vector<1x1x1xf32>
    %32 = arith.addf %24, %31 : f32
    %c2_13 = arith.constant 2 : index
    %33 = memref.load %arg6[%c2_13] : memref<3xf32, #tpu.memory_space<smem>>
    memref.store %32, %arg6[%c2_13] : memref<3xf32, #tpu.memory_space<smem>>
    %c0_i32_14 = arith.constant 0 : i32
    %34 = arith.cmpi eq, %arg0, %c0_i32_14 : i32
    %35 = arith.extui %34 : i1 to i32
    %c0_i32_15 = arith.constant 0 : i32
    %36 = arith.cmpi ne, %35, %c0_i32_15 : i32
    scf.if %36 {
      %c0_16 = arith.constant 0 : index
      %37 = memref.load %arg6[%c0_16] : memref<3xf32, #tpu.memory_space<smem>>
      %cst_17 = arith.constant 3.125000e-02 : f32
      %38 = arith.mulf %cst_17, %37 : f32
      %c1_18 = arith.constant 1 : index
      %39 = memref.load %arg6[%c1_18] : memref<3xf32, #tpu.memory_space<smem>>
      %c2_19 = arith.constant 2 : index
      %40 = memref.load %arg6[%c2_19] : memref<3xf32, #tpu.memory_space<smem>>
      %41 = arith.addf %39, %40 : f32
      %42 = arith.divf %38, %41 : f32
      %c0_20 = arith.constant 0 : index
      %c0_21 = arith.constant 0 : index
      %43 = memref.load %arg5[%c0_20, %c0_21] : memref<1x1xf32, #tpu.memory_space<smem>>
      memref.store %42, %arg5[%c0_20, %c0_21] : memref<1x1xf32, #tpu.memory_space<smem>>
    } else {
    }
    return
  }
  func.func @transform_0(%arg0: i32) -> (i32, i32) {
    %c0_i32 = arith.constant 0 : i32
    %c0_i32_0 = arith.constant 0 : i32
    return %arg0, %c0_i32 : i32, i32
  }
  func.func @transform_1(%arg0: i32) -> (i32, i32) {
    %c0_i32 = arith.constant 0 : i32
    %c0_i32_0 = arith.constant 0 : i32
    return %arg0, %c0_i32 : i32, i32
  }
  func.func @transform_2(%arg0: i32) -> (i32, i32) {
    %c0_i32 = arith.constant 0 : i32
    %c0_i32_0 = arith.constant 0 : i32
    return %arg0, %c0_i32 : i32, i32
  }
  func.func @transform_3(%arg0: i32) -> (i32, i32) {
    %c0_i32 = arith.constant 0 : i32
    %c0_i32_0 = arith.constant 0 : i32
    return %arg0, %c0_i32 : i32, i32
  }
  func.func @transform_4(%arg0: i32) -> (i32, i32) {
    %c0_i32 = arith.constant 0 : i32
    %c0_i32_0 = arith.constant 0 : i32
    %c0_i32_1 = arith.constant 0 : i32
    return %c0_i32, %c0_i32_0 : i32, i32
  }
}

</mosaic_0001>

<llo_original>
// kernel: _lambda_.7
$region0: #{_lambda_.7}
  #allocation0 [shape = 'u32[]', space=smem, size = 0x4, offset = 0x4, fixed_abs, tag = 'smem constant byte address 0x4 - core index']
  #allocation1 [shape = 'u32[144,128]{1,0:T(1,128)}', space=vmem, size = 0x12000, scoped, tag = 'internal scratch']
  %s0 = inlined_call_operand.vmem [shape: f32[1536,27], index: 0, kind: input, shape index: {}]
  %s1 = inlined_call_operand.vmem [shape: f32[27,64], index: 1, kind: input, shape index: {}]
  %s2 = inlined_call_operand.vmem [shape: f32[1,64], index: 2, kind: input, shape index: {}]
  %s3 = inlined_call_operand.vmem [shape: f32[1536,64], index: 3, kind: output, shape index: {}]
  %s4 = sld [smem:[#allocation0]]
  $region45: #{_lambda_.7} parent=0
    _
  %s6 = ssub.s32 1, %s4
  %s7 = scalar_select 0, %s6, %s4
  loop: start=0, step=1, limit=5
  $region2: #{_lambda_.7} parent=0 // loop_pre_header
    _
  $region3: #{_lambda_.7} parent=0 // loop_header
    %s9 = sphi 0, %s13
    %p10 = scmp.ge.s32.totalorder %s9, 5
    %s19 = sphi 0, %s21
    %s22 = sphi 0, %s19
    %s23 = sphi 0, %s22
    %s39 = sphi 0, %s23
    %s43 = sphi 0, %s43
    %s45 = sphi 0, %s43
    %s46 = sphi 0, %s45
    %s60 = sphi 0, %s46
    %s64 = sphi 0, %s64
    %s66 = sphi 0, %s64
    %s67 = sphi 0, %s66
    %s81 = sphi 0, %s67
    %s87 = sphi 0, %s89
    %s90 = sphi 0, %s87
    %s91 = sphi 0, %s90
    %s107 = sphi 0, %s91
  $region4: #{_lambda_.7} parent=0 // loop_header_branch
    %12 = sbr.rel (%p10) target = $region8
  $region5: #{_lambda_.7} parent=0 // loop_body
    %s14 = ssub.s32 %s9, 1
    %s15 = ssub.s32 %s9, 2
    %s16 = sadd.s32 %s9, 1
    %s17 = ssub.s32 %s9, %s16
    %p18 = scmp.eq.s32.totalorder %s17, 0
    %s20 = sadd.s32 %s19, 1
    %s21 = scalar_select %p18, %s19, %s20
    %p24 = pneg %p18
    %p25 = scmp.eq.s32.totalorder %s9, 2
    %p26 = por %p24, %p25
    %p27 = scmp.ne.s32.totalorder %s19, %s22
    %p28 = scmp.eq.s32.totalorder %s9, 0
    %p29 = por %p27, %p28
    %p30 = scmp.ne.s32.totalorder %s19, %s22
    %p31 = scmp.eq.s32.totalorder %s14, 2
    %p32 = por %p30, %p31
    %p33 = scmp.ne.s32.totalorder %s22, %s23
    %p34 = scmp.eq.s32.totalorder %s14, 0
    %p35 = por %p33, %p34
    %p36 = scmp.ne.s32.totalorder %s22, %s23
    %p37 = scmp.eq.s32.totalorder %s15, 2
    %p38 = por %p36, %p37
    %p40 = scmp.ne.s32.totalorder %s23, %s39
    %p41 = scmp.eq.s32.totalorder %s15, 0
    %p42 = por %p40, %p41
    %s44 = sadd.s32 %s43, 1
    %p47 = scmp.eq.s32.totalorder %s9, 2
    %p48 = scmp.ne.s32.totalorder %s43, %s45
    %p49 = scmp.eq.s32.totalorder %s9, 0
    %p50 = por %p48, %p49
    %p51 = scmp.ne.s32.totalorder %s43, %s45
    %p52 = scmp.eq.s32.totalorder %s14, 2
    %p53 = por %p51, %p52
    %p54 = scmp.ne.s32.totalorder %s45, %s46
    %p55 = scmp.eq.s32.totalorder %s14, 0
    %p56 = por %p54, %p55
    %p57 = scmp.ne.s32.totalorder %s45, %s46
    %p58 = scmp.eq.s32.totalorder %s15, 2
    %p59 = por %p57, %p58
    %p61 = scmp.ne.s32.totalorder %s46, %s60
    %p62 = scmp.eq.s32.totalorder %s15, 0
    %p63 = por %p61, %p62
    %s65 = sadd.s32 %s64, 1
    %p68 = scmp.eq.s32.totalorder %s9, 2
    %p69 = scmp.ne.s32.totalorder %s64, %s66
    %p70 = scmp.eq.s32.totalorder %s9, 0
    %p71 = por %p69, %p70
    %p72 = scmp.ne.s32.totalorder %s64, %s66
    %p73 = scmp.eq.s32.totalorder %s14, 2
    %p74 = por %p72, %p73
    %p75 = scmp.ne.s32.totalorder %s66, %s67
    %p76 = scmp.eq.s32.totalorder %s14, 0
    %p77 = por %p75, %p76
    %p78 = scmp.ne.s32.totalorder %s66, %s67
    %p79 = scmp.eq.s32.totalorder %s15, 2
    %p80 = por %p78, %p79
    %p82 = scmp.ne.s32.totalorder %s67, %s81
    %p83 = scmp.eq.s32.totalorder %s15, 0
    %p84 = por %p82, %p83
    %s85 = ssub.s32 %s9, %s16
    %p86 = scmp.eq.s32.totalorder %s85, 0
    %s88 = sadd.s32 %s87, 1
    %s89 = scalar_select %p86, %s87, %s88
    %p92 = pneg %p86
    %p93 = scmp.eq.s32.totalorder %s9, 2
    %p94 = por %p92, %p93
    %p95 = scmp.ne.s32.totalorder %s87, %s90
    %p96 = scmp.eq.s32.totalorder %s9, 0
    %p97 = por %p95, %p96
    %p98 = scmp.ne.s32.totalorder %s87, %s90
    %p99 = scmp.eq.s32.totalorder %s14, 2
    %p100 = por %p98, %p99
    %p101 = scmp.ne.s32.totalorder %s90, %s91
    %p102 = scmp.eq.s32.totalorder %s14, 0
    %p103 = por %p101, %p102
    %p104 = scmp.ne.s32.totalorder %s90, %s91
    %p105 = scmp.eq.s32.totalorder %s15, 2
    %p106 = por %p104, %p105
    %p108 = scmp.ne.s32.totalorder %s91, %s107
    %p109 = scmp.eq.s32.totalorder %s15, 0
    %p110 = por %p108, %p109
    %p111 = scmp.le.s32.totalorder 1, %s9
    %p112 = scmp.lt.s32.totalorder %s9, 4
    %p113 = pnand %p111, %p112
    %p114 = pneg %p113
    // Predicated region
    $region9: #{_lambda_.7} parent=5 // pred_check
      _
    $region10: #{_lambda_.7} parent=5 // pred_check_branch
      %116 = sbr.rel (%p113) target = $region12
    $region11: #{_lambda_.7} parent=5 // pred_region
      %s117 = ssub.s32 %s9, 1
      // Predicated region
      $region13: #{_lambda_.7} parent=11 // pred_check
        %p118 = pneg %p56
      $region14: #{_lambda_.7} parent=11 // pred_check_branch
        %120 = sbr.rel (%p118) target = $region16
      $region15: #{_lambda_.7} parent=11 // pred_region
        _
      $region16: #{_lambda_.7} parent=11 // pred_fallthru
        _
      // Predicated region
      $region17: #{_lambda_.7} parent=11 // pred_check
        %p121 = pneg %p77
      $region18: #{_lambda_.7} parent=11 // pred_check_branch
        %123 = sbr.rel (%p121) target = $region20
      $region19: #{_lambda_.7} parent=11 // pred_region
        _
      $region20: #{_lambda_.7} parent=11 // pred_fallthru
        _
    $region12: #{_lambda_.7} parent=5 // pred_fallthru
      _
    %p124 = scmp.lt.s32.totalorder %s9, 3
    // Predicated region
    $region21: #{_lambda_.7} parent=5 // pred_check
      %p125 = pneg %p124
    $region22: #{_lambda_.7} parent=5 // pred_check_branch
      %127 = sbr.rel (%p125) target = $region24
    $region23: #{_lambda_.7} parent=5 // pred_region
      // Predicated region
      $region25: #{_lambda_.7} parent=23 // pred_check
        %p128 = pneg %p29
      $region26: #{_lambda_.7} parent=23 // pred_check_branch
        %130 = sbr.rel (%p128) target = $region28
      $region27: #{_lambda_.7} parent=23 // pred_region
        %s131 = smul.u32 64, %s9
        %p132 = scmp.lt.s32.totalorder %s131, 191
        %s133 = scalar_select %p132, %s131, 191
        %s134 = smul.addr %s133, 8
        %s135 = scalar_lea.vmem %s0, %s134
        %s136 = smul.u32 64, %s9
      $region28: #{_lambda_.7} parent=23 // pred_fallthru
        _
    $region24: #{_lambda_.7} parent=5 // pred_fallthru
      _
    %p137 = scmp.le.s32.totalorder 1, %s9
    %p138 = scmp.lt.s32.totalorder %s9, 4
    %p139 = pnand %p137, %p138
    %p140 = pneg %p139
    // Predicated region
    $region29: #{_lambda_.7} parent=5 // pred_check
      _
    $region30: #{_lambda_.7} parent=5 // pred_check_branch
      %142 = sbr.rel (%p139) target = $region32
    $region31: #{_lambda_.7} parent=5 // pred_region
      %s143 = ssub.s32 %s9, 1
      %s144 = smul.u32 64, %s14
      %p145 = scmp.lt.s32.totalorder %s144, 191
      %s146 = scalar_select %p145, %s144, 191
      %s147 = smul.addr %s146, 8
      %s148 = scalar_lea.vmem %s0, %s147
      %p149 = pneg %p35
      %p150 = pneg %p32
      %p151 = pneg %p56
      %p152 = pneg %p53
      %p153 = pneg %p77
      %p154 = pneg %p74
      %p155 = pneg %p103
      %p156 = pneg %p100
      %s157 = smul.u32 64, %s14
      %p158 = scmp.lt.s32.totalorder %s157, 191
      %s159 = scalar_select %p158, %s157, 191
      %s160 = smul.addr %s159, 8
      %s161 = scalar_lea.vmem %s3, %s160
      %s162 = smul.u32 64, %s14
      %p163 = scmp.lt.s32.totalorder %s162, 191
      %s164 = scalar_select %p163, %s162, 191
      %s165 = smul.addr %s164, 8
      %s166 = scalar_lea.vmem %s0, %s165
      %s167 = smul.u32 64, %s14
      %s168 = smul.u32 64, %s14
      %p169 = scmp.lt.s32.totalorder %s168, 191
      %s170 = scalar_select %p169, %s168, 191
      %s171 = smul.addr %s170, 8
      %s172 = scalar_lea.vmem %s3, %s171
      %s173 = smul.u32 64, %s14
      %v174 = vld [vmem:[%s166] sm:$0xff]
      %v175 = vld [vmem:[%s166 + $0x8] sm:$0xff]
      %v176 = vld [vmem:[%s166 + $0x10] sm:$0xff]
      %v177 = vld [vmem:[%s166 + $0x18] sm:$0xff]
      %v178 = vld [vmem:[%s166 + $0x20] sm:$0xff]
      %v179 = vld [vmem:[%s166 + $0x28] sm:$0xff]
      %v180 = vld [vmem:[%s166 + $0x30] sm:$0xff]
      %v181 = vld [vmem:[%s166 + $0x38] sm:$0xff]
      %v182 = vld [vmem:[%s166 + $0x40] sm:$0xff]
      %v183 = vld [vmem:[%s166 + $0x48] sm:$0xff]
      %v184 = vld [vmem:[%s166 + $0x50] sm:$0xff]
      %v185 = vld [vmem:[%s166 + $0x58] sm:$0xff]
      %v186 = vld [vmem:[%s166 + $0x60] sm:$0xff]
      %v187 = vld [vmem:[%s166 + $0x68] sm:$0xff]
      %v188 = vld [vmem:[%s166 + $0x70] sm:$0xff]
      %v189 = vld [vmem:[%s166 + $0x78] sm:$0xff]
      %v190 = vld [vmem:[%s166 + $0x80] sm:$0xff]
      %v191 = vld [vmem:[%s166 + $0x88] sm:$0xff]
      %v192 = vld [vmem:[%s166 + $0x90] sm:$0xff]
      %v193 = vld [vmem:[%s166 + $0x98] sm:$0xff]
      %v194 = vld [vmem:[%s166 + $0xa0] sm:$0xff]
      %v195 = vld [vmem:[%s166 + $0xa8] sm:$0xff]
      %v196 = vld [vmem:[%s166 + $0xb0] sm:$0xff]
      %v197 = vld [vmem:[%s166 + $0xb8] sm:$0xff]
      %v198 = vld [vmem:[%s166 + $0xc0] sm:$0xff]
      %v199 = vld [vmem:[%s166 + $0xc8] sm:$0xff]
      %v200 = vld [vmem:[%s166 + $0xd0] sm:$0xff]
      %v201 = vld [vmem:[%s166 + $0xd8] sm:$0xff]
      %v202 = vld [vmem:[%s166 + $0xe0] sm:$0xff]
      %v203 = vld [vmem:[%s166 + $0xe8] sm:$0xff]
      %v204 = vld [vmem:[%s166 + $0xf0] sm:$0xff]
      %v205 = vld [vmem:[%s166 + $0xf8] sm:$0xff]
      %v206 = vld [vmem:[%s166 + $0x100] sm:$0xff]
      %v207 = vld [vmem:[%s166 + $0x108] sm:$0xff]
      %v208 = vld [vmem:[%s166 + $0x110] sm:$0xff]
      %v209 = vld [vmem:[%s166 + $0x118] sm:$0xff]
      %v210 = vld [vmem:[%s166 + $0x120] sm:$0xff]
      %v211 = vld [vmem:[%s166 + $0x128] sm:$0xff]
      %v212 = vld [vmem:[%s166 + $0x130] sm:$0xff]
      %v213 = vld [vmem:[%s166 + $0x138] sm:$0xff]
      %v214 = vld [vmem:[%s166 + $0x140] sm:$0xff]
      %v215 = vld [vmem:[%s166 + $0x148] sm:$0xff]
      %v216 = vld [vmem:[%s166 + $0x150] sm:$0xff]
      %v217 = vld [vmem:[%s166 + $0x158] sm:$0xff]
      %v218 = vld [vmem:[%s166 + $0x160] sm:$0xff]
      %v219 = vld [vmem:[%s166 + $0x168] sm:$0xff]
      %v220 = vld [vmem:[%s166 + $0x170] sm:$0xff]
      %v221 = vld [vmem:[%s166 + $0x178] sm:$0xff]
      %v222 = vld [vmem:[%s166 + $0x180] sm:$0xff]
      %v223 = vld [vmem:[%s166 + $0x188] sm:$0xff]
      %v224 = vld [vmem:[%s166 + $0x190] sm:$0xff]
      %v225 = vld [vmem:[%s166 + $0x198] sm:$0xff]
      %v226 = vld [vmem:[%s166 + $0x1a0] sm:$0xff]
      %v227 = vld [vmem:[%s166 + $0x1a8] sm:$0xff]
      %v228 = vld [vmem:[%s166 + $0x1b0] sm:$0xff]
      %v229 = vld [vmem:[%s166 + $0x1b8] sm:$0xff]
      %v230 = vld [vmem:[%s166 + $0x1c0] sm:$0xff]
      %v231 = vld [vmem:[%s166 + $0x1c8] sm:$0xff]
      %v232 = vld [vmem:[%s166 + $0x1d0] sm:$0xff]
      %v233 = vld [vmem:[%s166 + $0x1d8] sm:$0xff]
      %v234 = vld [vmem:[%s166 + $0x1e0] sm:$0xff]
      %v235 = vld [vmem:[%s166 + $0x1e8] sm:$0xff]
      %v236 = vld [vmem:[%s166 + $0x1f0] sm:$0xff]
      %v237 = vld [vmem:[%s166 + $0x1f8] sm:$0xff]
      %v238 = vld [vmem:[%s1] sm:$0xff]
      %v239 = vld [vmem:[%s1 + $0x8] sm:$0xff]
      %v240 = vld [vmem:[%s1 + $0x10] sm:$0xff]
      %v241 = vld [vmem:[%s1 + $0x18] sm:$0x7]
      %v242 = vld [vmem:[%s2] sm:$0x1]
      %v244 = vlaneseq
      %v245 = vshrl.u32 %v244, 7
      %v246 = vsub.s32 0, %v245
      %v247 = vrot.slane %v242, %v246
      %vm249 = vcmask 220160
      %v251 = vsel %vm249, %v174, 0
      %v254 = vsel %vm249, %v175, 0
      %v257 = vsel %vm249, %v176, 0
      %v260 = vsel %vm249, %v177, 0
      %v263 = vsel %vm249, %v178, 0
      %v266 = vsel %vm249, %v179, 0
      %v269 = vsel %vm249, %v180, 0
      %v272 = vsel %vm249, %v181, 0
      %v275 = vsel %vm249, %v182, 0
      %v278 = vsel %vm249, %v183, 0
      %v281 = vsel %vm249, %v184, 0
      %v284 = vsel %vm249, %v185, 0
      %v287 = vsel %vm249, %v186, 0
      %v290 = vsel %vm249, %v187, 0
      %v293 = vsel %vm249, %v188, 0
      %v296 = vsel %vm249, %v189, 0
      %v299 = vsel %vm249, %v190, 0
      %v302 = vsel %vm249, %v191, 0
      %v305 = vsel %vm249, %v192, 0
      %v308 = vsel %vm249, %v193, 0
      %v311 = vsel %vm249, %v194, 0
      %v314 = vsel %vm249, %v195, 0
      %v317 = vsel %vm249, %v196, 0
      %v320 = vsel %vm249, %v197, 0
      %v323 = vsel %vm249, %v198, 0
      %v326 = vsel %vm249, %v199, 0
      %v329 = vsel %vm249, %v200, 0
      %v332 = vsel %vm249, %v201, 0
      %v335 = vsel %vm249, %v202, 0
      %v338 = vsel %vm249, %v203, 0
      %v341 = vsel %vm249, %v204, 0
      %v344 = vsel %vm249, %v205, 0
      %v347 = vsel %vm249, %v206, 0
      %v350 = vsel %vm249, %v207, 0
      %v353 = vsel %vm249, %v208, 0
      %v356 = vsel %vm249, %v209, 0
      %v359 = vsel %vm249, %v210, 0
      %v362 = vsel %vm249, %v211, 0
      %v365 = vsel %vm249, %v212, 0
      %v368 = vsel %vm249, %v213, 0
      %v371 = vsel %vm249, %v214, 0
      %v374 = vsel %vm249, %v215, 0
      %v377 = vsel %vm249, %v216, 0
      %v380 = vsel %vm249, %v217, 0
      %v383 = vsel %vm249, %v218, 0
      %v386 = vsel %vm249, %v219, 0
      %v389 = vsel %vm249, %v220, 0
      %v392 = vsel %vm249, %v221, 0
      %v395 = vsel %vm249, %v222, 0
      %v398 = vsel %vm249, %v223, 0
      %v401 = vsel %vm249, %v224, 0
      %v404 = vsel %vm249, %v225, 0
      %v407 = vsel %vm249, %v226, 0
      %v410 = vsel %vm249, %v227, 0
      %v413 = vsel %vm249, %v228, 0
      %v416 = vsel %vm249, %v229, 0
      %v419 = vsel %vm249, %v230, 0
      %v422 = vsel %vm249, %v231, 0
      %v425 = vsel %vm249, %v232, 0
      %v428 = vsel %vm249, %v233, 0
      %v431 = vsel %vm249, %v234, 0
      %v434 = vsel %vm249, %v235, 0
      %v437 = vsel %vm249, %v236, 0
      %v440 = vsel %vm249, %v237, 0
      %vm442 = vcmask 1042432
      %v444 = vsel %vm442, %v241, 0
      %446 = vmatprep.subr.mxu0 0.0
      %447 = vmatpush1.msra.mxu0 %v238
      %448 = vmatprep.subr.mxu0 0.0
      %449 = vmatpush1.msra.mxu0 %v239
      %450 = vmatprep.subr.mxu0 0.0
      %451 = vmatpush1.msra.mxu0 %v240
      %452 = vmatprep.subr.mxu0 0.0
      %453 = vmatpush1.msra.mxu0 %v444
      %454 = vmatprep.subr.mxu0 0.0
      %455 = vmatpush1.msra.mxu0 0.0
      %456 = vmatprep.subr.mxu0 0.0
      %457 = vmatpush1.msra.mxu0 0.0
      %458 = vmatprep.subr.mxu0 0.0
      %459 = vmatpush1.msra.mxu0 0.0
      %460 = vmatprep.subr.mxu0 0.0
      %461 = vmatpush1.msra.mxu0 0.0
      %462 = vmatprep.subr.mxu0 0.0
      %463 = vmatpush1.msra.mxu0 0.0
      %464 = vmatprep.subr.mxu0 0.0
      %465 = vmatpush1.msra.mxu0 0.0
      %466 = vmatprep.subr.mxu0 0.0
      %467 = vmatpush1.msra.mxu0 0.0
      %468 = vmatprep.subr.mxu0 0.0
      %469 = vmatpush1.msra.mxu0 0.0
      %470 = vmatprep.subr.mxu0 0.0
      %471 = vmatpush1.msra.mxu0 0.0
      %472 = vmatprep.subr.mxu0 0.0
      %473 = vmatpush1.msra.mxu0 0.0
      %474 = vmatprep.subr.mxu0 0.0
      %475 = vmatpush1.msra.mxu0 0.0
      %476 = vmatprep.subr.mxu0 0.0
      %477 = vmatpush1.msra.mxu0 0.0
      %478 = vmatprep.subr.mxu0 0.0
      %479 = vmatpush1.msra.mxu0 0.0
      %480 = vmatprep.subr.mxu0 0.0
      %481 = vmatpush1.msra.mxu0 0.0
      %482 = vmatprep.subr.mxu0 0.0
      %483 = vmatpush1.msra.mxu0 0.0
      %484 = vmatprep.subr.mxu0 0.0
      %485 = vmatpush1.msra.mxu0 0.0
      %486 = vmatprep.subr.mxu0 0.0
      %487 = vmatpush1.msra.mxu0 0.0
      %488 = vmatprep.subr.mxu0 0.0
      %489 = vmatpush1.msra.mxu0 0.0
      %490 = vmatprep.subr.mxu0 0.0
      %491 = vmatpush1.msra.mxu0 0.0
      %492 = vmatprep.subr.mxu0 0.0
      %493 = vmatpush1.msra.mxu0 0.0
      %494 = vmatprep.subr.mxu0 0.0
      %495 = vmatpush1.msra.mxu0 0.0
      %496 = vmatprep.subr.mxu0 0.0
      %497 = vmatpush1.msra.mxu0 0.0
      %498 = vmatprep.subr.mxu0 0.0
      %499 = vmatpush1.msra.mxu0 0.0
      %500 = vmatprep.subr.mxu0 0.0
      %501 = vmatpush1.msra.mxu0 0.0
      %502 = vmatprep.subr.mxu0 0.0
      %503 = vmatpush1.msra.mxu0 0.0
      %504 = vmatprep.subr.mxu0 0.0
      %505 = vmatpush1.msra.mxu0 0.0
      %506 = vmatprep.subr.mxu0 0.0
      %507 = vmatpush1.msra.mxu0 0.0
      %508 = vmatprep.subr.mxu0 0.0
      %509 = vmatpush1.msra.mxu0 0.0
      %510 = vmatprep.mubr.f32.mxu0 0.0
      %511 = vmatmul.mubr.f32.gmra.mrb[0].mxu0 %v251
      %v512 = vpop.f32.mrb[0].mxu0
      %v513 = vadd.f32 %v247, %v512
      %v514 = vpop.f32.mrb[0].mxu0
      %515 = vmatprep.mubr.f32.mxu0 0.0
      %516 = vmatmul.mubr.f32.gmra.mrb[0].mxu0 %v254
      %v517 = vpop.f32.mrb[0].mxu0
      %v518 = vadd.f32 %v247, %v517
      %v519 = vpop.f32.mrb[0].mxu0
      %520 = vmatprep.mubr.f32.mxu0 0.0
      %521 = vmatmul.mubr.f32.gmra.mrb[0].mxu0 %v257
      %v522 = vpop.f32.mrb[0].mxu0
      %v523 = vadd.f32 %v247, %v522
      %v524 = vpop.f32.mrb[0].mxu0
      %525 = vmatprep.mubr.f32.mxu0 0.0
      %526 = vmatmul.mubr.f32.gmra.mrb[0].mxu0 %v260
      %v527 = vpop.f32.mrb[0].mxu0
      %v528 = vadd.f32 %v247, %v527
      %v529 = vpop.f32.mrb[0].mxu0
      %530 = vmatprep.mubr.f32.mxu0 0.0
      %531 = vmatmul.mubr.f32.gmra.mrb[0].mxu0 %v263
      %v532 = vpop.f32.mrb[0].mxu0
      %v533 = vadd.f32 %v247, %v532
      %v534 = vpop.f32.mrb[0].mxu0
      %535 = vmatprep.mubr.f32.mxu0 0.0
      %536 = vmatmul.mubr.f32.gmra.mrb[0].mxu0 %v266
      %v537 = vpop.f32.mrb[0].mxu0
      %v538 = vadd.f32 %v247, %v537
      %v539 = vpop.f32.mrb[0].mxu0
      %540 = vmatprep.mubr.f32.mxu0 0.0
      %541 = vmatmul.mubr.f32.gmra.mrb[0].mxu0 %v269
      %v542 = vpop.f32.mrb[0].mxu0
      %v543 = vadd.f32 %v247, %v542
      %v544 = vpop.f32.mrb[0].mxu0
      %545 = vmatprep.mubr.f32.mxu0 0.0
      %546 = vmatmul.mubr.f32.gmra.mrb[0].mxu0 %v272
      %v547 = vpop.f32.mrb[0].mxu0
      %v548 = vadd.f32 %v247, %v547
      %v549 = vpop.f32.mrb[0].mxu0
      %550 = vmatprep.mubr.f32.mxu0 0.0
      %551 = vmatmul.mubr.f32.gmra.mrb[0].mxu0 %v275
      %v552 = vpop.f32.mrb[0].mxu0
      %v553 = vadd.f32 %v247, %v552
      %v554 = vpop.f32.mrb[0].mxu0
      %555 = vmatprep.mubr.f32.mxu0 0.0
      %556 = vmatmul.mubr.f32.gmra.mrb[0].mxu0 %v278
      %v557 = vpop.f32.mrb[0].mxu0
      %v558 = vadd.f32 %v247, %v557
      %v559 = vpop.f32.mrb[0].mxu0
      %560 = vmatprep.mubr.f32.mxu0 0.0
      %561 = vmatmul.mubr.f32.gmra.mrb[0].mxu0 %v281
      %v562 = vpop.f32.mrb[0].mxu0
      %v563 = vadd.f32 %v247, %v562
      %v564 = vpop.f32.mrb[0].mxu0
      %565 = vmatprep.mubr.f32.mxu0 0.0
      %566 = vmatmul.mubr.f32.gmra.mrb[0].mxu0 %v284
      %v567 = vpop.f32.mrb[0].mxu0
      %v568 = vadd.f32 %v247, %v567
      %v569 = vpop.f32.mrb[0].mxu0
      %570 = vmatprep.mubr.f32.mxu0 0.0
      %571 = vmatmul.mubr.f32.gmra.mrb[0].mxu0 %v287
      %v572 = vpop.f32.mrb[0].mxu0
      %v573 = vadd.f32 %v247, %v572
      %v574 = vpop.f32.mrb[0].mxu0
      %575 = vmatprep.mubr.f32.mxu0 0.0
      %576 = vmatmul.mubr.f32.gmra.mrb[0].mxu0 %v290
      %v577 = vpop.f32.mrb[0].mxu0
      %v578 = vadd.f32 %v247, %v577
      %v579 = vpop.f32.mrb[0].mxu0
      %580 = vmatprep.mubr.f32.mxu0 0.0
      %581 = vmatmul.mubr.f32.gmra.mrb[0].mxu0 %v293
      %v582 = vpop.f32.mrb[0].mxu0
      %v583 = vadd.f32 %v247, %v582
      %v584 = vpop.f32.mrb[0].mxu0
      %585 = vmatprep.mubr.f32.mxu0 0.0
      %586 = vmatmul.mubr.f32.gmra.mrb[0].mxu0 %v296
      %v587 = vpop.f32.mrb[0].mxu0
      %v588 = vadd.f32 %v247, %v587
      %v589 = vpop.f32.mrb[0].mxu0
      %590 = vmatprep.mubr.f32.mxu0 0.0
      %591 = vmatmul.mubr.f32.gmra.mrb[0].mxu0 %v299
      %v592 = vpop.f32.mrb[0].mxu0
      %v593 = vadd.f32 %v247, %v592
      %v594 = vpop.f32.mrb[0].mxu0
      %595 = vmatprep.mubr.f32.mxu0 0.0
      %596 = vmatmul.mubr.f32.gmra.mrb[0].mxu0 %v302
      %v597 = vpop.f32.mrb[0].mxu0
      %v598 = vadd.f32 %v247, %v597
      %v599 = vpop.f32.mrb[0].mxu0
      %600 = vmatprep.mubr.f32.mxu0 0.0
      %601 = vmatmul.mubr.f32.gmra.mrb[0].mxu0 %v305
      %v602 = vpop.f32.mrb[0].mxu0
      %v603 = vadd.f32 %v247, %v602
      %v604 = vpop.f32.mrb[0].mxu0
      %605 = vmatprep.mubr.f32.mxu0 0.0
      %606 = vmatmul.mubr.f32.gmra.mrb[0].mxu0 %v308
      %v607 = vpop.f32.mrb[0].mxu0
      %v608 = vadd.f32 %v247, %v607
      %v609 = vpop.f32.mrb[0].mxu0
      %610 = vmatprep.mubr.f32.mxu0 0.0
      %611 = vmatmul.mubr.f32.gmra.mrb[0].mxu0 %v311
      %v612 = vpop.f32.mrb[0].mxu0
      %v613 = vadd.f32 %v247, %v612
      %v614 = vpop.f32.mrb[0].mxu0
      %615 = vmatprep.mubr.f32.mxu0 0.0
      %616 = vmatmul.mubr.f32.gmra.mrb[0].mxu0 %v314
      %v617 = vpop.f32.mrb[0].mxu0
      %v618 = vadd.f32 %v247, %v617
      %v619 = vpop.f32.mrb[0].mxu0
      %620 = vmatprep.mubr.f32.mxu0 0.0
      %621 = vmatmul.mubr.f32.gmra.mrb[0].mxu0 %v317
      %v622 = vpop.f32.mrb[0].mxu0
      %v623 = vadd.f32 %v247, %v622
      %v624 = vpop.f32.mrb[0].mxu0
      %625 = vmatprep.mubr.f32.mxu0 0.0
      %626 = vmatmul.mubr.f32.gmra.mrb[0].mxu0 %v320
      %v627 = vpop.f32.mrb[0].mxu0
      %v628 = vadd.f32 %v247, %v627
      %v629 = vpop.f32.mrb[0].mxu0
      %630 = vmatprep.mubr.f32.mxu0 0.0
      %631 = vmatmul.mubr.f32.gmra.mrb[0].mxu0 %v323
      %v632 = vpop.f32.mrb[0].mxu0
      %v633 = vadd.f32 %v247, %v632
      %v634 = vpop.f32.mrb[0].mxu0
      %635 = vmatprep.mubr.f32.mxu0 0.0
      %636 = vmatmul.mubr.f32.gmra.mrb[0].mxu0 %v326
      %v637 = vpop.f32.mrb[0].mxu0
      %v638 = vadd.f32 %v247, %v637
      %v639 = vpop.f32.mrb[0].mxu0
      %640 = vmatprep.mubr.f32.mxu0 0.0
      %641 = vmatmul.mubr.f32.gmra.mrb[0].mxu0 %v329
      %v642 = vpop.f32.mrb[0].mxu0
      %v643 = vadd.f32 %v247, %v642
      %v644 = vpop.f32.mrb[0].mxu0
      %645 = vmatprep.mubr.f32.mxu0 0.0
      %646 = vmatmul.mubr.f32.gmra.mrb[0].mxu0 %v332
      %v647 = vpop.f32.mrb[0].mxu0
      %v648 = vadd.f32 %v247, %v647
      %v649 = vpop.f32.mrb[0].mxu0
      %650 = vmatprep.mubr.f32.mxu0 0.0
      %651 = vmatmul.mubr.f32.gmra.mrb[0].mxu0 %v335
      %v652 = vpop.f32.mrb[0].mxu0
      %v653 = vadd.f32 %v247, %v652
      %v654 = vpop.f32.mrb[0].mxu0
      %655 = vmatprep.mubr.f32.mxu0 0.0
      %656 = vmatmul.mubr.f32.gmra.mrb[0].mxu0 %v338
      %v657 = vpop.f32.mrb[0].mxu0
      %v658 = vadd.f32 %v247, %v657
      %v659 = vpop.f32.mrb[0].mxu0
      %660 = vmatprep.mubr.f32.mxu0 0.0
      %661 = vmatmul.mubr.f32.gmra.mrb[0].mxu0 %v341
      %v662 = vpop.f32.mrb[0].mxu0
      %v663 = vadd.f32 %v247, %v662
      %v664 = vpop.f32.mrb[0].mxu0
      %665 = vmatprep.mubr.f32.mxu0 0.0
      %666 = vmatmul.mubr.f32.gmra.mrb[0].mxu0 %v344
      %v667 = vpop.f32.mrb[0].mxu0
      %v668 = vadd.f32 %v247, %v667
      %v669 = vpop.f32.mrb[0].mxu0
      %670 = vmatprep.mubr.f32.mxu0 0.0
      %671 = vmatmul.mubr.f32.gmra.mrb[0].mxu0 %v347
      %v672 = vpop.f32.mrb[0].mxu0
      %v673 = vadd.f32 %v247, %v672
      %v674 = vpop.f32.mrb[0].mxu0
      %675 = vmatprep.mubr.f32.mxu0 0.0
      %676 = vmatmul.mubr.f32.gmra.mrb[0].mxu0 %v350
      %v677 = vpop.f32.mrb[0].mxu0
      %v678 = vadd.f32 %v247, %v677
      %v679 = vpop.f32.mrb[0].mxu0
      %680 = vmatprep.mubr.f32.mxu0 0.0
      %681 = vmatmul.mubr.f32.gmra.mrb[0].mxu0 %v353
      %v682 = vpop.f32.mrb[0].mxu0
      %v683 = vadd.f32 %v247, %v682
      %v684 = vpop.f32.mrb[0].mxu0
      %685 = vmatprep.mubr.f32.mxu0 0.0
      %686 = vmatmul.mubr.f32.gmra.mrb[0].mxu0 %v356
      %v687 = vpop.f32.mrb[0].mxu0
      %v688 = vadd.f32 %v247, %v687
      %v689 = vpop.f32.mrb[0].mxu0
      %690 = vmatprep.mubr.f32.mxu0 0.0
      %691 = vmatmul.mubr.f32.gmra.mrb[0].mxu0 %v359
      %v692 = vpop.f32.mrb[0].mxu0
      %v693 = vadd.f32 %v247, %v692
      %v694 = vpop.f32.mrb[0].mxu0
      %695 = vmatprep.mubr.f32.mxu0 0.0
      %696 = vmatmul.mubr.f32.gmra.mrb[0].mxu0 %v362
      %v697 = vpop.f32.mrb[0].mxu0
      %v698 = vadd.f32 %v247, %v697
      %v699 = vpop.f32.mrb[0].mxu0
      %700 = vmatprep.mubr.f32.mxu0 0.0
      %701 = vmatmul.mubr.f32.gmra.mrb[0].mxu0 %v365
      %v702 = vpop.f32.mrb[0].mxu0
      %v703 = vadd.f32 %v247, %v702
      %v704 = vpop.f32.mrb[0].mxu0
      %705 = vmatprep.mubr.f32.mxu0 0.0
      %706 = vmatmul.mubr.f32.gmra.mrb[0].mxu0 %v368
      %v707 = vpop.f32.mrb[0].mxu0
      %v708 = vadd.f32 %v247, %v707
      %v709 = vpop.f32.mrb[0].mxu0
      %710 = vmatprep.mubr.f32.mxu0 0.0
      %711 = vmatmul.mubr.f32.gmra.mrb[0].mxu0 %v371
      %v712 = vpop.f32.mrb[0].mxu0
      %v713 = vadd.f32 %v247, %v712
      %v714 = vpop.f32.mrb[0].mxu0
      %715 = vmatprep.mubr.f32.mxu0 0.0
      %716 = vmatmul.mubr.f32.gmra.mrb[0].mxu0 %v374
      %v717 = vpop.f32.mrb[0].mxu0
      %v718 = vadd.f32 %v247, %v717
      %v719 = vpop.f32.mrb[0].mxu0
      %720 = vmatprep.mubr.f32.mxu0 0.0
      %721 = vmatmul.mubr.f32.gmra.mrb[0].mxu0 %v377
      %v722 = vpop.f32.mrb[0].mxu0
      %v723 = vadd.f32 %v247, %v722
      %v724 = vpop.f32.mrb[0].mxu0
      %725 = vmatprep.mubr.f32.mxu0 0.0
      %726 = vmatmul.mubr.f32.gmra.mrb[0].mxu0 %v380
      %v727 = vpop.f32.mrb[0].mxu0
      %v728 = vadd.f32 %v247, %v727
      %v729 = vpop.f32.mrb[0].mxu0
      %730 = vmatprep.mubr.f32.mxu0 0.0
      %731 = vmatmul.mubr.f32.gmra.mrb[0].mxu0 %v383
      %v732 = vpop.f32.mrb[0].mxu0
      %v733 = vadd.f32 %v247, %v732
      %v734 = vpop.f32.mrb[0].mxu0
      %735 = vmatprep.mubr.f32.mxu0 0.0
      %736 = vmatmul.mubr.f32.gmra.mrb[0].mxu0 %v386
      %v737 = vpop.f32.mrb[0].mxu0
      %v738 = vadd.f32 %v247, %v737
      %v739 = vpop.f32.mrb[0].mxu0
      %740 = vmatprep.mubr.f32.mxu0 0.0
      %741 = vmatmul.mubr.f32.gmra.mrb[0].mxu0 %v389
      %v742 = vpop.f32.mrb[0].mxu0
      %v743 = vadd.f32 %v247, %v742
      %v744 = vpop.f32.mrb[0].mxu0
      %745 = vmatprep.mubr.f32.mxu0 0.0
      %746 = vmatmul.mubr.f32.gmra.mrb[0].mxu0 %v392
      %v747 = vpop.f32.mrb[0].mxu0
      %v748 = vadd.f32 %v247, %v747
      %v749 = vpop.f32.mrb[0].mxu0
      %750 = vmatprep.mubr.f32.mxu0 0.0
      %751 = vmatmul.mubr.f32.gmra.mrb[0].mxu0 %v395
      %v752 = vpop.f32.mrb[0].mxu0
      %v753 = vadd.f32 %v247, %v752
      %v754 = vpop.f32.mrb[0].mxu0
      %755 = vmatprep.mubr.f32.mxu0 0.0
      %756 = vmatmul.mubr.f32.gmra.mrb[0].mxu0 %v398
      %v757 = vpop.f32.mrb[0].mxu0
      %v758 = vadd.f32 %v247, %v757
      %v759 = vpop.f32.mrb[0].mxu0
      %760 = vmatprep.mubr.f32.mxu0 0.0
      %761 = vmatmul.mubr.f32.gmra.mrb[0].mxu0 %v401
      %v762 = vpop.f32.mrb[0].mxu0
      %v763 = vadd.f32 %v247, %v762
      %v764 = vpop.f32.mrb[0].mxu0
      %765 = vmatprep.mubr.f32.mxu0 0.0
      %766 = vmatmul.mubr.f32.gmra.mrb[0].mxu0 %v404
      %v767 = vpop.f32.mrb[0].mxu0
      %v768 = vadd.f32 %v247, %v767
      %v769 = vpop.f32.mrb[0].mxu0
      %770 = vmatprep.mubr.f32.mxu0 0.0
      %771 = vmatmul.mubr.f32.gmra.mrb[0].mxu0 %v407
      %v772 = vpop.f32.mrb[0].mxu0
      %v773 = vadd.f32 %v247, %v772
      %v774 = vpop.f32.mrb[0].mxu0
      %775 = vmatprep.mubr.f32.mxu0 0.0
      %776 = vmatmul.mubr.f32.gmra.mrb[0].mxu0 %v410
      %v777 = vpop.f32.mrb[0].mxu0
      %v778 = vadd.f32 %v247, %v777
      %v779 = vpop.f32.mrb[0].mxu0
      %780 = vmatprep.mubr.f32.mxu0 0.0
      %781 = vmatmul.mubr.f32.gmra.mrb[0].mxu0 %v413
      %v782 = vpop.f32.mrb[0].mxu0
      %v783 = vadd.f32 %v247, %v782
      %v784 = vpop.f32.mrb[0].mxu0
      %785 = vmatprep.mubr.f32.mxu0 0.0
      %786 = vmatmul.mubr.f32.gmra.mrb[0].mxu0 %v416
      %v787 = vpop.f32.mrb[0].mxu0
      %v788 = vadd.f32 %v247, %v787
      %v789 = vpop.f32.mrb[0].mxu0
      %790 = vmatprep.mubr.f32.mxu0 0.0
      %791 = vmatmul.mubr.f32.gmra.mrb[0].mxu0 %v419
      %v792 = vpop.f32.mrb[0].mxu0
      %v793 = vadd.f32 %v247, %v792
      %v794 = vpop.f32.mrb[0].mxu0
      %795 = vmatprep.mubr.f32.mxu0 0.0
      %796 = vmatmul.mubr.f32.gmra.mrb[0].mxu0 %v422
      %v797 = vpop.f32.mrb[0].mxu0
      %v798 = vadd.f32 %v247, %v797
      %v799 = vpop.f32.mrb[0].mxu0
      %800 = vmatprep.mubr.f32.mxu0 0.0
      %801 = vmatmul.mubr.f32.gmra.mrb[0].mxu0 %v425
      %v802 = vpop.f32.mrb[0].mxu0
      %v803 = vadd.f32 %v247, %v802
      %v804 = vpop.f32.mrb[0].mxu0
      %805 = vmatprep.mubr.f32.mxu0 0.0
      %806 = vmatmul.mubr.f32.gmra.mrb[0].mxu0 %v428
      %v807 = vpop.f32.mrb[0].mxu0
      %v808 = vadd.f32 %v247, %v807
      %v809 = vpop.f32.mrb[0].mxu0
      %810 = vmatprep.mubr.f32.mxu0 0.0
      %811 = vmatmul.mubr.f32.gmra.mrb[0].mxu0 %v431
      %v812 = vpop.f32.mrb[0].mxu0
      %v813 = vadd.f32 %v247, %v812
      %v814 = vpop.f32.mrb[0].mxu0
      %815 = vmatprep.mubr.f32.mxu0 0.0
      %816 = vmatmul.mubr.f32.gmra.mrb[0].mxu0 %v434
      %v817 = vpop.f32.mrb[0].mxu0
      %v818 = vadd.f32 %v247, %v817
      %v819 = vpop.f32.mrb[0].mxu0
      %820 = vmatprep.mubr.f32.mxu0 0.0
      %821 = vmatmul.mubr.f32.gmra.mrb[0].mxu0 %v437
      %v822 = vpop.f32.mrb[0].mxu0
      %v823 = vadd.f32 %v247, %v822
      %v824 = vpop.f32.mrb[0].mxu0
      %825 = vmatprep.mubr.f32.mxu0 0.0
      %826 = vmatmul.mubr.f32.gmra.mrb[0].mxu0 %v440
      %v827 = vpop.f32.mrb[0].mxu0
      %v828 = vadd.f32 %v247, %v827
      %v829 = vpop.f32.mrb[0].mxu0
      %830 = vdwg.mxu0
      %v831 = vmax.f32 %v513, 0.0
      %v832 = vmax.f32 %v518, 0.0
      %v833 = vmax.f32 %v523, 0.0
      %v834 = vmax.f32 %v528, 0.0
      %v835 = vmax.f32 %v533, 0.0
      %v836 = vmax.f32 %v538, 0.0
      %v837 = vmax.f32 %v543, 0.0
      %v838 = vmax.f32 %v548, 0.0
      %v839 = vmax.f32 %v553, 0.0
      %v840 = vmax.f32 %v558, 0.0
      %v841 = vmax.f32 %v563, 0.0
      %v842 = vmax.f32 %v568, 0.0
      %v843 = vmax.f32 %v573, 0.0
      %v844 = vmax.f32 %v578, 0.0
      %v845 = vmax.f32 %v583, 0.0
      %v846 = vmax.f32 %v588, 0.0
      %v847 = vmax.f32 %v593, 0.0
      %v848 = vmax.f32 %v598, 0.0
      %v849 = vmax.f32 %v603, 0.0
      %v850 = vmax.f32 %v608, 0.0
      %v851 = vmax.f32 %v613, 0.0
      %v852 = vmax.f32 %v618, 0.0
      %v853 = vmax.f32 %v623, 0.0
      %v854 = vmax.f32 %v628, 0.0
      %v855 = vmax.f32 %v633, 0.0
      %v856 = vmax.f32 %v638, 0.0
      %v857 = vmax.f32 %v643, 0.0
      %v858 = vmax.f32 %v648, 0.0
      %v859 = vmax.f32 %v653, 0.0
      %v860 = vmax.f32 %v658, 0.0
      %v861 = vmax.f32 %v663, 0.0
      %v862 = vmax.f32 %v668, 0.0
      %v863 = vmax.f32 %v673, 0.0
      %v864 = vmax.f32 %v678, 0.0
      %v865 = vmax.f32 %v683, 0.0
      %v866 = vmax.f32 %v688, 0.0
      %v867 = vmax.f32 %v693, 0.0
      %v868 = vmax.f32 %v698, 0.0
      %v869 = vmax.f32 %v703, 0.0
      %v870 = vmax.f32 %v708, 0.0
      %v871 = vmax.f32 %v713, 0.0
      %v872 = vmax.f32 %v718, 0.0
      %v873 = vmax.f32 %v723, 0.0
      %v874 = vmax.f32 %v728, 0.0
      %v875 = vmax.f32 %v733, 0.0
      %v876 = vmax.f32 %v738, 0.0
      %v877 = vmax.f32 %v743, 0.0
      %v878 = vmax.f32 %v748, 0.0
      %v879 = vmax.f32 %v753, 0.0
      %v880 = vmax.f32 %v758, 0.0
      %v881 = vmax.f32 %v763, 0.0
      %v882 = vmax.f32 %v768, 0.0
      %v883 = vmax.f32 %v773, 0.0
      %v884 = vmax.f32 %v778, 0.0
      %v885 = vmax.f32 %v783, 0.0
      %v886 = vmax.f32 %v788, 0.0
      %v887 = vmax.f32 %v793, 0.0
      %v888 = vmax.f32 %v798, 0.0
      %v889 = vmax.f32 %v803, 0.0
      %v890 = vmax.f32 %v808, 0.0
      %v891 = vmax.f32 %v813, 0.0
      %v892 = vmax.f32 %v818, 0.0
      %v893 = vmax.f32 %v823, 0.0
      %v894 = vmax.f32 %v828, 0.0
      %vm895 = vcmask 523264
      %896 = vst.msk [vmem:[%s172] sm:$0xff] %vm895, %v831
      %897 = vst.msk [vmem:[%s172 + $0x8] sm:$0xff] %vm895, %v832
      %898 = vst.msk [vmem:[%s172 + $0x10] sm:$0xff] %vm895, %v833
      %899 = vst.msk [vmem:[%s172 + $0x18] sm:$0xff] %vm895, %v834
      %900 = vst.msk [vmem:[%s172 + $0x20] sm:$0xff] %vm895, %v835
      %901 = vst.msk [vmem:[%s172 + $0x28] sm:$0xff] %vm895, %v836
      %902 = vst.msk [vmem:[%s172 + $0x30] sm:$0xff] %vm895, %v837
      %903 = vst.msk [vmem:[%s172 + $0x38] sm:$0xff] %vm895, %v838
      %904 = vst.msk [vmem:[%s172 + $0x40] sm:$0xff] %vm895, %v839
      %905 = vst.msk [vmem:[%s172 + $0x48] sm:$0xff] %vm895, %v840
      %906 = vst.msk [vmem:[%s172 + $0x50] sm:$0xff] %vm895, %v841
      %907 = vst.msk [vmem:[%s172 + $0x58] sm:$0xff] %vm895, %v842
      %908 = vst.msk [vmem:[%s172 + $0x60] sm:$0xff] %vm895, %v843
      %909 = vst.msk [vmem:[%s172 + $0x68] sm:$0xff] %vm895, %v844
      %910 = vst.msk [vmem:[%s172 + $0x70] sm:$0xff] %vm895, %v845
      %911 = vst.msk [vmem:[%s172 + $0x78] sm:$0xff] %vm895, %v846
      %912 = vst.msk [vmem:[%s172 + $0x80] sm:$0xff] %vm895, %v847
      %913 = vst.msk [vmem:[%s172 + $0x88] sm:$0xff] %vm895, %v848
      %914 = vst.msk [vmem:[%s172 + $0x90] sm:$0xff] %vm895, %v849
      %915 = vst.msk [vmem:[%s172 + $0x98] sm:$0xff] %vm895, %v850
      %916 = vst.msk [vmem:[%s172 + $0xa0] sm:$0xff] %vm895, %v851
      %917 = vst.msk [vmem:[%s172 + $0xa8] sm:$0xff] %vm895, %v852
      %918 = vst.msk [vmem:[%s172 + $0xb0] sm:$0xff] %vm895, %v853
      %919 = vst.msk [vmem:[%s172 + $0xb8] sm:$0xff] %vm895, %v854
      %920 = vst.msk [vmem:[%s172 + $0xc0] sm:$0xff] %vm895, %v855
      %921 = vst.msk [vmem:[%s172 + $0xc8] sm:$0xff] %vm895, %v856
      %922 = vst.msk [vmem:[%s172 + $0xd0] sm:$0xff] %vm895, %v857
      %923 = vst.msk [vmem:[%s172 + $0xd8] sm:$0xff] %vm895, %v858
      %924 = vst.msk [vmem:[%s172 + $0xe0] sm:$0xff] %vm895, %v859
      %925 = vst.msk [vmem:[%s172 + $0xe8] sm:$0xff] %vm895, %v860
      %926 = vst.msk [vmem:[%s172 + $0xf0] sm:$0xff] %vm895, %v861
      %927 = vst.msk [vmem:[%s172 + $0xf8] sm:$0xff] %vm895, %v862
      %928 = vst.msk [vmem:[%s172 + $0x100] sm:$0xff] %vm895, %v863
      %929 = vst.msk [vmem:[%s172 + $0x108] sm:$0xff] %vm895, %v864
      %930 = vst.msk [vmem:[%s172 + $0x110] sm:$0xff] %vm895, %v865
      %931 = vst.msk [vmem:[%s172 + $0x118] sm:$0xff] %vm895, %v866
      %932 = vst.msk [vmem:[%s172 + $0x120] sm:$0xff] %vm895, %v867
      %933 = vst.msk [vmem:[%s172 + $0x128] sm:$0xff] %vm895, %v868
      %934 = vst.msk [vmem:[%s172 + $0x130] sm:$0xff] %vm895, %v869
      %935 = vst.msk [vmem:[%s172 + $0x138] sm:$0xff] %vm895, %v870
      %936 = vst.msk [vmem:[%s172 + $0x140] sm:$0xff] %vm895, %v871
      %937 = vst.msk [vmem:[%s172 + $0x148] sm:$0xff] %vm895, %v872
      %938 = vst.msk [vmem:[%s172 + $0x150] sm:$0xff] %vm895, %v873
      %939 = vst.msk [vmem:[%s172 + $0x158] sm:$0xff] %vm895, %v874
      %940 = vst.msk [vmem:[%s172 + $0x160] sm:$0xff] %vm895, %v875
      %941 = vst.msk [vmem:[%s172 + $0x168] sm:$0xff] %vm895, %v876
      %942 = vst.msk [vmem:[%s172 + $0x170] sm:$0xff] %vm895, %v877
      %943 = vst.msk [vmem:[%s172 + $0x178] sm:$0xff] %vm895, %v878
      %944 = vst.msk [vmem:[%s172 + $0x180] sm:$0xff] %vm895, %v879
      %945 = vst.msk [vmem:[%s172 + $0x188] sm:$0xff] %vm895, %v880
      %946 = vst.msk [vmem:[%s172 + $0x190] sm:$0xff] %vm895, %v881
      %947 = vst.msk [vmem:[%s172 + $0x198] sm:$0xff] %vm895, %v882
      %948 = vst.msk [vmem:[%s172 + $0x1a0] sm:$0xff] %vm895, %v883
      %949 = vst.msk [vmem:[%s172 + $0x1a8] sm:$0xff] %vm895, %v884
      %950 = vst.msk [vmem:[%s172 + $0x1b0] sm:$0xff] %vm895, %v885
      %951 = vst.msk [vmem:[%s172 + $0x1b8] sm:$0xff] %vm895, %v886
      %952 = vst.msk [vmem:[%s172 + $0x1c0] sm:$0xff] %vm895, %v887
      %953 = vst.msk [vmem:[%s172 + $0x1c8] sm:$0xff] %vm895, %v888
      %954 = vst.msk [vmem:[%s172 + $0x1d0] sm:$0xff] %vm895, %v889
      %955 = vst.msk [vmem:[%s172 + $0x1d8] sm:$0xff] %vm895, %v890
      %956 = vst.msk [vmem:[%s172 + $0x1e0] sm:$0xff] %vm895, %v891
      %957 = vst.msk [vmem:[%s172 + $0x1e8] sm:$0xff] %vm895, %v892
      %958 = vst.msk [vmem:[%s172 + $0x1f0] sm:$0xff] %vm895, %v893
      %959 = vst.msk [vmem:[%s172 + $0x1f8] sm:$0xff] %vm895, %v894
      %s960 = smul.u32 64, %s14
      %p961 = scmp.lt.s32.totalorder %s960, 191
      %s962 = scalar_select %p961, %s960, 191
      %s963 = smul.addr %s962, 8
      %s964 = scalar_lea.vmem %s3, %s963
      // Predicated region
      $region33: #{_lambda_.7} parent=31 // pred_check
        %p965 = pneg %p100
      $region34: #{_lambda_.7} parent=31 // pred_check_branch
        %967 = sbr.rel (%p965) target = $region36
      $region35: #{_lambda_.7} parent=31 // pred_region
        %s968 = smul.u32 64, %s14
      $region36: #{_lambda_.7} parent=31 // pred_fallthru
        _
    $region32: #{_lambda_.7} parent=5 // pred_fallthru
      _
    %p969 = scmp.le.s32.totalorder 2, %s9
    // Predicated region
    $region37: #{_lambda_.7} parent=5 // pred_check
      %p970 = pneg %p969
    $region38: #{_lambda_.7} parent=5 // pred_check_branch
      %972 = sbr.rel (%p970) target = $region40
    $region39: #{_lambda_.7} parent=5 // pred_region
      %s973 = ssub.s32 %s9, 2
      // Predicated region
      $region41: #{_lambda_.7} parent=39 // pred_check
        %p974 = pneg %p106
      $region42: #{_lambda_.7} parent=39 // pred_check_branch
        %976 = sbr.rel (%p974) target = $region44
      $region43: #{_lambda_.7} parent=39 // pred_region
        %s977 = smul.u32 64, %s15
        %p978 = scmp.lt.s32.totalorder %s977, 191
        %s979 = scalar_select %p978, %s977, 191
        %s980 = smul.addr %s979, 8
        %s981 = scalar_lea.vmem %s3, %s980
      $region44: #{_lambda_.7} parent=39 // pred_fallthru
        _
    $region40: #{_lambda_.7} parent=5 // pred_fallthru
      _
  $region6: #{_lambda_.7} parent=0 // loop_footer
    %s13 = sadd.s32 1, %s9
  $region7: #{_lambda_.7} parent=0 // loop_footer_branch
    %8 = sbr.rel target = $region3
  $region8: #{_lambda_.7} parent=0 // loop_exit
    _

// kernel: _lambda_.8
$region0: #{_lambda_.8}
  #allocation0 [shape = 'u32[]', space=smem, size = 0x4, offset = 0x4, fixed_abs, tag = 'smem constant byte address 0x4 - core index']
  #allocation1 [shape = 'u32[144,128]{1,0:T(1,128)}', space=vmem, size = 0x12000, scoped, tag = 'internal scratch']
  %s0 = inlined_call_operand.vmem [shape: f32[1536,576], index: 0, kind: input, shape index: {}]
  %s1 = inlined_call_operand.vmem [shape: f32[576,64], index: 1, kind: input, shape index: {}]
  %s2 = inlined_call_operand.vmem [shape: f32[1,64], index: 2, kind: input, shape index: {}]
  %s3 = inlined_call_operand.vmem [shape: f32[1536,64], index: 3, kind: output, shape index: {}]
  %s4 = sld [smem:[#allocation0]]
  $region45: #{_lambda_.8} parent=0
    _
  %s6 = ssub.s32 1, %s4
  %s7 = scalar_select 0, %s6, %s4
  loop: start=0, step=1, limit=5
  $region2: #{_lambda_.8} parent=0 // loop_pre_header
    _
  $region3: #{_lambda_.8} parent=0 // loop_header
    %s9 = sphi 0, %s13
    %p10 = scmp.ge.s32.totalorder %s9, 5
    %s19 = sphi 0, %s21
    %s22 = sphi 0, %s19
    %s23 = sphi 0, %s22
    %s39 = sphi 0, %s23
    %s43 = sphi 0, %s43
    %s45 = sphi 0, %s43
    %s46 = sphi 0, %s45
    %s60 = sphi 0, %s46
    %s64 = sphi 0, %s64
    %s66 = sphi 0, %s64
    %s67 = sphi 0, %s66
    %s81 = sphi 0, %s67
    %s87 = sphi 0, %s89
    %s90 = sphi 0, %s87
    %s91 = sphi 0, %s90
    %s107 = sphi 0, %s91
  $region4: #{_lambda_.8} parent=0 // loop_header_branch
    %12 = sbr.rel (%p10) target = $region8
  $region5: #{_lambda_.8} parent=0 // loop_body
    %s14 = ssub.s32 %s9, 1
    %s15 = ssub.s32 %s9, 2
    %s16 = sadd.s32 %s9, 1
    %s17 = ssub.s32 %s9, %s16
    %p18 = scmp.eq.s32.totalorder %s17, 0
    %s20 = sadd.s32 %s19, 1
    %s21 = scalar_select %p18, %s19, %s20
    %p24 = pneg %p18
    %p25 = scmp.eq.s32.totalorder %s9, 2
    %p26 = por %p24, %p25
    %p27 = scmp.ne.s32.totalorder %s19, %s22
    %p28 = scmp.eq.s32.totalorder %s9, 0
    %p29 = por %p27, %p28
    %p30 = scmp.ne.s32.totalorder %s19, %s22
    %p31 = scmp.eq.s32.totalorder %s14, 2
    %p32 = por %p30, %p31
    %p33 = scmp.ne.s32.totalorder %s22, %s23
    %p34 = scmp.eq.s32.totalorder %s14, 0
    %p35 = por %p33, %p34
    %p36 = scmp.ne.s32.totalorder %s22, %s23
    %p37 = scmp.eq.s32.totalorder %s15, 2
    %p38 = por %p36, %p37
    %p40 = scmp.ne.s32.totalorder %s23, %s39
    %p41 = scmp.eq.s32.totalorder %s15, 0
    %p42 = por %p40, %p41
    %s44 = sadd.s32 %s43, 1
    %p47 = scmp.eq.s32.totalorder %s9, 2
    %p48 = scmp.ne.s32.totalorder %s43, %s45
    %p49 = scmp.eq.s32.totalorder %s9, 0
    %p50 = por %p48, %p49
    %p51 = scmp.ne.s32.totalorder %s43, %s45
    %p52 = scmp.eq.s32.totalorder %s14, 2
    %p53 = por %p51, %p52
    %p54 = scmp.ne.s32.totalorder %s45, %s46
    %p55 = scmp.eq.s32.totalorder %s14, 0
    %p56 = por %p54, %p55
    %p57 = scmp.ne.s32.totalorder %s45, %s46
    %p58 = scmp.eq.s32.totalorder %s15, 2
    %p59 = por %p57, %p58
    %p61 = scmp.ne.s32.totalorder %s46, %s60
    %p62 = scmp.eq.s32.totalorder %s15, 0
    %p63 = por %p61, %p62
    %s65 = sadd.s32 %s64, 1
    %p68 = scmp.eq.s32.totalorder %s9, 2
    %p69 = scmp.ne.s32.totalorder %s64, %s66
    %p70 = scmp.eq.s32.totalorder %s9, 0
    %p71 = por %p69, %p70
    %p72 = scmp.ne.s32.totalorder %s64, %s66
    %p73 = scmp.eq.s32.totalorder %s14, 2
    %p74 = por %p72, %p73
    %p75 = scmp.ne.s32.totalorder %s66, %s67
    %p76 = scmp.eq.s32.totalorder %s14, 0
    %p77 = por %p75, %p76
    %p78 = scmp.ne.s32.totalorder %s66, %s67
    %p79 = scmp.eq.s32.totalorder %s15, 2
    %p80 = por %p78, %p79
    %p82 = scmp.ne.s32.totalorder %s67, %s81
    %p83 = scmp.eq.s32.totalorder %s15, 0
    %p84 = por %p82, %p83
    %s85 = ssub.s32 %s9, %s16
    %p86 = scmp.eq.s32.totalorder %s85, 0
    %s88 = sadd.s32 %s87, 1
    %s89 = scalar_select %p86, %s87, %s88
    %p92 = pneg %p86
    %p93 = scmp.eq.s32.totalorder %s9, 2
    %p94 = por %p92, %p93
    %p95 = scmp.ne.s32.totalorder %s87, %s90
    %p96 = scmp.eq.s32.totalorder %s9, 0
    %p97 = por %p95, %p96
    %p98 = scmp.ne.s32.totalorder %s87, %s90
    %p99 = scmp.eq.s32.totalorder %s14, 2
    %p100 = por %p98, %p99
    %p101 = scmp.ne.s32.totalorder %s90, %s91
    %p102 = scmp.eq.s32.totalorder %s14, 0
    %p103 = por %p101, %p102
    %p104 = scmp.ne.s32.totalorder %s90, %s91
    %p105 = scmp.eq.s32.totalorder %s15, 2
    %p106 = por %p104, %p105
    %p108 = scmp.ne.s32.totalorder %s91, %s107
    %p109 = scmp.eq.s32.totalorder %s15, 0
    %p110 = por %p108, %p109
    %p111 = scmp.le.s32.totalorder 1, %s9
    %p112 = scmp.lt.s32.totalorder %s9, 4
    %p113 = pnand %p111, %p112
    %p114 = pneg %p113
    // Predicated region
    $region9: #{_lambda_.8} parent=5 // pred_check
      _
    $region10: #{_lambda_.8} parent=5 // pred_check_branch
      %116 = sbr.rel (%p113) target = $region12
    $region11: #{_lambda_.8} parent=5 // pred_region
      %s117 = ssub.s32 %s9, 1
      // Predicated region
      $region13: #{_lambda_.8} parent=11 // pred_check
        %p118 = pneg %p56
      $region14: #{_lambda_.8} parent=11 // pred_check_branch
        %120 = sbr.rel (%p118) target = $region16
      $region15: #{_lambda_.8} parent=11 // pred_region
        _
      $region16: #{_lambda_.8} parent=11 // pred_fallthru
        _
      // Predicated region
      $region17: #{_lambda_.8} parent=11 // pred_check
        %p121 = pneg %p77
      $region18: #{_lambda_.8} parent=11 // pred_check_branch
        %123 = sbr.rel (%p121) target = $region20
      $region19: #{_lambda_.8} parent=11 // pred_region
        _
      $region20: #{_lambda_.8} parent=11 // pred_fallthru
        _
    $region12: #{_lambda_.8} parent=5 // pred_fallthru
      _
    %p124 = scmp.lt.s32.totalorder %s9, 3
    // Predicated region
    $region21: #{_lambda_.8} parent=5 // pred_check
      %p125 = pneg %p124
    $region22: #{_lambda_.8} parent=5 // pred_check_branch
      %127 = sbr.rel (%p125) target = $region24
    $region23: #{_lambda_.8} parent=5 // pred_region
      // Predicated region
      $region25: #{_lambda_.8} parent=23 // pred_check
        %p128 = pneg %p29
      $region26: #{_lambda_.8} parent=23 // pred_check_branch
        %130 = sbr.rel (%p128) target = $region28
      $region27: #{_lambda_.8} parent=23 // pred_region
        %s131 = smul.u32 64, %s9
        %p132 = scmp.lt.s32.totalorder %s131, 191
        %s133 = scalar_select %p132, %s131, 191
        %s134 = smul.addr %s133, 5
        %s135 = smul.addr %s134, 8
        %s136 = scalar_lea.vmem %s0, %s135
        %s137 = smul.u32 64, %s9
      $region28: #{_lambda_.8} parent=23 // pred_fallthru
        _
    $region24: #{_lambda_.8} parent=5 // pred_fallthru
      _
    %p138 = scmp.le.s32.totalorder 1, %s9
    %p139 = scmp.lt.s32.totalorder %s9, 4
    %p140 = pnand %p138, %p139
    %p141 = pneg %p140
    // Predicated region
    $region29: #{_lambda_.8} parent=5 // pred_check
      _
    $region30: #{_lambda_.8} parent=5 // pred_check_branch
      %143 = sbr.rel (%p140) target = $region32
    $region31: #{_lambda_.8} parent=5 // pred_region
      %s144 = ssub.s32 %s9, 1
      %s145 = smul.u32 64, %s14
      %p146 = scmp.lt.s32.totalorder %s145, 191
      %s147 = scalar_select %p146, %s145, 191
      %s148 = smul.addr %s147, 5
      %s149 = smul.addr %s148, 8
      %s150 = scalar_lea.vmem %s0, %s149
      %p151 = pneg %p35
      %p152 = pneg %p32
      %p153 = pneg %p56
      %p154 = pneg %p53
      %p155 = pneg %p77
      %p156 = pneg %p74
      %p157 = pneg %p103
      %p158 = pneg %p100
      %s159 = smul.u32 64, %s14
      %p160 = scmp.lt.s32.totalorder %s159, 191
      %s161 = scalar_select %p160, %s159, 191
      %s162 = smul.addr %s161, 8
      %s163 = scalar_lea.vmem %s3, %s162
      %s164 = smul.u32 64, %s14
      %p165 = scmp.lt.s32.totalorder %s164, 191
      %s166 = scalar_select %p165, %s164, 191
      %s167 = smul.addr %s166, 5
      %s168 = smul.addr %s167, 8
      %s169 = scalar_lea.vmem %s0, %s168
      %s170 = smul.u32 64, %s14
      %s171 = smul.u32 64, %s14
      %p172 = scmp.lt.s32.totalorder %s171, 191
      %s173 = scalar_select %p172, %s171, 191
      %s174 = smul.addr %s173, 8
      %s175 = scalar_lea.vmem %s3, %s174
      %s176 = smul.u32 64, %s14
      %v177 = vld [vmem:[%s169] sm:$0xff]
      %v178 = vld [vmem:[%s169 + $0x8] sm:$0xff]
      %v179 = vld [vmem:[%s169 + $0x10] sm:$0xff]
      %v180 = vld [vmem:[%s169 + $0x18] sm:$0xff]
      %v181 = vld [vmem:[%s169 + $0x20] sm:$0xff]
      %v182 = vld [vmem:[%s169 + $0x28] sm:$0xff]
      %v183 = vld [vmem:[%s169 + $0x30] sm:$0xff]
      %v184 = vld [vmem:[%s169 + $0x38] sm:$0xff]
      %v185 = vld [vmem:[%s169 + $0x40] sm:$0xff]
      %v186 = vld [vmem:[%s169 + $0x48] sm:$0xff]
      %v187 = vld [vmem:[%s169 + $0x50] sm:$0xff]
      %v188 = vld [vmem:[%s169 + $0x58] sm:$0xff]
      %v189 = vld [vmem:[%s169 + $0x60] sm:$0xff]
      %v190 = vld [vmem:[%s169 + $0x68] sm:$0xff]
      %v191 = vld [vmem:[%s169 + $0x70] sm:$0xff]
      %v192 = vld [vmem:[%s169 + $0x78] sm:$0xff]
      %v193 = vld [vmem:[%s169 + $0x80] sm:$0xff]
      %v194 = vld [vmem:[%s169 + $0x88] sm:$0xff]
      %v195 = vld [vmem:[%s169 + $0x90] sm:$0xff]
      %v196 = vld [vmem:[%s169 + $0x98] sm:$0xff]
      %v197 = vld [vmem:[%s169 + $0xa0] sm:$0xff]
      %v198 = vld [vmem:[%s169 + $0xa8] sm:$0xff]
      %v199 = vld [vmem:[%s169 + $0xb0] sm:$0xff]
      %v200 = vld [vmem:[%s169 + $0xb8] sm:$0xff]
      %v201 = vld [vmem:[%s169 + $0xc0] sm:$0xff]
      %v202 = vld [vmem:[%s169 + $0xc8] sm:$0xff]
      %v203 = vld [vmem:[%s169 + $0xd0] sm:$0xff]
      %v204 = vld [vmem:[%s169 + $0xd8] sm:$0xff]
      %v205 = vld [vmem:[%s169 + $0xe0] sm:$0xff]
      %v206 = vld [vmem:[%s169 + $0xe8] sm:$0xff]
      %v207 = vld [vmem:[%s169 + $0xf0] sm:$0xff]
      %v208 = vld [vmem:[%s169 + $0xf8] sm:$0xff]
      %v209 = vld [vmem:[%s169 + $0x100] sm:$0xff]
      %v210 = vld [vmem:[%s169 + $0x108] sm:$0xff]
      %v211 = vld [vmem:[%s169 + $0x110] sm:$0xff]
      %v212 = vld [vmem:[%s169 + $0x118] sm:$0xff]
      %v213 = vld [vmem:[%s169 + $0x120] sm:$0xff]
      %v214 = vld [vmem:[%s169 + $0x128] sm:$0xff]
      %v215 = vld [vmem:[%s169 + $0x130] sm:$0xff]
      %v216 = vld [vmem:[%s169 + $0x138] sm:$0xff]
      %v217 = vld [vmem:[%s169 + $0x140] sm:$0xff]
      %v218 = vld [vmem:[%s169 + $0x148] sm:$0xff]
      %v219 = vld [vmem:[%s169 + $0x150] sm:$0xff]
      %v220 = vld [vmem:[%s169 + $0x158] sm:$0xff]
      %v221 = vld [vmem:[%s169 + $0x160] sm:$0xff]
      %v222 = vld [vmem:[%s169 + $0x168] sm:$0xff]
      %v223 = vld [vmem:[%s169 + $0x170] sm:$0xff]
      %v224 = vld [vmem:[%s169 + $0x178] sm:$0xff]
      %v225 = vld [vmem:[%s169 + $0x180] sm:$0xff]
      %v226 = vld [vmem:[%s169 + $0x188] sm:$0xff]
      %v227 = vld [vmem:[%s169 + $0x190] sm:$0xff]
      %v228 = vld [vmem:[%s169 + $0x198] sm:$0xff]
      %v229 = vld [vmem:[%s169 + $0x1a0] sm:$0xff]
      %v230 = vld [vmem:[%s169 + $0x1a8] sm:$0xff]
      %v231 = vld [vmem:[%s169 + $0x1b0] sm:$0xff]
      %v232 = vld [vmem:[%s169 + $0x1b8] sm:$0xff]
      %v233 = vld [vmem:[%s169 + $0x1c0] sm:$0xff]
      %v234 = vld [vmem:[%s169 + $0x1c8] sm:$0xff]
      %v235 = vld [vmem:[%s169 + $0x1d0] sm:$0xff]
      %v236 = vld [vmem:[%s169 + $0x1d8] sm:$0xff]
      %v237 = vld [vmem:[%s169 + $0x1e0] sm:$0xff]
      %v238 = vld [vmem:[%s169 + $0x1e8] sm:$0xff]
      %v239 = vld [vmem:[%s169 + $0x1f0] sm:$0xff]
      %v240 = vld [vmem:[%s169 + $0x1f8] sm:$0xff]
      %v241 = vld [vmem:[%s169 + $0x200] sm:$0xff]
      %v242 = vld [vmem:[%s169 + $0x208] sm:$0xff]
      %v243 = vld [vmem:[%s169 + $0x210] sm:$0xff]
      %v244 = vld [vmem:[%s169 + $0x218] sm:$0xff]
      %v245 = vld [vmem:[%s169 + $0x220] sm:$0xff]
      %v246 = vld [vmem:[%s169 + $0x228] sm:$0xff]
      %v247 = vld [vmem:[%s169 + $0x230] sm:$0xff]
      %v248 = vld [vmem:[%s169 + $0x238] sm:$0xff]
      %v249 = vld [vmem:[%s169 + $0x240] sm:$0xff]
      %v250 = vld [vmem:[%s169 + $0x248] sm:$0xff]
      %v251 = vld [vmem:[%s169 + $0x250] sm:$0xff]
      %v252 = vld [vmem:[%s169 + $0x258] sm:$0xff]
      %v253 = vld [vmem:[%s169 + $0x260] sm:$0xff]
      %v254 = vld [vmem:[%s169 + $0x268] sm:$0xff]
      %v255 = vld [vmem:[%s169 + $0x270] sm:$0xff]
      %v256 = vld [vmem:[%s169 + $0x278] sm:$0xff]
      %v257 = vld [vmem:[%s169 + $0x280] sm:$0xff]
      %v258 = vld [vmem:[%s169 + $0x288] sm:$0xff]
      %v259 = vld [vmem:[%s169 + $0x290] sm:$0xff]
      %v260 = vld [vmem:[%s169 + $0x298] sm:$0xff]
      %v261 = vld [vmem:[%s169 + $0x2a0] sm:$0xff]
      %v262 = vld [vmem:[%s169 + $0x2a8] sm:$0xff]
      %v263 = vld [vmem:[%s169 + $0x2b0] sm:$0xff]
      %v264 = vld [vmem:[%s169 + $0x2b8] sm:$0xff]
      %v265 = vld [vmem:[%s169 + $0x2c0] sm:$0xff]
      %v266 = vld [vmem:[%s169 + $0x2c8] sm:$0xff]
      %v267 = vld [vmem:[%s169 + $0x2d0] sm:$0xff]
      %v268 = vld [vmem:[%s169 + $0x2d8] sm:$0xff]
      %v269 = vld [vmem:[%s169 + $0x2e0] sm:$0xff]
      %v270 = vld [vmem:[%s169 + $0x2e8] sm:$0xff]
      %v271 = vld [vmem:[%s169 + $0x2f0] sm:$0xff]
      %v272 = vld [vmem:[%s169 + $0x2f8] sm:$0xff]
      %v273 = vld [vmem:[%s169 + $0x300] sm:$0xff]
      %v274 = vld [vmem:[%s169 + $0x308] sm:$0xff]
      %v275 = vld [vmem:[%s169 + $0x310] sm:$0xff]
      %v276 = vld [vmem:[%s169 + $0x318] sm:$0xff]
      %v277 = vld [vmem:[%s169 + $0x320] sm:$0xff]
      %v278 = vld [vmem:[%s169 + $0x328] sm:$0xff]
      %v279 = vld [vmem:[%s169 + $0x330] sm:$0xff]
      %v280 = vld [vmem:[%s169 + $0x338] sm:$0xff]
      %v281 = vld [vmem:[%s169 + $0x340] sm:$0xff]
      %v282 = vld [vmem:[%s169 + $0x348] sm:$0xff]
      %v283 = vld [vmem:[%s169 + $0x350] sm:$0xff]
      %v284 = vld [vmem:[%s169 + $0x358] sm:$0xff]
      %v285 = vld [vmem:[%s169 + $0x360] sm:$0xff]
      %v286 = vld [vmem:[%s169 + $0x368] sm:$0xff]
      %v287 = vld [vmem:[%s169 + $0x370] sm:$0xff]
      %v288 = vld [vmem:[%s169 + $0x378] sm:$0xff]
      %v289 = vld [vmem:[%s169 + $0x380] sm:$0xff]
      %v290 = vld [vmem:[%s169 + $0x388] sm:$0xff]
      %v291 = vld [vmem:[%s169 + $0x390] sm:$0xff]
      %v292 = vld [vmem:[%s169 + $0x398] sm:$0xff]
      %v293 = vld [vmem:[%s169 + $0x3a0] sm:$0xff]
      %v294 = vld [vmem:[%s169 + $0x3a8] sm:$0xff]
      %v295 = vld [vmem:[%s169 + $0x3b0] sm:$0xff]
      %v296 = vld [vmem:[%s169 + $0x3b8] sm:$0xff]
      %v297 = vld [vmem:[%s169 + $0x3c0] sm:$0xff]
      %v298 = vld [vmem:[%s169 + $0x3c8] sm:$0xff]
      %v299 = vld [vmem:[%s169 + $0x3d0] sm:$0xff]
      %v300 = vld [vmem:[%s169 + $0x3d8] sm:$0xff]
      %v301 = vld [vmem:[%s169 + $0x3e0] sm:$0xff]
      %v302 = vld [vmem:[%s169 + $0x3e8] sm:$0xff]
      %v303 = vld [vmem:[%s169 + $0x3f0] sm:$0xff]
      %v304 = vld [vmem:[%s169 + $0x3f8] sm:$0xff]
      %v305 = vld [vmem:[%s169 + $0x400] sm:$0xff]
      %v306 = vld [vmem:[%s169 + $0x408] sm:$0xff]
      %v307 = vld [vmem:[%s169 + $0x410] sm:$0xff]
      %v308 = vld [vmem:[%s169 + $0x418] sm:$0xff]
      %v309 = vld [vmem:[%s169 + $0x420] sm:$0xff]
      %v310 = vld [vmem:[%s169 + $0x428] sm:$0xff]
      %v311 = vld [vmem:[%s169 + $0x430] sm:$0xff]
      %v312 = vld [vmem:[%s169 + $0x438] sm:$0xff]
      %v313 = vld [vmem:[%s169 + $0x440] sm:$0xff]
      %v314 = vld [vmem:[%s169 + $0x448] sm:$0xff]
      %v315 = vld [vmem:[%s169 + $0x450] sm:$0xff]
      %v316 = vld [vmem:[%s169 + $0x458] sm:$0xff]
      %v317 = vld [vmem:[%s169 + $0x460] sm:$0xff]
      %v318 = vld [vmem:[%s169 + $0x468] sm:$0xff]
      %v319 = vld [vmem:[%s169 + $0x470] sm:$0xff]
      %v320 = vld [vmem:[%s169 + $0x478] sm:$0xff]
      %v321 = vld [vmem:[%s169 + $0x480] sm:$0xff]
      %v322 = vld [vmem:[%s169 + $0x488] sm:$0xff]
      %v323 = vld [vmem:[%s169 + $0x490] sm:$0xff]
      %v324 = vld [vmem:[%s169 + $0x498] sm:$0xff]
      %v325 = vld [vmem:[%s169 + $0x4a0] sm:$0xff]
      %v326 = vld [vmem:[%s169 + $0x4a8] sm:$0xff]
      %v327 = vld [vmem:[%s169 + $0x4b0] sm:$0xff]
      %v328 = vld [vmem:[%s169 + $0x4b8] sm:$0xff]
      %v329 = vld [vmem:[%s169 + $0x4c0] sm:$0xff]
      %v330 = vld [vmem:[%s169 + $0x4c8] sm:$0xff]
      %v331 = vld [vmem:[%s169 + $0x4d0] sm:$0xff]
      %v332 = vld [vmem:[%s169 + $0x4d8] sm:$0xff]
      %v333 = vld [vmem:[%s169 + $0x4e0] sm:$0xff]
      %v334 = vld [vmem:[%s169 + $0x4e8] sm:$0xff]
      %v335 = vld [vmem:[%s169 + $0x4f0] sm:$0xff]
      %v336 = vld [vmem:[%s169 + $0x4f8] sm:$0xff]
      %v337 = vld [vmem:[%s169 + $0x500] sm:$0xff]
      %v338 = vld [vmem:[%s169 + $0x508] sm:$0xff]
      %v339 = vld [vmem:[%s169 + $0x510] sm:$0xff]
      %v340 = vld [vmem:[%s169 + $0x518] sm:$0xff]
      %v341 = vld [vmem:[%s169 + $0x520] sm:$0xff]
      %v342 = vld [vmem:[%s169 + $0x528] sm:$0xff]
      %v343 = vld [vmem:[%s169 + $0x530] sm:$0xff]
      %v344 = vld [vmem:[%s169 + $0x538] sm:$0xff]
      %v345 = vld [vmem:[%s169 + $0x540] sm:$0xff]
      %v346 = vld [vmem:[%s169 + $0x548] sm:$0xff]
      %v347 = vld [vmem:[%s169 + $0x550] sm:$0xff]
      %v348 = vld [vmem:[%s169 + $0x558] sm:$0xff]
      %v349 = vld [vmem:[%s169 + $0x560] sm:$0xff]
      %v350 = vld [vmem:[%s169 + $0x568] sm:$0xff]
      %v351 = vld [vmem:[%s169 + $0x570] sm:$0xff]
      %v352 = vld [vmem:[%s169 + $0x578] sm:$0xff]
      %v353 = vld [vmem:[%s169 + $0x580] sm:$0xff]
      %v354 = vld [vmem:[%s169 + $0x588] sm:$0xff]
      %v355 = vld [vmem:[%s169 + $0x590] sm:$0xff]
      %v356 = vld [vmem:[%s169 + $0x598] sm:$0xff]
      %v357 = vld [vmem:[%s169 + $0x5a0] sm:$0xff]
      %v358 = vld [vmem:[%s169 + $0x5a8] sm:$0xff]
      %v359 = vld [vmem:[%s169 + $0x5b0] sm:$0xff]
      %v360 = vld [vmem:[%s169 + $0x5b8] sm:$0xff]
      %v361 = vld [vmem:[%s169 + $0x5c0] sm:$0xff]
      %v362 = vld [vmem:[%s169 + $0x5c8] sm:$0xff]
      %v363 = vld [vmem:[%s169 + $0x5d0] sm:$0xff]
      %v364 = vld [vmem:[%s169 + $0x5d8] sm:$0xff]
      %v365 = vld [vmem:[%s169 + $0x5e0] sm:$0xff]
      %v366 = vld [vmem:[%s169 + $0x5e8] sm:$0xff]
      %v367 = vld [vmem:[%s169 + $0x5f0] sm:$0xff]
      %v368 = vld [vmem:[%s169 + $0x5f8] sm:$0xff]
      %v369 = vld [vmem:[%s169 + $0x600] sm:$0xff]
      %v370 = vld [vmem:[%s169 + $0x608] sm:$0xff]
      %v371 = vld [vmem:[%s169 + $0x610] sm:$0xff]
      %v372 = vld [vmem:[%s169 + $0x618] sm:$0xff]
      %v373 = vld [vmem:[%s169 + $0x620] sm:$0xff]
      %v374 = vld [vmem:[%s169 + $0x628] sm:$0xff]
      %v375 = vld [vmem:[%s169 + $0x630] sm:$0xff]
      %v376 = vld [vmem:[%s169 + $0x638] sm:$0xff]
      %v377 = vld [vmem:[%s169 + $0x640] sm:$0xff]
      %v378 = vld [vmem:[%s169 + $0x648] sm:$0xff]
      %v379 = vld [vmem:[%s169 + $0x650] sm:$0xff]
      %v380 = vld [vmem:[%s169 + $0x658] sm:$0xff]
      %v381 = vld [vmem:[%s169 + $0x660] sm:$0xff]
      %v382 = vld [vmem:[%s169 + $0x668] sm:$0xff]
      %v383 = vld [vmem:[%s169 + $0x670] sm:$0xff]
      %v384 = vld [vmem:[%s169 + $0x678] sm:$0xff]
      %v385 = vld [vmem:[%s169 + $0x680] sm:$0xff]
      %v386 = vld [vmem:[%s169 + $0x688] sm:$0xff]
      %v387 = vld [vmem:[%s169 + $0x690] sm:$0xff]
      %v388 = vld [vmem:[%s169 + $0x698] sm:$0xff]
      %v389 = vld [vmem:[%s169 + $0x6a0] sm:$0xff]
      %v390 = vld [vmem:[%s169 + $0x6a8] sm:$0xff]
      %v391 = vld [vmem:[%s169 + $0x6b0] sm:$0xff]
      %v392 = vld [vmem:[%s169 + $0x6b8] sm:$0xff]
      %v393 = vld [vmem:[%s169 + $0x6c0] sm:$0xff]
      %v394 = vld [vmem:[%s169 + $0x6c8] sm:$0xff]
      %v395 = vld [vmem:[%s169 + $0x6d0] sm:$0xff]
      %v396 = vld [vmem:[%s169 + $0x6d8] sm:$0xff]
      %v397 = vld [vmem:[%s169 + $0x6e0] sm:$0xff]
      %v398 = vld [vmem:[%s169 + $0x6e8] sm:$0xff]
      %v399 = vld [vmem:[%s169 + $0x6f0] sm:$0xff]
      %v400 = vld [vmem:[%s169 + $0x6f8] sm:$0xff]
      %v401 = vld [vmem:[%s169 + $0x700] sm:$0xff]
      %v402 = vld [vmem:[%s169 + $0x708] sm:$0xff]
      %v403 = vld [vmem:[%s169 + $0x710] sm:$0xff]
      %v404 = vld [vmem:[%s169 + $0x718] sm:$0xff]
      %v405 = vld [vmem:[%s169 + $0x720] sm:$0xff]
      %v406 = vld [vmem:[%s169 + $0x728] sm:$0xff]
      %v407 = vld [vmem:[%s169 + $0x730] sm:$0xff]
      %v408 = vld [vmem:[%s169 + $0x738] sm:$0xff]
      %v409 = vld [vmem:[%s169 + $0x740] sm:$0xff]
      %v410 = vld [vmem:[%s169 + $0x748] sm:$0xff]
      %v411 = vld [vmem:[%s169 + $0x750] sm:$0xff]
      %v412 = vld [vmem:[%s169 + $0x758] sm:$0xff]
      %v413 = vld [vmem:[%s169 + $0x760] sm:$0xff]
      %v414 = vld [vmem:[%s169 + $0x768] sm:$0xff]
      %v415 = vld [vmem:[%s169 + $0x770] sm:$0xff]
      %v416 = vld [vmem:[%s169 + $0x778] sm:$0xff]
      %v417 = vld [vmem:[%s169 + $0x780] sm:$0xff]
      %v418 = vld [vmem:[%s169 + $0x788] sm:$0xff]
      %v419 = vld [vmem:[%s169 + $0x790] sm:$0xff]
      %v420 = vld [vmem:[%s169 + $0x798] sm:$0xff]
      %v421 = vld [vmem:[%s169 + $0x7a0] sm:$0xff]
      %v422 = vld [vmem:[%s169 + $0x7a8] sm:$0xff]
      %v423 = vld [vmem:[%s169 + $0x7b0] sm:$0xff]
      %v424 = vld [vmem:[%s169 + $0x7b8] sm:$0xff]
      %v425 = vld [vmem:[%s169 + $0x7c0] sm:$0xff]
      %v426 = vld [vmem:[%s169 + $0x7c8] sm:$0xff]
      %v427 = vld [vmem:[%s169 + $0x7d0] sm:$0xff]
      %v428 = vld [vmem:[%s169 + $0x7d8] sm:$0xff]
      %v429 = vld [vmem:[%s169 + $0x7e0] sm:$0xff]
      %v430 = vld [vmem:[%s169 + $0x7e8] sm:$0xff]
      %v431 = vld [vmem:[%s169 + $0x7f0] sm:$0xff]
      %v432 = vld [vmem:[%s169 + $0x7f8] sm:$0xff]
      %v433 = vld [vmem:[%s169 + $0x800] sm:$0xff]
      %v434 = vld [vmem:[%s169 + $0x808] sm:$0xff]
      %v435 = vld [vmem:[%s169 + $0x810] sm:$0xff]
      %v436 = vld [vmem:[%s169 + $0x818] sm:$0xff]
      %v437 = vld [vmem:[%s169 + $0x820] sm:$0xff]
      %v438 = vld [vmem:[%s169 + $0x828] sm:$0xff]
      %v439 = vld [vmem:[%s169 + $0x830] sm:$0xff]
      %v440 = vld [vmem:[%s169 + $0x838] sm:$0xff]
      %v441 = vld [vmem:[%s169 + $0x840] sm:$0xff]
      %v442 = vld [vmem:[%s169 + $0x848] sm:$0xff]
      %v443 = vld [vmem:[%s169 + $0x850] sm:$0xff]
      %v444 = vld [vmem:[%s169 + $0x858] sm:$0xff]
      %v445 = vld [vmem:[%s169 + $0x860] sm:$0xff]
      %v446 = vld [vmem:[%s169 + $0x868] sm:$0xff]
      %v447 = vld [vmem:[%s169 + $0x870] sm:$0xff]
      %v448 = vld [vmem:[%s169 + $0x878] sm:$0xff]
      %v449 = vld [vmem:[%s169 + $0x880] sm:$0xff]
      %v450 = vld [vmem:[%s169 + $0x888] sm:$0xff]
      %v451 = vld [vmem:[%s169 + $0x890] sm:$0xff]
      %v452 = vld [vmem:[%s169 + $0x898] sm:$0xff]
      %v453 = vld [vmem:[%s169 + $0x8a0] sm:$0xff]
      %v454 = vld [vmem:[%s169 + $0x8a8] sm:$0xff]
      %v455 = vld [vmem:[%s169 + $0x8b0] sm:$0xff]
      %v456 = vld [vmem:[%s169 + $0x8b8] sm:$0xff]
      %v457 = vld [vmem:[%s169 + $0x8c0] sm:$0xff]
      %v458 = vld [vmem:[%s169 + $0x8c8] sm:$0xff]
      %v459 = vld [vmem:[%s169 + $0x8d0] sm:$0xff]
      %v460 = vld [vmem:[%s169 + $0x8d8] sm:$0xff]
      %v461 = vld [vmem:[%s169 + $0x8e0] sm:$0xff]
      %v462 = vld [vmem:[%s169 + $0x8e8] sm:$0xff]
      %v463 = vld [vmem:[%s169 + $0x8f0] sm:$0xff]
      %v464 = vld [vmem:[%s169 + $0x8f8] sm:$0xff]
      %v465 = vld [vmem:[%s169 + $0x900] sm:$0xff]
      %v466 = vld [vmem:[%s169 + $0x908] sm:$0xff]
      %v467 = vld [vmem:[%s169 + $0x910] sm:$0xff]
      %v468 = vld [vmem:[%s169 + $0x918] sm:$0xff]
      %v469 = vld [vmem:[%s169 + $0x920] sm:$0xff]
      %v470 = vld [vmem:[%s169 + $0x928] sm:$0xff]
      %v471 = vld [vmem:[%s169 + $0x930] sm:$0xff]
      %v472 = vld [vmem:[%s169 + $0x938] sm:$0xff]
      %v473 = vld [vmem:[%s169 + $0x940] sm:$0xff]
      %v474 = vld [vmem:[%s169 + $0x948] sm:$0xff]
      %v475 = vld [vmem:[%s169 + $0x950] sm:$0xff]
      %v476 = vld [vmem:[%s169 + $0x958] sm:$0xff]
      %v477 = vld [vmem:[%s169 + $0x960] sm:$0xff]
      %v478 = vld [vmem:[%s169 + $0x968] sm:$0xff]
      %v479 = vld [vmem:[%s169 + $0x970] sm:$0xff]
      %v480 = vld [vmem:[%s169 + $0x978] sm:$0xff]
      %v481 = vld [vmem:[%s169 + $0x980] sm:$0xff]
      %v482 = vld [vmem:[%s169 + $0x988] sm:$0xff]
      %v483 = vld [vmem:[%s169 + $0x990] sm:$0xff]
      %v484 = vld [vmem:[%s169 + $0x998] sm:$0xff]
      %v485 = vld [vmem:[%s169 + $0x9a0] sm:$0xff]
      %v486 = vld [vmem:[%s169 + $0x9a8] sm:$0xff]
      %v487 = vld [vmem:[%s169 + $0x9b0] sm:$0xff]
      %v488 = vld [vmem:[%s169 + $0x9b8] sm:$0xff]
      %v489 = vld [vmem:[%s169 + $0x9c0] sm:$0xff]
      %v490 = vld [vmem:[%s169 + $0x9c8] sm:$0xff]
      %v491 = vld [vmem:[%s169 + $0x9d0] sm:$0xff]
      %v492 = vld [vmem:[%s169 + $0x9d8] sm:$0xff]
      %v493 = vld [vmem:[%s169 + $0x9e0] sm:$0xff]
      %v494 = vld [vmem:[%s169 + $0x9e8] sm:$0xff]
      %v495 = vld [vmem:[%s169 + $0x9f0] sm:$0xff]
      %v496 = vld [vmem:[%s169 + $0x9f8] sm:$0xff]
      %v497 = vld [vmem:[%s1] sm:$0xff]
      %v498 = vld [vmem:[%s1 + $0x8] sm:$0xff]
      %v499 = vld [vmem:[%s1 + $0x10] sm:$0xff]
      %v500 = vld [vmem:[%s1 + $0x18] sm:$0xff]
      %v501 = vld [vmem:[%s1 + $0x20] sm:$0xff]
      %v502 = vld [vmem:[%s1 + $0x28] sm:$0xff]
      %v503 = vld [vmem:[%s1 + $0x30] sm:$0xff]
      %v504 = vld [vmem:[%s1 + $0x38] sm:$0xff]
      %v505 = vld [vmem:[%s1 + $0x40] sm:$0xff]
      %v506 = vld [vmem:[%s1 + $0x48] sm:$0xff]
      %v507 = vld [vmem:[%s1 + $0x50] sm:$0xff]
      %v508 = vld [vmem:[%s1 + $0x58] sm:$0xff]
      %v509 = vld [vmem:[%s1 + $0x60] sm:$0xff]
      %v510 = vld [vmem:[%s1 + $0x68] sm:$0xff]
      %v511 = vld [vmem:[%s1 + $0x70] sm:$0xff]
      %v512 = vld [vmem:[%s1 + $0x78] sm:$0xff]
      %v513 = vld [vmem:[%s1 + $0x80] sm:$0xff]
      %v514 = vld [vmem:[%s1 + $0x88] sm:$0xff]
      %v515 = vld [vmem:[%s1 + $0x90] sm:$0xff]
      %v516 = vld [vmem:[%s1 + $0x98] sm:$0xff]
      %v517 = vld [vmem:[%s1 + $0xa0] sm:$0xff]
      %v518 = vld [vmem:[%s1 + $0xa8] sm:$0xff]
      %v519 = vld [vmem:[%s1 + $0xb0] sm:$0xff]
      %v520 = vld [vmem:[%s1 + $0xb8] sm:$0xff]
      %v521 = vld [vmem:[%s1 + $0xc0] sm:$0xff]
      %v522 = vld [vmem:[%s1 + $0xc8] sm:$0xff]
      %v523 = vld [vmem:[%s1 + $0xd0] sm:$0xff]
      %v524 = vld [vmem:[%s1 + $0xd8] sm:$0xff]
      %v525 = vld [vmem:[%s1 + $0xe0] sm:$0xff]
      %v526 = vld [vmem:[%s1 + $0xe8] sm:$0xff]
      %v527 = vld [vmem:[%s1 + $0xf0] sm:$0xff]
      %v528 = vld [vmem:[%s1 + $0xf8] sm:$0xff]
      %v529 = vld [vmem:[%s1 + $0x100] sm:$0xff]
      %v530 = vld [vmem:[%s1 + $0x108] sm:$0xff]
      %v531 = vld [vmem:[%s1 + $0x110] sm:$0xff]
      %v532 = vld [vmem:[%s1 + $0x118] sm:$0xff]
      %v533 = vld [vmem:[%s1 + $0x120] sm:$0xff]
      %v534 = vld [vmem:[%s1 + $0x128] sm:$0xff]
      %v535 = vld [vmem:[%s1 + $0x130] sm:$0xff]
      %v536 = vld [vmem:[%s1 + $0x138] sm:$0xff]
      %v537 = vld [vmem:[%s1 + $0x140] sm:$0xff]
      %v538 = vld [vmem:[%s1 + $0x148] sm:$0xff]
      %v539 = vld [vmem:[%s1 + $0x150] sm:$0xff]
      %v540 = vld [vmem:[%s1 + $0x158] sm:$0xff]
      %v541 = vld [vmem:[%s1 + $0x160] sm:$0xff]
      %v542 = vld [vmem:[%s1 + $0x168] sm:$0xff]
      %v543 = vld [vmem:[%s1 + $0x170] sm:$0xff]
      %v544 = vld [vmem:[%s1 + $0x178] sm:$0xff]
      %v545 = vld [vmem:[%s1 + $0x180] sm:$0xff]
      %v546 = vld [vmem:[%s1 + $0x188] sm:$0xff]
      %v547 = vld [vmem:[%s1 + $0x190] sm:$0xff]
      %v548 = vld [vmem:[%s1 + $0x198] sm:$0xff]
      %v549 = vld [vmem:[%s1 + $0x1a0] sm:$0xff]
      %v550 = vld [vmem:[%s1 + $0x1a8] sm:$0xff]
      %v551 = vld [vmem:[%s1 + $0x1b0] sm:$0xff]
      %v552 = vld [vmem:[%s1 + $0x1b8] sm:$0xff]
      %v553 = vld [vmem:[%s1 + $0x1c0] sm:$0xff]
      %v554 = vld [vmem:[%s1 + $0x1c8] sm:$0xff]
      %v555 = vld [vmem:[%s1 + $0x1d0] sm:$0xff]
      %v556 = vld [vmem:[%s1 + $0x1d8] sm:$0xff]
      %v557 = vld [vmem:[%s1 + $0x1e0] sm:$0xff]
      %v558 = vld [vmem:[%s1 + $0x1e8] sm:$0xff]
      %v559 = vld [vmem:[%s1 + $0x1f0] sm:$0xff]
      %v560 = vld [vmem:[%s1 + $0x1f8] sm:$0xff]
      %v561 = vld [vmem:[%s1 + $0x200] sm:$0xff]
      %v562 = vld [vmem:[%s1 + $0x208] sm:$0xff]
      %v563 = vld [vmem:[%s1 + $0x210] sm:$0xff]
      %v564 = vld [vmem:[%s1 + $0x218] sm:$0xff]
      %v565 = vld [vmem:[%s1 + $0x220] sm:$0xff]
      %v566 = vld [vmem:[%s1 + $0x228] sm:$0xff]
      %v567 = vld [vmem:[%s1 + $0x230] sm:$0xff]
      %v568 = vld [vmem:[%s1 + $0x238] sm:$0xff]
      %v569 = vld [vmem:[%s2] sm:$0x1]
      %v571 = vlaneseq
      %v572 = vshrl.u32 %v571, 7
      %v573 = vsub.s32 0, %v572
      %v574 = vrot.slane %v569, %v573
      %vm576 = vcmask 523264
      %v578 = vsel %vm576, %v181, 0
      %v581 = vsel %vm576, %v186, 0
      %v584 = vsel %vm576, %v191, 0
      %v587 = vsel %vm576, %v196, 0
      %v590 = vsel %vm576, %v201, 0
      %v593 = vsel %vm576, %v206, 0
      %v596 = vsel %vm576, %v211, 0
      %v599 = vsel %vm576, %v216, 0
      %v602 = vsel %vm576, %v221, 0
      %v605 = vsel %vm576, %v226, 0
      %v608 = vsel %vm576, %v231, 0
      %v611 = vsel %vm576, %v236, 0
      %v614 = vsel %vm576, %v241, 0
      %v617 = vsel %vm576, %v246, 0
      %v620 = vsel %vm576, %v251, 0
      %v623 = vsel %vm576, %v256, 0
      %v626 = vsel %vm576, %v261, 0
      %v629 = vsel %vm576, %v266, 0
      %v632 = vsel %vm576, %v271, 0
      %v635 = vsel %vm576, %v276, 0
      %v638 = vsel %vm576, %v281, 0
      %v641 = vsel %vm576, %v286, 0
      %v644 = vsel %vm576, %v291, 0
      %v647 = vsel %vm576, %v296, 0
      %v650 = vsel %vm576, %v301, 0
      %v653 = vsel %vm576, %v306, 0
      %v656 = vsel %vm576, %v311, 0
      %v659 = vsel %vm576, %v316, 0
      %v662 = vsel %vm576, %v321, 0
      %v665 = vsel %vm576, %v326, 0
      %v668 = vsel %vm576, %v331, 0
      %v671 = vsel %vm576, %v336, 0
      %v674 = vsel %vm576, %v341, 0
      %v677 = vsel %vm576, %v346, 0
      %v680 = vsel %vm576, %v351, 0
      %v683 = vsel %vm576, %v356, 0
      %v686 = vsel %vm576, %v361, 0
      %v689 = vsel %vm576, %v366, 0
      %v692 = vsel %vm576, %v371, 0
      %v695 = vsel %vm576, %v376, 0
      %v698 = vsel %vm576, %v381, 0
      %v701 = vsel %vm576, %v386, 0
      %v704 = vsel %vm576, %v391, 0
      %v707 = vsel %vm576, %v396, 0
      %v710 = vsel %vm576, %v401, 0
      %v713 = vsel %vm576, %v406, 0
      %v716 = vsel %vm576, %v411, 0
      %v719 = vsel %vm576, %v416, 0
      %v722 = vsel %vm576, %v421, 0
      %v725 = vsel %vm576, %v426, 0
      %v728 = vsel %vm576, %v431, 0
      %v731 = vsel %vm576, %v436, 0
      %v734 = vsel %vm576, %v441, 0
      %v737 = vsel %vm576, %v446, 0
      %v740 = vsel %vm576, %v451, 0
      %v743 = vsel %vm576, %v456, 0
      %v746 = vsel %vm576, %v461, 0
      %v749 = vsel %vm576, %v466, 0
      %v752 = vsel %vm576, %v471, 0
      %v755 = vsel %vm576, %v476, 0
      %v758 = vsel %vm576, %v481, 0
      %v761 = vsel %vm576, %v486, 0
      %v764 = vsel %vm576, %v491, 0
      %v767 = vsel %vm576, %v496, 0
      %769 = vmatprep.subr.mxu0 0.0
      %770 = vmatpush1.msra.mxu0 %v497
      %771 = vmatprep.subr.mxu0 0.0
      %772 = vmatpush1.msra.mxu0 %v498
      %773 = vmatprep.subr.mxu0 0.0
      %774 = vmatpush1.msra.mxu0 %v499
      %775 = vmatprep.subr.mxu0 0.0
      %776 = vmatpush1.msra.mxu0 %v500
      %777 = vmatprep.subr.mxu0 0.0
      %778 = vmatpush1.msra.mxu0 %v501
      %779 = vmatprep.subr.mxu0 0.0
      %780 = vmatpush1.msra.mxu0 %v502
      %781 = vmatprep.subr.mxu0 0.0
      %782 = vmatpush1.msra.mxu0 %v503
      %783 = vmatprep.subr.mxu0 0.0
      %784 = vmatpush1.msra.mxu0 %v504
      %785 = vmatprep.subr.mxu0 0.0
      %786 = vmatpush1.msra.mxu0 %v505
      %787 = vmatprep.subr.mxu0 0.0
      %788 = vmatpush1.msra.mxu0 %v506
      %789 = vmatprep.subr.mxu0 0.0
      %790 = vmatpush1.msra.mxu0 %v507
      %791 = vmatprep.subr.mxu0 0.0
      %792 = vmatpush1.msra.mxu0 %v508
      %793 = vmatprep.subr.mxu0 0.0
      %794 = vmatpush1.msra.mxu0 %v509
      %795 = vmatprep.subr.mxu0 0.0
      %796 = vmatpush1.msra.mxu0 %v510
      %797 = vmatprep.subr.mxu0 0.0
      %798 = vmatpush1.msra.mxu0 %v511
      %799 = vmatprep.subr.mxu0 0.0
      %800 = vmatpush1.msra.mxu0 %v512
      %801 = vmatprep.subr.mxu0 0.0
      %802 = vmatpush1.msra.mxu0 %v513
      %803 = vmatprep.subr.mxu0 0.0
      %804 = vmatpush1.msra.mxu0 %v514
      %805 = vmatprep.subr.mxu0 0.0
      %806 = vmatpush1.msra.mxu0 %v515
      %807 = vmatprep.subr.mxu0 0.0
      %808 = vmatpush1.msra.mxu0 %v516
      %809 = vmatprep.subr.mxu0 0.0
      %810 = vmatpush1.msra.mxu0 %v517
      %811 = vmatprep.subr.mxu0 0.0
      %812 = vmatpush1.msra.mxu0 %v518
      %813 = vmatprep.subr.mxu0 0.0
      %814 = vmatpush1.msra.mxu0 %v519
      %815 = vmatprep.subr.mxu0 0.0
      %816 = vmatpush1.msra.mxu0 %v520
      %817 = vmatprep.subr.mxu0 0.0
      %818 = vmatpush1.msra.mxu0 %v521
      %819 = vmatprep.subr.mxu0 0.0
      %820 = vmatpush1.msra.mxu0 %v522
      %821 = vmatprep.subr.mxu0 0.0
      %822 = vmatpush1.msra.mxu0 %v523
      %823 = vmatprep.subr.mxu0 0.0
      %824 = vmatpush1.msra.mxu0 %v524
      %825 = vmatprep.subr.mxu0 0.0
      %826 = vmatpush1.msra.mxu0 %v525
      %827 = vmatprep.subr.mxu0 0.0
      %828 = vmatpush1.msra.mxu0 %v526
      %829 = vmatprep.subr.mxu0 0.0
      %830 = vmatpush1.msra.mxu0 %v527
      %831 = vmatprep.subr.mxu0 0.0
      %832 = vmatpush1.msra.mxu0 %v528
      %833 = vmatprep.mubr.f32.mxu0 %v178
      %834 = vmatmul.mubr.f32.gmra.mrb[0].mxu0 %v177
      %v835 = vpop.f32.mrb[0].mxu0
      %v836 = vadd.f32 %v574, %v835
      %v837 = vpop.f32.mrb[0].mxu0
      %838 = vmatprep.mubr.f32.mxu0 %v183
      %839 = vmatmul.mubr.f32.gmra.mrb[0].mxu0 %v182
      %v840 = vpop.f32.mrb[0].mxu0
      %v841 = vadd.f32 %v574, %v840
      %v842 = vpop.f32.mrb[0].mxu0
      %843 = vmatprep.mubr.f32.mxu0 %v188
      %844 = vmatmul.mubr.f32.gmra.mrb[0].mxu0 %v187
      %v845 = vpop.f32.mrb[0].mxu0
      %v846 = vadd.f32 %v574, %v845
      %v847 = vpop.f32.mrb[0].mxu0
      %848 = vmatprep.mubr.f32.mxu0 %v193
      %849 = vmatmul.mubr.f32.gmra.mrb[0].mxu0 %v192
      %v850 = vpop.f32.mrb[0].mxu0
      %v851 = vadd.f32 %v574, %v850
      %v852 = vpop.f32.mrb[0].mxu0
      %853 = vmatprep.mubr.f32.mxu0 %v198
      %854 = vmatmul.mubr.f32.gmra.mrb[0].mxu0 %v197
      %v855 = vpop.f32.mrb[0].mxu0
      %v856 = vadd.f32 %v574, %v855
      %v857 = vpop.f32.mrb[0].mxu0
      %858 = vmatprep.mubr.f32.mxu0 %v203
      %859 = vmatmul.mubr.f32.gmra.mrb[0].mxu0 %v202
      %v860 = vpop.f32.mrb[0].mxu0
      %v861 = vadd.f32 %v574, %v860
      %v862 = vpop.f32.mrb[0].mxu0
      %863 = vmatprep.mubr.f32.mxu0 %v208
      %864 = vmatmul.mubr.f32.gmra.mrb[0].mxu0 %v207
      %v865 = vpop.f32.mrb[0].mxu0
      %v866 = vadd.f32 %v574, %v865
      %v867 = vpop.f32.mrb[0].mxu0
      %868 = vmatprep.mubr.f32.mxu0 %v213
      %869 = vmatmul.mubr.f32.gmra.mrb[0].mxu0 %v212
      %v870 = vpop.f32.mrb[0].mxu0
      %v871 = vadd.f32 %v574, %v870
      %v872 = vpop.f32.mrb[0].mxu0
      %873 = vmatprep.mubr.f32.mxu0 %v218
      %874 = vmatmul.mubr.f32.gmra.mrb[0].mxu0 %v217
      %v875 = vpop.f32.mrb[0].mxu0
      %v876 = vadd.f32 %v574, %v875
      %v877 = vpop.f32.mrb[0].mxu0
      %878 = vmatprep.mubr.f32.mxu0 %v223
      %879 = vmatmul.mubr.f32.gmra.mrb[0].mxu0 %v222
      %v880 = vpop.f32.mrb[0].mxu0
      %v881 = vadd.f32 %v574, %v880
      %v882 = vpop.f32.mrb[0].mxu0
      %883 = vmatprep.mubr.f32.mxu0 %v228
      %884 = vmatmul.mubr.f32.gmra.mrb[0].mxu0 %v227
      %v885 = vpop.f32.mrb[0].mxu0
      %v886 = vadd.f32 %v574, %v885
      %v887 = vpop.f32.mrb[0].mxu0
      %888 = vmatprep.mubr.f32.mxu0 %v233
      %889 = vmatmul.mubr.f32.gmra.mrb[0].mxu0 %v232
      %v890 = vpop.f32.mrb[0].mxu0
      %v891 = vadd.f32 %v574, %v890
      %v892 = vpop.f32.mrb[0].mxu0
      %893 = vmatprep.mubr.f32.mxu0 %v238
      %894 = vmatmul.mubr.f32.gmra.mrb[0].mxu0 %v237
      %v895 = vpop.f32.mrb[0].mxu0
      %v896 = vadd.f32 %v574, %v895
      %v897 = vpop.f32.mrb[0].mxu0
      %898 = vmatprep.mubr.f32.mxu0 %v243
      %899 = vmatmul.mubr.f32.gmra.mrb[0].mxu0 %v242
      %v900 = vpop.f32.mrb[0].mxu0
      %v901 = vadd.f32 %v574, %v900
      %v902 = vpop.f32.mrb[0].mxu0
      %903 = vmatprep.mubr.f32.mxu0 %v248
      %904 = vmatmul.mubr.f32.gmra.mrb[0].mxu0 %v247
      %v905 = vpop.f32.mrb[0].mxu0
      %v906 = vadd.f32 %v574, %v905
      %v907 = vpop.f32.mrb[0].mxu0
      %908 = vmatprep.mubr.f32.mxu0 %v253
      %909 = vmatmul.mubr.f32.gmra.mrb[0].mxu0 %v252
      %v910 = vpop.f32.mrb[0].mxu0
      %v911 = vadd.f32 %v574, %v910
      %v912 = vpop.f32.mrb[0].mxu0
      %913 = vmatprep.mubr.f32.mxu0 %v258
      %914 = vmatmul.mubr.f32.gmra.mrb[0].mxu0 %v257
      %v915 = vpop.f32.mrb[0].mxu0
      %v916 = vadd.f32 %v574, %v915
      %v917 = vpop.f32.mrb[0].mxu0
      %918 = vmatprep.mubr.f32.mxu0 %v263
      %919 = vmatmul.mubr.f32.gmra.mrb[0].mxu0 %v262
      %v920 = vpop.f32.mrb[0].mxu0
      %v921 = vadd.f32 %v574, %v920
      %v922 = vpop.f32.mrb[0].mxu0
      %923 = vmatprep.mubr.f32.mxu0 %v268
      %924 = vmatmul.mubr.f32.gmra.mrb[0].mxu0 %v267
      %v925 = vpop.f32.mrb[0].mxu0
      %v926 = vadd.f32 %v574, %v925
      %v927 = vpop.f32.mrb[0].mxu0
      %928 = vmatprep.mubr.f32.mxu0 %v273
      %929 = vmatmul.mubr.f32.gmra.mrb[0].mxu0 %v272
      %v930 = vpop.f32.mrb[0].mxu0
      %v931 = vadd.f32 %v574, %v930
      %v932 = vpop.f32.mrb[0].mxu0
      %933 = vmatprep.mubr.f32.mxu0 %v278
      %934 = vmatmul.mubr.f32.gmra.mrb[0].mxu0 %v277
      %v935 = vpop.f32.mrb[0].mxu0
      %v936 = vadd.f32 %v574, %v935
      %v937 = vpop.f32.mrb[0].mxu0
      %938 = vmatprep.mubr.f32.mxu0 %v283
      %939 = vmatmul.mubr.f32.gmra.mrb[0].mxu0 %v282
      %v940 = vpop.f32.mrb[0].mxu0
      %v941 = vadd.f32 %v574, %v940
      %v942 = vpop.f32.mrb[0].mxu0
      %943 = vmatprep.mubr.f32.mxu0 %v288
      %944 = vmatmul.mubr.f32.gmra.mrb[0].mxu0 %v287
      %v945 = vpop.f32.mrb[0].mxu0
      %v946 = vadd.f32 %v574, %v945
      %v947 = vpop.f32.mrb[0].mxu0
      %948 = vmatprep.mubr.f32.mxu0 %v293
      %949 = vmatmul.mubr.f32.gmra.mrb[0].mxu0 %v292
      %v950 = vpop.f32.mrb[0].mxu0
      %v951 = vadd.f32 %v574, %v950
      %v952 = vpop.f32.mrb[0].mxu0
      %953 = vmatprep.mubr.f32.mxu0 %v298
      %954 = vmatmul.mubr.f32.gmra.mrb[0].mxu0 %v297
      %v955 = vpop.f32.mrb[0].mxu0
      %v956 = vadd.f32 %v574, %v955
      %v957 = vpop.f32.mrb[0].mxu0
      %958 = vmatprep.mubr.f32.mxu0 %v303
      %959 = vmatmul.mubr.f32.gmra.mrb[0].mxu0 %v302
      %v960 = vpop.f32.mrb[0].mxu0
      %v961 = vadd.f32 %v574, %v960
      %v962 = vpop.f32.mrb[0].mxu0
      %963 = vmatprep.mubr.f32.mxu0 %v308
      %964 = vmatmul.mubr.f32.gmra.mrb[0].mxu0 %v307
      %v965 = vpop.f32.mrb[0].mxu0
      %v966 = vadd.f32 %v574, %v965
      %v967 = vpop.f32.mrb[0].mxu0
      %968 = vmatprep.mubr.f32.mxu0 %v313
      %969 = vmatmul.mubr.f32.gmra.mrb[0].mxu0 %v312
      %v970 = vpop.f32.mrb[0].mxu0
      %v971 = vadd.f32 %v574, %v970
      %v972 = vpop.f32.mrb[0].mxu0
      %973 = vmatprep.mubr.f32.mxu0 %v318
      %974 = vmatmul.mubr.f32.gmra.mrb[0].mxu0 %v317
      %v975 = vpop.f32.mrb[0].mxu0
      %v976 = vadd.f32 %v574, %v975
      %v977 = vpop.f32.mrb[0].mxu0
      %978 = vmatprep.mubr.f32.mxu0 %v323
      %979 = vmatmul.mubr.f32.gmra.mrb[0].mxu0 %v322
      %v980 = vpop.f32.mrb[0].mxu0
      %v981 = vadd.f32 %v574, %v980
      %v982 = vpop.f32.mrb[0].mxu0
      %983 = vmatprep.mubr.f32.mxu0 %v328
      %984 = vmatmul.mubr.f32.gmra.mrb[0].mxu0 %v327
      %v985 = vpop.f32.mrb[0].mxu0
      %v986 = vadd.f32 %v574, %v985
      %v987 = vpop.f32.mrb[0].mxu0
      %988 = vmatprep.mubr.f32.mxu0 %v333
      %989 = vmatmul.mubr.f32.gmra.mrb[0].mxu0 %v332
      %v990 = vpop.f32.mrb[0].mxu0
      %v991 = vadd.f32 %v574, %v990
      %v992 = vpop.f32.mrb[0].mxu0
      %993 = vmatprep.mubr.f32.mxu0 %v338
      %994 = vmatmul.mubr.f32.gmra.mrb[0].mxu0 %v337
      %v995 = vpop.f32.mrb[0].mxu0
      %v996 = vadd.f32 %v574, %v995
      %v997 = vpop.f32.mrb[0].mxu0
      %998 = vmatprep.mubr.f32.mxu0 %v343
      %999 = vmatmul.mubr.f32.gmra.mrb[0].mxu0 %v342
      %v1000 = vpop.f32.mrb[0].mxu0
      %v1001 = vadd.f32 %v574, %v1000
      %v1002 = vpop.f32.mrb[0].mxu0
      %1003 = vmatprep.mubr.f32.mxu0 %v348
      %1004 = vmatmul.mubr.f32.gmra.mrb[0].mxu0 %v347
      %v1005 = vpop.f32.mrb[0].mxu0
      %v1006 = vadd.f32 %v574, %v1005
      %v1007 = vpop.f32.mrb[0].mxu0
      %1008 = vmatprep.mubr.f32.mxu0 %v353
      %1009 = vmatmul.mubr.f32.gmra.mrb[0].mxu0 %v352
      %v1010 = vpop.f32.mrb[0].mxu0
      %v1011 = vadd.f32 %v574, %v1010
      %v1012 = vpop.f32.mrb[0].mxu0
      %1013 = vmatprep.mubr.f32.mxu0 %v358
      %1014 = vmatmul.mubr.f32.gmra.mrb[0].mxu0 %v357
      %v1015 = vpop.f32.mrb[0].mxu0
      %v1016 = vadd.f32 %v574, %v1015
      %v1017 = vpop.f32.mrb[0].mxu0
      %1018 = vmatprep.mubr.f32.mxu0 %v363
      %1019 = vmatmul.mubr.f32.gmra.mrb[0].mxu0 %v362
      %v1020 = vpop.f32.mrb[0].mxu0
      %v1021 = vadd.f32 %v574, %v1020
      %v1022 = vpop.f32.mrb[0].mxu0
      %1023 = vmatprep.mubr.f32.mxu0 %v368
      %1024 = vmatmul.mubr.f32.gmra.mrb[0].mxu0 %v367
      %v1025 = vpop.f32.mrb[0].mxu0
      %v1026 = vadd.f32 %v574, %v1025
      %v1027 = vpop.f32.mrb[0].mxu0
      %1028 = vmatprep.mubr.f32.mxu0 %v373
      %1029 = vmatmul.mubr.f32.gmra.mrb[0].mxu0 %v372
      %v1030 = vpop.f32.mrb[0].mxu0
      %v1031 = vadd.f32 %v574, %v1030
      %v1032 = vpop.f32.mrb[0].mxu0
      %1033 = vmatprep.mubr.f32.mxu0 %v378
      %1034 = vmatmul.mubr.f32.gmra.mrb[0].mxu0 %v377
      %v1035 = vpop.f32.mrb[0].mxu0
      %v1036 = vadd.f32 %v574, %v1035
      %v1037 = vpop.f32.mrb[0].mxu0
      %1038 = vmatprep.mubr.f32.mxu0 %v383
      %1039 = vmatmul.mubr.f32.gmra.mrb[0].mxu0 %v382
      %v1040 = vpop.f32.mrb[0].mxu0
      %v1041 = vadd.f32 %v574, %v1040
      %v1042 = vpop.f32.mrb[0].mxu0
      %1043 = vmatprep.mubr.f32.mxu0 %v388
      %1044 = vmatmul.mubr.f32.gmra.mrb[0].mxu0 %v387
      %v1045 = vpop.f32.mrb[0].mxu0
      %v1046 = vadd.f32 %v574, %v1045
      %v1047 = vpop.f32.mrb[0].mxu0
      %1048 = vmatprep.mubr.f32.mxu0 %v393
      %1049 = vmatmul.mubr.f32.gmra.mrb[0].mxu0 %v392
      %v1050 = vpop.f32.mrb[0].mxu0
      %v1051 = vadd.f32 %v574, %v1050
      %v1052 = vpop.f32.mrb[0].mxu0
      %1053 = vmatprep.mubr.f32.mxu0 %v398
      %1054 = vmatmul.mubr.f32.gmra.mrb[0].mxu0 %v397
      %v1055 = vpop.f32.mrb[0].mxu0
      %v1056 = vadd.f32 %v574, %v1055
      %v1057 = vpop.f32.mrb[0].mxu0
      %1058 = vmatprep.mubr.f32.mxu0 %v403
      %1059 = vmatmul.mubr.f32.gmra.mrb[0].mxu0 %v402
      %v1060 = vpop.f32.mrb[0].mxu0
      %v1061 = vadd.f32 %v574, %v1060
      %v1062 = vpop.f32.mrb[0].mxu0
      %1063 = vmatprep.mubr.f32.mxu0 %v408
      %1064 = vmatmul.mubr.f32.gmra.mrb[0].mxu0 %v407
      %v1065 = vpop.f32.mrb[0].mxu0
      %v1066 = vadd.f32 %v574, %v1065
      %v1067 = vpop.f32.mrb[0].mxu0
      %1068 = vmatprep.mubr.f32.mxu0 %v413
      %1069 = vmatmul.mubr.f32.gmra.mrb[0].mxu0 %v412
      %v1070 = vpop.f32.mrb[0].mxu0
      %v1071 = vadd.f32 %v574, %v1070
      %v1072 = vpop.f32.mrb[0].mxu0
      %1073 = vmatprep.mubr.f32.mxu0 %v418
      %1074 = vmatmul.mubr.f32.gmra.mrb[0].mxu0 %v417
      %v1075 = vpop.f32.mrb[0].mxu0
      %v1076 = vadd.f32 %v574, %v1075
      %v1077 = vpop.f32.mrb[0].mxu0
      %1078 = vmatprep.mubr.f32.mxu0 %v423
      %1079 = vmatmul.mubr.f32.gmra.mrb[0].mxu0 %v422
      %v1080 = vpop.f32.mrb[0].mxu0
      %v1081 = vadd.f32 %v574, %v1080
      %v1082 = vpop.f32.mrb[0].mxu0
      %1083 = vmatprep.mubr.f32.mxu0 %v428
      %1084 = vmatmul.mubr.f32.gmra.mrb[0].mxu0 %v427
      %v1085 = vpop.f32.mrb[0].mxu0
      %v1086 = vadd.f32 %v574, %v1085
      %v1087 = vpop.f32.mrb[0].mxu0
      %1088 = vmatprep.mubr.f32.mxu0 %v433
      %1089 = vmatmul.mubr.f32.gmra.mrb[0].mxu0 %v432
      %v1090 = vpop.f32.mrb[0].mxu0
      %v1091 = vadd.f32 %v574, %v1090
      %v1092 = vpop.f32.mrb[0].mxu0
      %1093 = vmatprep.mubr.f32.mxu0 %v438
      %1094 = vmatmul.mubr.f32.gmra.mrb[0].mxu0 %v437
      %v1095 = vpop.f32.mrb[0].mxu0
      %v1096 = vadd.f32 %v574, %v1095
      %v1097 = vpop.f32.mrb[0].mxu0
      %1098 = vmatprep.mubr.f32.mxu0 %v443
      %1099 = vmatmul.mubr.f32.gmra.mrb[0].mxu0 %v442
      %v1100 = vpop.f32.mrb[0].mxu0
      %v1101 = vadd.f32 %v574, %v1100
      %v1102 = vpop.f32.mrb[0].mxu0
      %1103 = vmatprep.mubr.f32.mxu0 %v448
      %1104 = vmatmul.mubr.f32.gmra.mrb[0].mxu0 %v447
      %v1105 = vpop.f32.mrb[0].mxu0
      %v1106 = vadd.f32 %v574, %v1105
      %v1107 = vpop.f32.mrb[0].mxu0
      %1108 = vmatprep.mubr.f32.mxu0 %v453
      %1109 = vmatmul.mubr.f32.gmra.mrb[0].mxu0 %v452
      %v1110 = vpop.f32.mrb[0].mxu0
      %v1111 = vadd.f32 %v574, %v1110
      %v1112 = vpop.f32.mrb[0].mxu0
      %1113 = vmatprep.mubr.f32.mxu0 %v458
      %1114 = vmatmul.mubr.f32.gmra.mrb[0].mxu0 %v457
      %v1115 = vpop.f32.mrb[0].mxu0
      %v1116 = vadd.f32 %v574, %v1115
      %v1117 = vpop.f32.mrb[0].mxu0
      %1118 = vmatprep.mubr.f32.mxu0 %v463
      %1119 = vmatmul.mubr.f32.gmra.mrb[0].mxu0 %v462
      %v1120 = vpop.f32.mrb[0].mxu0
      %v1121 = vadd.f32 %v574, %v1120
      %v1122 = vpop.f32.mrb[0].mxu0
      %1123 = vmatprep.mubr.f32.mxu0 %v468
      %1124 = vmatmul.mubr.f32.gmra.mrb[0].mxu0 %v467
      %v1125 = vpop.f32.mrb[0].mxu0
      %v1126 = vadd.f32 %v574, %v1125
      %v1127 = vpop.f32.mrb[0].mxu0
      %1128 = vmatprep.mubr.f32.mxu0 %v473
      %1129 = vmatmul.mubr.f32.gmra.mrb[0].mxu0 %v472
      %v1130 = vpop.f32.mrb[0].mxu0
      %v1131 = vadd.f32 %v574, %v1130
      %v1132 = vpop.f32.mrb[0].mxu0
      %1133 = vmatprep.mubr.f32.mxu0 %v478
      %1134 = vmatmul.mubr.f32.gmra.mrb[0].mxu0 %v477
      %v1135 = vpop.f32.mrb[0].mxu0
      %v1136 = vadd.f32 %v574, %v1135
      %v1137 = vpop.f32.mrb[0].mxu0
      %1138 = vmatprep.mubr.f32.mxu0 %v483
      %1139 = vmatmul.mubr.f32.gmra.mrb[0].mxu0 %v482
      %v1140 = vpop.f32.mrb[0].mxu0
      %v1141 = vadd.f32 %v574, %v1140
      %v1142 = vpop.f32.mrb[0].mxu0
      %1143 = vmatprep.mubr.f32.mxu0 %v488
      %1144 = vmatmul.mubr.f32.gmra.mrb[0].mxu0 %v487
      %v1145 = vpop.f32.mrb[0].mxu0
      %v1146 = vadd.f32 %v574, %v1145
      %v1147 = vpop.f32.mrb[0].mxu0
      %1148 = vmatprep.mubr.f32.mxu0 %v493
      %1149 = vmatmul.mubr.f32.gmra.mrb[0].mxu0 %v492
      %v1150 = vpop.f32.mrb[0].mxu0
      %v1151 = vadd.f32 %v574, %v1150
      %v1152 = vpop.f32.mrb[0].mxu0
      %1153 = vdwg.mxu0
      %1154 = vmatprep.subr.mxu0 0.0
      %1155 = vmatpush1.msra.mxu0 %v529
      %1156 = vmatprep.subr.mxu0 0.0
      %1157 = vmatpush1.msra.mxu0 %v530
      %1158 = vmatprep.subr.mxu0 0.0
      %1159 = vmatpush1.msra.mxu0 %v531
      %1160 = vmatprep.subr.mxu0 0.0
      %1161 = vmatpush1.msra.mxu0 %v532
      %1162 = vmatprep.subr.mxu0 0.0
      %1163 = vmatpush1.msra.mxu0 %v533
      %1164 = vmatprep.subr.mxu0 0.0
      %1165 = vmatpush1.msra.mxu0 %v534
      %1166 = vmatprep.subr.mxu0 0.0
      %1167 = vmatpush1.msra.mxu0 %v535
      %1168 = vmatprep.subr.mxu0 0.0
      %1169 = vmatpush1.msra.mxu0 %v536
      %1170 = vmatprep.subr.mxu0 0.0
      %1171 = vmatpush1.msra.mxu0 %v537
      %1172 = vmatprep.subr.mxu0 0.0
      %1173 = vmatpush1.msra.mxu0 %v538
      %1174 = vmatprep.subr.mxu0 0.0
      %1175 = vmatpush1.msra.mxu0 %v539
      %1176 = vmatprep.subr.mxu0 0.0
      %1177 = vmatpush1.msra.mxu0 %v540
      %1178 = vmatprep.subr.mxu0 0.0
      %1179 = vmatpush1.msra.mxu0 %v541
      %1180 = vmatprep.subr.mxu0 0.0
      %1181 = vmatpush1.msra.mxu0 %v542
      %1182 = vmatprep.subr.mxu0 0.0
      %1183 = vmatpush1.msra.mxu0 %v543
      %1184 = vmatprep.subr.mxu0 0.0
      %1185 = vmatpush1.msra.mxu0 %v544
      %1186 = vmatprep.subr.mxu0 0.0
      %1187 = vmatpush1.msra.mxu0 %v545
      %1188 = vmatprep.subr.mxu0 0.0
      %1189 = vmatpush1.msra.mxu0 %v546
      %1190 = vmatprep.subr.mxu0 0.0
      %1191 = vmatpush1.msra.mxu0 %v547
      %1192 = vmatprep.subr.mxu0 0.0
      %1193 = vmatpush1.msra.mxu0 %v548
      %1194 = vmatprep.subr.mxu0 0.0
      %1195 = vmatpush1.msra.mxu0 %v549
      %1196 = vmatprep.subr.mxu0 0.0
      %1197 = vmatpush1.msra.mxu0 %v550
      %1198 = vmatprep.subr.mxu0 0.0
      %1199 = vmatpush1.msra.mxu0 %v551
      %1200 = vmatprep.subr.mxu0 0.0
      %1201 = vmatpush1.msra.mxu0 %v552
      %1202 = vmatprep.subr.mxu0 0.0
      %1203 = vmatpush1.msra.mxu0 %v553
      %1204 = vmatprep.subr.mxu0 0.0
      %1205 = vmatpush1.msra.mxu0 %v554
      %1206 = vmatprep.subr.mxu0 0.0
      %1207 = vmatpush1.msra.mxu0 %v555
      %1208 = vmatprep.subr.mxu0 0.0
      %1209 = vmatpush1.msra.mxu0 %v556
      %1210 = vmatprep.subr.mxu0 0.0
      %1211 = vmatpush1.msra.mxu0 %v557
      %1212 = vmatprep.subr.mxu0 0.0
      %1213 = vmatpush1.msra.mxu0 %v558
      %1214 = vmatprep.subr.mxu0 0.0
      %1215 = vmatpush1.msra.mxu0 %v559
      %1216 = vmatprep.subr.mxu0 0.0
      %1217 = vmatpush1.msra.mxu0 %v560
      %1218 = vmatprep.mubr.f32.mxu0 %v180
      %1219 = vmatmul.mubr.f32.gmra.mrb[0].mxu0 %v179
      %v1220 = vpop.f32.mrb[0].mxu0
      %v1221 = vadd.f32 %v836, %v1220
      %v1222 = vpop.f32.mrb[0].mxu0
      %1223 = vmatprep.mubr.f32.mxu0 %v185
      %1224 = vmatmul.mubr.f32.gmra.mrb[0].mxu0 %v184
      %v1225 = vpop.f32.mrb[0].mxu0
      %v1226 = vadd.f32 %v841, %v1225
      %v1227 = vpop.f32.mrb[0].mxu0
      %1228 = vmatprep.mubr.f32.mxu0 %v190
      %1229 = vmatmul.mubr.f32.gmra.mrb[0].mxu0 %v189
      %v1230 = vpop.f32.mrb[0].mxu0
      %v1231 = vadd.f32 %v846, %v1230
      %v1232 = vpop.f32.mrb[0].mxu0
      %1233 = vmatprep.mubr.f32.mxu0 %v195
      %1234 = vmatmul.mubr.f32.gmra.mrb[0].mxu0 %v194
      %v1235 = vpop.f32.mrb[0].mxu0
      %v1236 = vadd.f32 %v851, %v1235
      %v1237 = vpop.f32.mrb[0].mxu0
      %1238 = vmatprep.mubr.f32.mxu0 %v200
      %1239 = vmatmul.mubr.f32.gmra.mrb[0].mxu0 %v199
      %v1240 = vpop.f32.mrb[0].mxu0
      %v1241 = vadd.f32 %v856, %v1240
      %v1242 = vpop.f32.mrb[0].mxu0
      %1243 = vmatprep.mubr.f32.mxu0 %v205
      %1244 = vmatmul.mubr.f32.gmra.mrb[0].mxu0 %v204
      %v1245 = vpop.f32.mrb[0].mxu0
      %v1246 = vadd.f32 %v861, %v1245
      %v1247 = vpop.f32.mrb[0].mxu0
      %1248 = vmatprep.mubr.f32.mxu0 %v210
      %1249 = vmatmul.mubr.f32.gmra.mrb[0].mxu0 %v209
      %v1250 = vpop.f32.mrb[0].mxu0
      %v1251 = vadd.f32 %v866, %v1250
      %v1252 = vpop.f32.mrb[0].mxu0
      %1253 = vmatprep.mubr.f32.mxu0 %v215
      %1254 = vmatmul.mubr.f32.gmra.mrb[0].mxu0 %v214
      %v1255 = vpop.f32.mrb[0].mxu0
      %v1256 = vadd.f32 %v871, %v1255
      %v1257 = vpop.f32.mrb[0].mxu0
      %1258 = vmatprep.mubr.f32.mxu0 %v220
      %1259 = vmatmul.mubr.f32.gmra.mrb[0].mxu0 %v219
      %v1260 = vpop.f32.mrb[0].mxu0
      %v1261 = vadd.f32 %v876, %v1260
      %v1262 = vpop.f32.mrb[0].mxu0
      %1263 = vmatprep.mubr.f32.mxu0 %v225
      %1264 = vmatmul.mubr.f32.gmra.mrb[0].mxu0 %v224
      %v1265 = vpop.f32.mrb[0].mxu0
      %v1266 = vadd.f32 %v881, %v1265
      %v1267 = vpop.f32.mrb[0].mxu0
      %1268 = vmatprep.mubr.f32.mxu0 %v230
      %1269 = vmatmul.mubr.f32.gmra.mrb[0].mxu0 %v229
      %v1270 = vpop.f32.mrb[0].mxu0
      %v1271 = vadd.f32 %v886, %v1270
      %v1272 = vpop.f32.mrb[0].mxu0
      %1273 = vmatprep.mubr.f32.mxu0 %v235
      %1274 = vmatmul.mubr.f32.gmra.mrb[0].mxu0 %v234
      %v1275 = vpop.f32.mrb[0].mxu0
      %v1276 = vadd.f32 %v891, %v1275
      %v1277 = vpop.f32.mrb[0].mxu0
      %1278 = vmatprep.mubr.f32.mxu0 %v240
      %1279 = vmatmul.mubr.f32.gmra.mrb[0].mxu0 %v239
      %v1280 = vpop.f32.mrb[0].mxu0
      %v1281 = vadd.f32 %v896, %v1280
      %v1282 = vpop.f32.mrb[0].mxu0
      %1283 = vmatprep.mubr.f32.mxu0 %v245
      %1284 = vmatmul.mubr.f32.gmra.mrb[0].mxu0 %v244
      %v1285 = vpop.f32.mrb[0].mxu0
      %v1286 = vadd.f32 %v901, %v1285
      %v1287 = vpop.f32.mrb[0].mxu0
      %1288 = vmatprep.mubr.f32.mxu0 %v250
      %1289 = vmatmul.mubr.f32.gmra.mrb[0].mxu0 %v249
      %v1290 = vpop.f32.mrb[0].mxu0
      %v1291 = vadd.f32 %v906, %v1290
      %v1292 = vpop.f32.mrb[0].mxu0
      %1293 = vmatprep.mubr.f32.mxu0 %v255
      %1294 = vmatmul.mubr.f32.gmra.mrb[0].mxu0 %v254
      %v1295 = vpop.f32.mrb[0].mxu0
      %v1296 = vadd.f32 %v911, %v1295
      %v1297 = vpop.f32.mrb[0].mxu0
      %1298 = vmatprep.mubr.f32.mxu0 %v260
      %1299 = vmatmul.mubr.f32.gmra.mrb[0].mxu0 %v259
      %v1300 = vpop.f32.mrb[0].mxu0
      %v1301 = vadd.f32 %v916, %v1300
      %v1302 = vpop.f32.mrb[0].mxu0
      %1303 = vmatprep.mubr.f32.mxu0 %v265
      %1304 = vmatmul.mubr.f32.gmra.mrb[0].mxu0 %v264
      %v1305 = vpop.f32.mrb[0].mxu0
      %v1306 = vadd.f32 %v921, %v1305
      %v1307 = vpop.f32.mrb[0].mxu0
      %1308 = vmatprep.mubr.f32.mxu0 %v270
      %1309 = vmatmul.mubr.f32.gmra.mrb[0].mxu0 %v269
      %v1310 = vpop.f32.mrb[0].mxu0
      %v1311 = vadd.f32 %v926, %v1310
      %v1312 = vpop.f32.mrb[0].mxu0
      %1313 = vmatprep.mubr.f32.mxu0 %v275
      %1314 = vmatmul.mubr.f32.gmra.mrb[0].mxu0 %v274
      %v1315 = vpop.f32.mrb[0].mxu0
      %v1316 = vadd.f32 %v931, %v1315
      %v1317 = vpop.f32.mrb[0].mxu0
      %1318 = vmatprep.mubr.f32.mxu0 %v280
      %1319 = vmatmul.mubr.f32.gmra.mrb[0].mxu0 %v279
      %v1320 = vpop.f32.mrb[0].mxu0
      %v1321 = vadd.f32 %v936, %v1320
      %v1322 = vpop.f32.mrb[0].mxu0
      %1323 = vmatprep.mubr.f32.mxu0 %v285
      %1324 = vmatmul.mubr.f32.gmra.mrb[0].mxu0 %v284
      %v1325 = vpop.f32.mrb[0].mxu0
      %v1326 = vadd.f32 %v941, %v1325
      %v1327 = vpop.f32.mrb[0].mxu0
      %1328 = vmatprep.mubr.f32.mxu0 %v290
      %1329 = vmatmul.mubr.f32.gmra.mrb[0].mxu0 %v289
      %v1330 = vpop.f32.mrb[0].mxu0
      %v1331 = vadd.f32 %v946, %v1330
      %v1332 = vpop.f32.mrb[0].mxu0
      %1333 = vmatprep.mubr.f32.mxu0 %v295
      %1334 = vmatmul.mubr.f32.gmra.mrb[0].mxu0 %v294
      %v1335 = vpop.f32.mrb[0].mxu0
      %v1336 = vadd.f32 %v951, %v1335
      %v1337 = vpop.f32.mrb[0].mxu0
      %1338 = vmatprep.mubr.f32.mxu0 %v300
      %1339 = vmatmul.mubr.f32.gmra.mrb[0].mxu0 %v299
      %v1340 = vpop.f32.mrb[0].mxu0
      %v1341 = vadd.f32 %v956, %v1340
      %v1342 = vpop.f32.mrb[0].mxu0
      %1343 = vmatprep.mubr.f32.mxu0 %v305
      %1344 = vmatmul.mubr.f32.gmra.mrb[0].mxu0 %v304
      %v1345 = vpop.f32.mrb[0].mxu0
      %v1346 = vadd.f32 %v961, %v1345
      %v1347 = vpop.f32.mrb[0].mxu0
      %1348 = vmatprep.mubr.f32.mxu0 %v310
      %1349 = vmatmul.mubr.f32.gmra.mrb[0].mxu0 %v309
      %v1350 = vpop.f32.mrb[0].mxu0
      %v1351 = vadd.f32 %v966, %v1350
      %v1352 = vpop.f32.mrb[0].mxu0
      %1353 = vmatprep.mubr.f32.mxu0 %v315
      %1354 = vmatmul.mubr.f32.gmra.mrb[0].mxu0 %v314
      %v1355 = vpop.f32.mrb[0].mxu0
      %v1356 = vadd.f32 %v971, %v1355
      %v1357 = vpop.f32.mrb[0].mxu0
      %1358 = vmatprep.mubr.f32.mxu0 %v320
      %1359 = vmatmul.mubr.f32.gmra.mrb[0].mxu0 %v319
      %v1360 = vpop.f32.mrb[0].mxu0
      %v1361 = vadd.f32 %v976, %v1360
      %v1362 = vpop.f32.mrb[0].mxu0
      %1363 = vmatprep.mubr.f32.mxu0 %v325
      %1364 = vmatmul.mubr.f32.gmra.mrb[0].mxu0 %v324
      %v1365 = vpop.f32.mrb[0].mxu0
      %v1366 = vadd.f32 %v981, %v1365
      %v1367 = vpop.f32.mrb[0].mxu0
      %1368 = vmatprep.mubr.f32.mxu0 %v330
      %1369 = vmatmul.mubr.f32.gmra.mrb[0].mxu0 %v329
      %v1370 = vpop.f32.mrb[0].mxu0
      %v1371 = vadd.f32 %v986, %v1370
      %v1372 = vpop.f32.mrb[0].mxu0
      %1373 = vmatprep.mubr.f32.mxu0 %v335
      %1374 = vmatmul.mubr.f32.gmra.mrb[0].mxu0 %v334
      %v1375 = vpop.f32.mrb[0].mxu0
      %v1376 = vadd.f32 %v991, %v1375
      %v1377 = vpop.f32.mrb[0].mxu0
      %1378 = vmatprep.mubr.f32.mxu0 %v340
      %1379 = vmatmul.mubr.f32.gmra.mrb[0].mxu0 %v339
      %v1380 = vpop.f32.mrb[0].mxu0
      %v1381 = vadd.f32 %v996, %v1380
      %v1382 = vpop.f32.mrb[0].mxu0
      %1383 = vmatprep.mubr.f32.mxu0 %v345
      %1384 = vmatmul.mubr.f32.gmra.mrb[0].mxu0 %v344
      %v1385 = vpop.f32.mrb[0].mxu0
      %v1386 = vadd.f32 %v1001, %v1385
      %v1387 = vpop.f32.mrb[0].mxu0
      %1388 = vmatprep.mubr.f32.mxu0 %v350
      %1389 = vmatmul.mubr.f32.gmra.mrb[0].mxu0 %v349
      %v1390 = vpop.f32.mrb[0].mxu0
      %v1391 = vadd.f32 %v1006, %v1390
      %v1392 = vpop.f32.mrb[0].mxu0
      %1393 = vmatprep.mubr.f32.mxu0 %v355
      %1394 = vmatmul.mubr.f32.gmra.mrb[0].mxu0 %v354
      %v1395 = vpop.f32.mrb[0].mxu0
      %v1396 = vadd.f32 %v1011, %v1395
      %v1397 = vpop.f32.mrb[0].mxu0
      %1398 = vmatprep.mubr.f32.mxu0 %v360
      %1399 = vmatmul.mubr.f32.gmra.mrb[0].mxu0 %v359
      %v1400 = vpop.f32.mrb[0].mxu0
      %v1401 = vadd.f32 %v1016, %v1400
      %v1402 = vpop.f32.mrb[0].mxu0
      %1403 = vmatprep.mubr.f32.mxu0 %v365
      %1404 = vmatmul.mubr.f32.gmra.mrb[0].mxu0 %v364
      %v1405 = vpop.f32.mrb[0].mxu0
      %v1406 = vadd.f32 %v1021, %v1405
      %v1407 = vpop.f32.mrb[0].mxu0
      %1408 = vmatprep.mubr.f32.mxu0 %v370
      %1409 = vmatmul.mubr.f32.gmra.mrb[0].mxu0 %v369
      %v1410 = vpop.f32.mrb[0].mxu0
      %v1411 = vadd.f32 %v1026, %v1410
      %v1412 = vpop.f32.mrb[0].mxu0
      %1413 = vmatprep.mubr.f32.mxu0 %v375
      %1414 = vmatmul.mubr.f32.gmra.mrb[0].mxu0 %v374
      %v1415 = vpop.f32.mrb[0].mxu0
      %v1416 = vadd.f32 %v1031, %v1415
      %v1417 = vpop.f32.mrb[0].mxu0
      %1418 = vmatprep.mubr.f32.mxu0 %v380
      %1419 = vmatmul.mubr.f32.gmra.mrb[0].mxu0 %v379
      %v1420 = vpop.f32.mrb[0].mxu0
      %v1421 = vadd.f32 %v1036, %v1420
      %v1422 = vpop.f32.mrb[0].mxu0
      %1423 = vmatprep.mubr.f32.mxu0 %v385
      %1424 = vmatmul.mubr.f32.gmra.mrb[0].mxu0 %v384
      %v1425 = vpop.f32.mrb[0].mxu0
      %v1426 = vadd.f32 %v1041, %v1425
      %v1427 = vpop.f32.mrb[0].mxu0
      %1428 = vmatprep.mubr.f32.mxu0 %v390
      %1429 = vmatmul.mubr.f32.gmra.mrb[0].mxu0 %v389
      %v1430 = vpop.f32.mrb[0].mxu0
      %v1431 = vadd.f32 %v1046, %v1430
      %v1432 = vpop.f32.mrb[0].mxu0
      %1433 = vmatprep.mubr.f32.mxu0 %v395
      %1434 = vmatmul.mubr.f32.gmra.mrb[0].mxu0 %v394
      %v1435 = vpop.f32.mrb[0].mxu0
      %v1436 = vadd.f32 %v1051, %v1435
      %v1437 = vpop.f32.mrb[0].mxu0
      %1438 = vmatprep.mubr.f32.mxu0 %v400
      %1439 = vmatmul.mubr.f32.gmra.mrb[0].mxu0 %v399
      %v1440 = vpop.f32.mrb[0].mxu0
      %v1441 = vadd.f32 %v1056, %v1440
      %v1442 = vpop.f32.mrb[0].mxu0
      %1443 = vmatprep.mubr.f32.mxu0 %v405
      %1444 = vmatmul.mubr.f32.gmra.mrb[0].mxu0 %v404
      %v1445 = vpop.f32.mrb[0].mxu0
      %v1446 = vadd.f32 %v1061, %v1445
      %v1447 = vpop.f32.mrb[0].mxu0
      %1448 = vmatprep.mubr.f32.mxu0 %v410
      %1449 = vmatmul.mubr.f32.gmra.mrb[0].mxu0 %v409
      %v1450 = vpop.f32.mrb[0].mxu0
      %v1451 = vadd.f32 %v1066, %v1450
      %v1452 = vpop.f32.mrb[0].mxu0
      %1453 = vmatprep.mubr.f32.mxu0 %v415
      %1454 = vmatmul.mubr.f32.gmra.mrb[0].mxu0 %v414
      %v1455 = vpop.f32.mrb[0].mxu0
      %v1456 = vadd.f32 %v1071, %v1455
      %v1457 = vpop.f32.mrb[0].mxu0
      %1458 = vmatprep.mubr.f32.mxu0 %v420
      %1459 = vmatmul.mubr.f32.gmra.mrb[0].mxu0 %v419
      %v1460 = vpop.f32.mrb[0].mxu0
      %v1461 = vadd.f32 %v1076, %v1460
      %v1462 = vpop.f32.mrb[0].mxu0
      %1463 = vmatprep.mubr.f32.mxu0 %v425
      %1464 = vmatmul.mubr.f32.gmra.mrb[0].mxu0 %v424
      %v1465 = vpop.f32.mrb[0].mxu0
      %v1466 = vadd.f32 %v1081, %v1465
      %v1467 = vpop.f32.mrb[0].mxu0
      %1468 = vmatprep.mubr.f32.mxu0 %v430
      %1469 = vmatmul.mubr.f32.gmra.mrb[0].mxu0 %v429
      %v1470 = vpop.f32.mrb[0].mxu0
      %v1471 = vadd.f32 %v1086, %v1470
      %v1472 = vpop.f32.mrb[0].mxu0
      %1473 = vmatprep.mubr.f32.mxu0 %v435
      %1474 = vmatmul.mubr.f32.gmra.mrb[0].mxu0 %v434
      %v1475 = vpop.f32.mrb[0].mxu0
      %v1476 = vadd.f32 %v1091, %v1475
      %v1477 = vpop.f32.mrb[0].mxu0
      %1478 = vmatprep.mubr.f32.mxu0 %v440
      %1479 = vmatmul.mubr.f32.gmra.mrb[0].mxu0 %v439
      %v1480 = vpop.f32.mrb[0].mxu0
      %v1481 = vadd.f32 %v1096, %v1480
      %v1482 = vpop.f32.mrb[0].mxu0
      %1483 = vmatprep.mubr.f32.mxu0 %v445
      %1484 = vmatmul.mubr.f32.gmra.mrb[0].mxu0 %v444
      %v1485 = vpop.f32.mrb[0].mxu0
      %v1486 = vadd.f32 %v1101, %v1485
      %v1487 = vpop.f32.mrb[0].mxu0
      %1488 = vmatprep.mubr.f32.mxu0 %v450
      %1489 = vmatmul.mubr.f32.gmra.mrb[0].mxu0 %v449
      %v1490 = vpop.f32.mrb[0].mxu0
      %v1491 = vadd.f32 %v1106, %v1490
      %v1492 = vpop.f32.mrb[0].mxu0
      %1493 = vmatprep.mubr.f32.mxu0 %v455
      %1494 = vmatmul.mubr.f32.gmra.mrb[0].mxu0 %v454
      %v1495 = vpop.f32.mrb[0].mxu0
      %v1496 = vadd.f32 %v1111, %v1495
      %v1497 = vpop.f32.mrb[0].mxu0
      %1498 = vmatprep.mubr.f32.mxu0 %v460
      %1499 = vmatmul.mubr.f32.gmra.mrb[0].mxu0 %v459
      %v1500 = vpop.f32.mrb[0].mxu0
      %v1501 = vadd.f32 %v1116, %v1500
      %v1502 = vpop.f32.mrb[0].mxu0
      %1503 = vmatprep.mubr.f32.mxu0 %v465
      %1504 = vmatmul.mubr.f32.gmra.mrb[0].mxu0 %v464
      %v1505 = vpop.f32.mrb[0].mxu0
      %v1506 = vadd.f32 %v1121, %v1505
      %v1507 = vpop.f32.mrb[0].mxu0
      %1508 = vmatprep.mubr.f32.mxu0 %v470
      %1509 = vmatmul.mubr.f32.gmra.mrb[0].mxu0 %v469
      %v1510 = vpop.f32.mrb[0].mxu0
      %v1511 = vadd.f32 %v1126, %v1510
      %v1512 = vpop.f32.mrb[0].mxu0
      %1513 = vmatprep.mubr.f32.mxu0 %v475
      %1514 = vmatmul.mubr.f32.gmra.mrb[0].mxu0 %v474
      %v1515 = vpop.f32.mrb[0].mxu0
      %v1516 = vadd.f32 %v1131, %v1515
      %v1517 = vpop.f32.mrb[0].mxu0
      %1518 = vmatprep.mubr.f32.mxu0 %v480
      %1519 = vmatmul.mubr.f32.gmra.mrb[0].mxu0 %v479
      %v1520 = vpop.f32.mrb[0].mxu0
      %v1521 = vadd.f32 %v1136, %v1520
      %v1522 = vpop.f32.mrb[0].mxu0
      %1523 = vmatprep.mubr.f32.mxu0 %v485
      %1524 = vmatmul.mubr.f32.gmra.mrb[0].mxu0 %v484
      %v1525 = vpop.f32.mrb[0].mxu0
      %v1526 = vadd.f32 %v1141, %v1525
      %v1527 = vpop.f32.mrb[0].mxu0
      %1528 = vmatprep.mubr.f32.mxu0 %v490
      %1529 = vmatmul.mubr.f32.gmra.mrb[0].mxu0 %v489
      %v1530 = vpop.f32.mrb[0].mxu0
      %v1531 = vadd.f32 %v1146, %v1530
      %v1532 = vpop.f32.mrb[0].mxu0
      %1533 = vmatprep.mubr.f32.mxu0 %v495
      %1534 = vmatmul.mubr.f32.gmra.mrb[0].mxu0 %v494
      %v1535 = vpop.f32.mrb[0].mxu0
      %v1536 = vadd.f32 %v1151, %v1535
      %v1537 = vpop.f32.mrb[0].mxu0
      %1538 = vdwg.mxu0
      %1539 = vmatprep.subr.mxu0 0.0
      %1540 = vmatpush1.msra.mxu0 %v561
      %1541 = vmatprep.subr.mxu0 0.0
      %1542 = vmatpush1.msra.mxu0 %v562
      %1543 = vmatprep.subr.mxu0 0.0
      %1544 = vmatpush1.msra.mxu0 %v563
      %1545 = vmatprep.subr.mxu0 0.0
      %1546 = vmatpush1.msra.mxu0 %v564
      %1547 = vmatprep.subr.mxu0 0.0
      %1548 = vmatpush1.msra.mxu0 %v565
      %1549 = vmatprep.subr.mxu0 0.0
      %1550 = vmatpush1.msra.mxu0 %v566
      %1551 = vmatprep.subr.mxu0 0.0
      %1552 = vmatpush1.msra.mxu0 %v567
      %1553 = vmatprep.subr.mxu0 0.0
      %1554 = vmatpush1.msra.mxu0 %v568
      %1555 = vmatprep.subr.mxu0 0.0
      %1556 = vmatpush1.msra.mxu0 0.0
      %1557 = vmatprep.subr.mxu0 0.0
      %1558 = vmatpush1.msra.mxu0 0.0
      %1559 = vmatprep.subr.mxu0 0.0
      %1560 = vmatpush1.msra.mxu0 0.0
      %1561 = vmatprep.subr.mxu0 0.0
      %1562 = vmatpush1.msra.mxu0 0.0
      %1563 = vmatprep.subr.mxu0 0.0
      %1564 = vmatpush1.msra.mxu0 0.0
      %1565 = vmatprep.subr.mxu0 0.0
      %1566 = vmatpush1.msra.mxu0 0.0
      %1567 = vmatprep.subr.mxu0 0.0
      %1568 = vmatpush1.msra.mxu0 0.0
      %1569 = vmatprep.subr.mxu0 0.0
      %1570 = vmatpush1.msra.mxu0 0.0
      %1571 = vmatprep.subr.mxu0 0.0
      %1572 = vmatpush1.msra.mxu0 0.0
      %1573 = vmatprep.subr.mxu0 0.0
      %1574 = vmatpush1.msra.mxu0 0.0
      %1575 = vmatprep.subr.mxu0 0.0
      %1576 = vmatpush1.msra.mxu0 0.0
      %1577 = vmatprep.subr.mxu0 0.0
      %1578 = vmatpush1.msra.mxu0 0.0
      %1579 = vmatprep.subr.mxu0 0.0
      %1580 = vmatpush1.msra.mxu0 0.0
      %1581 = vmatprep.subr.mxu0 0.0
      %1582 = vmatpush1.msra.mxu0 0.0
      %1583 = vmatprep.subr.mxu0 0.0
      %1584 = vmatpush1.msra.mxu0 0.0
      %1585 = vmatprep.subr.mxu0 0.0
      %1586 = vmatpush1.msra.mxu0 0.0
      %1587 = vmatprep.subr.mxu0 0.0
      %1588 = vmatpush1.msra.mxu0 0.0
      %1589 = vmatprep.subr.mxu0 0.0
      %1590 = vmatpush1.msra.mxu0 0.0
      %1591 = vmatprep.subr.mxu0 0.0
      %1592 = vmatpush1.msra.mxu0 0.0
      %1593 = vmatprep.subr.mxu0 0.0
      %1594 = vmatpush1.msra.mxu0 0.0
      %1595 = vmatprep.subr.mxu0 0.0
      %1596 = vmatpush1.msra.mxu0 0.0
      %1597 = vmatprep.subr.mxu0 0.0
      %1598 = vmatpush1.msra.mxu0 0.0
      %1599 = vmatprep.subr.mxu0 0.0
      %1600 = vmatpush1.msra.mxu0 0.0
      %1601 = vmatprep.subr.mxu0 0.0
      %1602 = vmatpush1.msra.mxu0 0.0
      %1603 = vmatprep.mubr.f32.mxu0 0.0
      %1604 = vmatmul.mubr.f32.gmra.mrb[0].mxu0 %v578
      %v1605 = vpop.f32.mrb[0].mxu0
      %v1606 = vadd.f32 %v1221, %v1605
      %v1607 = vpop.f32.mrb[0].mxu0
      %1608 = vmatprep.mubr.f32.mxu0 0.0
      %1609 = vmatmul.mubr.f32.gmra.mrb[0].mxu0 %v581
      %v1610 = vpop.f32.mrb[0].mxu0
      %v1611 = vadd.f32 %v1226, %v1610
      %v1612 = vpop.f32.mrb[0].mxu0
      %1613 = vmatprep.mubr.f32.mxu0 0.0
      %1614 = vmatmul.mubr.f32.gmra.mrb[0].mxu0 %v584
      %v1615 = vpop.f32.mrb[0].mxu0
      %v1616 = vadd.f32 %v1231, %v1615
      %v1617 = vpop.f32.mrb[0].mxu0
      %1618 = vmatprep.mubr.f32.mxu0 0.0
      %1619 = vmatmul.mubr.f32.gmra.mrb[0].mxu0 %v587
      %v1620 = vpop.f32.mrb[0].mxu0
      %v1621 = vadd.f32 %v1236, %v1620
      %v1622 = vpop.f32.mrb[0].mxu0
      %1623 = vmatprep.mubr.f32.mxu0 0.0
      %1624 = vmatmul.mubr.f32.gmra.mrb[0].mxu0 %v590
      %v1625 = vpop.f32.mrb[0].mxu0
      %v1626 = vadd.f32 %v1241, %v1625
      %v1627 = vpop.f32.mrb[0].mxu0
      %1628 = vmatprep.mubr.f32.mxu0 0.0
      %1629 = vmatmul.mubr.f32.gmra.mrb[0].mxu0 %v593
      %v1630 = vpop.f32.mrb[0].mxu0
      %v1631 = vadd.f32 %v1246, %v1630
      %v1632 = vpop.f32.mrb[0].mxu0
      %1633 = vmatprep.mubr.f32.mxu0 0.0
      %1634 = vmatmul.mubr.f32.gmra.mrb[0].mxu0 %v596
      %v1635 = vpop.f32.mrb[0].mxu0
      %v1636 = vadd.f32 %v1251, %v1635
      %v1637 = vpop.f32.mrb[0].mxu0
      %1638 = vmatprep.mubr.f32.mxu0 0.0
      %1639 = vmatmul.mubr.f32.gmra.mrb[0].mxu0 %v599
      %v1640 = vpop.f32.mrb[0].mxu0
      %v1641 = vadd.f32 %v1256, %v1640
      %v1642 = vpop.f32.mrb[0].mxu0
      %1643 = vmatprep.mubr.f32.mxu0 0.0
      %1644 = vmatmul.mubr.f32.gmra.mrb[0].mxu0 %v602
      %v1645 = vpop.f32.mrb[0].mxu0
      %v1646 = vadd.f32 %v1261, %v1645
      %v1647 = vpop.f32.mrb[0].mxu0
      %1648 = vmatprep.mubr.f32.mxu0 0.0
      %1649 = vmatmul.mubr.f32.gmra.mrb[0].mxu0 %v605
      %v1650 = vpop.f32.mrb[0].mxu0
      %v1651 = vadd.f32 %v1266, %v1650
      %v1652 = vpop.f32.mrb[0].mxu0
      %1653 = vmatprep.mubr.f32.mxu0 0.0
      %1654 = vmatmul.mubr.f32.gmra.mrb[0].mxu0 %v608
      %v1655 = vpop.f32.mrb[0].mxu0
      %v1656 = vadd.f32 %v1271, %v1655
      %v1657 = vpop.f32.mrb[0].mxu0
      %1658 = vmatprep.mubr.f32.mxu0 0.0
      %1659 = vmatmul.mubr.f32.gmra.mrb[0].mxu0 %v611
      %v1660 = vpop.f32.mrb[0].mxu0
      %v1661 = vadd.f32 %v1276, %v1660
      %v1662 = vpop.f32.mrb[0].mxu0
      %1663 = vmatprep.mubr.f32.mxu0 0.0
      %1664 = vmatmul.mubr.f32.gmra.mrb[0].mxu0 %v614
      %v1665 = vpop.f32.mrb[0].mxu0
      %v1666 = vadd.f32 %v1281, %v1665
      %v1667 = vpop.f32.mrb[0].mxu0
      %1668 = vmatprep.mubr.f32.mxu0 0.0
      %1669 = vmatmul.mubr.f32.gmra.mrb[0].mxu0 %v617
      %v1670 = vpop.f32.mrb[0].mxu0
      %v1671 = vadd.f32 %v1286, %v1670
      %v1672 = vpop.f32.mrb[0].mxu0
      %1673 = vmatprep.mubr.f32.mxu0 0.0
      %1674 = vmatmul.mubr.f32.gmra.mrb[0].mxu0 %v620
      %v1675 = vpop.f32.mrb[0].mxu0
      %v1676 = vadd.f32 %v1291, %v1675
      %v1677 = vpop.f32.mrb[0].mxu0
      %1678 = vmatprep.mubr.f32.mxu0 0.0
      %1679 = vmatmul.mubr.f32.gmra.mrb[0].mxu0 %v623
      %v1680 = vpop.f32.mrb[0].mxu0
      %v1681 = vadd.f32 %v1296, %v1680
      %v1682 = vpop.f32.mrb[0].mxu0
      %1683 = vmatprep.mubr.f32.mxu0 0.0
      %1684 = vmatmul.mubr.f32.gmra.mrb[0].mxu0 %v626
      %v1685 = vpop.f32.mrb[0].mxu0
      %v1686 = vadd.f32 %v1301, %v1685
      %v1687 = vpop.f32.mrb[0].mxu0
      %1688 = vmatprep.mubr.f32.mxu0 0.0
      %1689 = vmatmul.mubr.f32.gmra.mrb[0].mxu0 %v629
      %v1690 = vpop.f32.mrb[0].mxu0
      %v1691 = vadd.f32 %v1306, %v1690
      %v1692 = vpop.f32.mrb[0].mxu0
      %1693 = vmatprep.mubr.f32.mxu0 0.0
      %1694 = vmatmul.mubr.f32.gmra.mrb[0].mxu0 %v632
      %v1695 = vpop.f32.mrb[0].mxu0
      %v1696 = vadd.f32 %v1311, %v1695
      %v1697 = vpop.f32.mrb[0].mxu0
      %1698 = vmatprep.mubr.f32.mxu0 0.0
      %1699 = vmatmul.mubr.f32.gmra.mrb[0].mxu0 %v635
      %v1700 = vpop.f32.mrb[0].mxu0
      %v1701 = vadd.f32 %v1316, %v1700
      %v1702 = vpop.f32.mrb[0].mxu0
      %1703 = vmatprep.mubr.f32.mxu0 0.0
      %1704 = vmatmul.mubr.f32.gmra.mrb[0].mxu0 %v638
      %v1705 = vpop.f32.mrb[0].mxu0
      %v1706 = vadd.f32 %v1321, %v1705
      %v1707 = vpop.f32.mrb[0].mxu0
      %1708 = vmatprep.mubr.f32.mxu0 0.0
      %1709 = vmatmul.mubr.f32.gmra.mrb[0].mxu0 %v641
      %v1710 = vpop.f32.mrb[0].mxu0
      %v1711 = vadd.f32 %v1326, %v1710
      %v1712 = vpop.f32.mrb[0].mxu0
      %1713 = vmatprep.mubr.f32.mxu0 0.0
      %1714 = vmatmul.mubr.f32.gmra.mrb[0].mxu0 %v644
      %v1715 = vpop.f32.mrb[0].mxu0
      %v1716 = vadd.f32 %v1331, %v1715
      %v1717 = vpop.f32.mrb[0].mxu0
      %1718 = vmatprep.mubr.f32.mxu0 0.0
      %1719 = vmatmul.mubr.f32.gmra.mrb[0].mxu0 %v647
      %v1720 = vpop.f32.mrb[0].mxu0
      %v1721 = vadd.f32 %v1336, %v1720
      %v1722 = vpop.f32.mrb[0].mxu0
      %1723 = vmatprep.mubr.f32.mxu0 0.0
      %1724 = vmatmul.mubr.f32.gmra.mrb[0].mxu0 %v650
      %v1725 = vpop.f32.mrb[0].mxu0
      %v1726 = vadd.f32 %v1341, %v1725
      %v1727 = vpop.f32.mrb[0].mxu0
      %1728 = vmatprep.mubr.f32.mxu0 0.0
      %1729 = vmatmul.mubr.f32.gmra.mrb[0].mxu0 %v653
      %v1730 = vpop.f32.mrb[0].mxu0
      %v1731 = vadd.f32 %v1346, %v1730
      %v1732 = vpop.f32.mrb[0].mxu0
      %1733 = vmatprep.mubr.f32.mxu0 0.0
      %1734 = vmatmul.mubr.f32.gmra.mrb[0].mxu0 %v656
      %v1735 = vpop.f32.mrb[0].mxu0
      %v1736 = vadd.f32 %v1351, %v1735
      %v1737 = vpop.f32.mrb[0].mxu0
      %1738 = vmatprep.mubr.f32.mxu0 0.0
      %1739 = vmatmul.mubr.f32.gmra.mrb[0].mxu0 %v659
      %v1740 = vpop.f32.mrb[0].mxu0
      %v1741 = vadd.f32 %v1356, %v1740
      %v1742 = vpop.f32.mrb[0].mxu0
      %1743 = vmatprep.mubr.f32.mxu0 0.0
      %1744 = vmatmul.mubr.f32.gmra.mrb[0].mxu0 %v662
      %v1745 = vpop.f32.mrb[0].mxu0
      %v1746 = vadd.f32 %v1361, %v1745
      %v1747 = vpop.f32.mrb[0].mxu0
      %1748 = vmatprep.mubr.f32.mxu0 0.0
      %1749 = vmatmul.mubr.f32.gmra.mrb[0].mxu0 %v665
      %v1750 = vpop.f32.mrb[0].mxu0
      %v1751 = vadd.f32 %v1366, %v1750
      %v1752 = vpop.f32.mrb[0].mxu0
      %1753 = vmatprep.mubr.f32.mxu0 0.0
      %1754 = vmatmul.mubr.f32.gmra.mrb[0].mxu0 %v668
      %v1755 = vpop.f32.mrb[0].mxu0
      %v1756 = vadd.f32 %v1371, %v1755
      %v1757 = vpop.f32.mrb[0].mxu0
      %1758 = vmatprep.mubr.f32.mxu0 0.0
      %1759 = vmatmul.mubr.f32.gmra.mrb[0].mxu0 %v671
      %v1760 = vpop.f32.mrb[0].mxu0
      %v1761 = vadd.f32 %v1376, %v1760
      %v1762 = vpop.f32.mrb[0].mxu0
      %1763 = vmatprep.mubr.f32.mxu0 0.0
      %1764 = vmatmul.mubr.f32.gmra.mrb[0].mxu0 %v674
      %v1765 = vpop.f32.mrb[0].mxu0
      %v1766 = vadd.f32 %v1381, %v1765
      %v1767 = vpop.f32.mrb[0].mxu0
      %1768 = vmatprep.mubr.f32.mxu0 0.0
      %1769 = vmatmul.mubr.f32.gmra.mrb[0].mxu0 %v677
      %v1770 = vpop.f32.mrb[0].mxu0
      %v1771 = vadd.f32 %v1386, %v1770
      %v1772 = vpop.f32.mrb[0].mxu0
      %1773 = vmatprep.mubr.f32.mxu0 0.0
      %1774 = vmatmul.mubr.f32.gmra.mrb[0].mxu0 %v680
      %v1775 = vpop.f32.mrb[0].mxu0
      %v1776 = vadd.f32 %v1391, %v1775
      %v1777 = vpop.f32.mrb[0].mxu0
      %1778 = vmatprep.mubr.f32.mxu0 0.0
      %1779 = vmatmul.mubr.f32.gmra.mrb[0].mxu0 %v683
      %v1780 = vpop.f32.mrb[0].mxu0
      %v1781 = vadd.f32 %v1396, %v1780
      %v1782 = vpop.f32.mrb[0].mxu0
      %1783 = vmatprep.mubr.f32.mxu0 0.0
      %1784 = vmatmul.mubr.f32.gmra.mrb[0].mxu0 %v686
      %v1785 = vpop.f32.mrb[0].mxu0
      %v1786 = vadd.f32 %v1401, %v1785
      %v1787 = vpop.f32.mrb[0].mxu0
      %1788 = vmatprep.mubr.f32.mxu0 0.0
      %1789 = vmatmul.mubr.f32.gmra.mrb[0].mxu0 %v689
      %v1790 = vpop.f32.mrb[0].mxu0
      %v1791 = vadd.f32 %v1406, %v1790
      %v1792 = vpop.f32.mrb[0].mxu0
      %1793 = vmatprep.mubr.f32.mxu0 0.0
      %1794 = vmatmul.mubr.f32.gmra.mrb[0].mxu0 %v692
      %v1795 = vpop.f32.mrb[0].mxu0
      %v1796 = vadd.f32 %v1411, %v1795
      %v1797 = vpop.f32.mrb[0].mxu0
      %1798 = vmatprep.mubr.f32.mxu0 0.0
      %1799 = vmatmul.mubr.f32.gmra.mrb[0].mxu0 %v695
      %v1800 = vpop.f32.mrb[0].mxu0
      %v1801 = vadd.f32 %v1416, %v1800
      %v1802 = vpop.f32.mrb[0].mxu0
      %1803 = vmatprep.mubr.f32.mxu0 0.0
      %1804 = vmatmul.mubr.f32.gmra.mrb[0].mxu0 %v698
      %v1805 = vpop.f32.mrb[0].mxu0
      %v1806 = vadd.f32 %v1421, %v1805
      %v1807 = vpop.f32.mrb[0].mxu0
      %1808 = vmatprep.mubr.f32.mxu0 0.0
      %1809 = vmatmul.mubr.f32.gmra.mrb[0].mxu0 %v701
      %v1810 = vpop.f32.mrb[0].mxu0
      %v1811 = vadd.f32 %v1426, %v1810
      %v1812 = vpop.f32.mrb[0].mxu0
      %1813 = vmatprep.mubr.f32.mxu0 0.0
      %1814 = vmatmul.mubr.f32.gmra.mrb[0].mxu0 %v704
      %v1815 = vpop.f32.mrb[0].mxu0
      %v1816 = vadd.f32 %v1431, %v1815
      %v1817 = vpop.f32.mrb[0].mxu0
      %1818 = vmatprep.mubr.f32.mxu0 0.0
      %1819 = vmatmul.mubr.f32.gmra.mrb[0].mxu0 %v707
      %v1820 = vpop.f32.mrb[0].mxu0
      %v1821 = vadd.f32 %v1436, %v1820
      %v1822 = vpop.f32.mrb[0].mxu0
      %1823 = vmatprep.mubr.f32.mxu0 0.0
      %1824 = vmatmul.mubr.f32.gmra.mrb[0].mxu0 %v710
      %v1825 = vpop.f32.mrb[0].mxu0
      %v1826 = vadd.f32 %v1441, %v1825
      %v1827 = vpop.f32.mrb[0].mxu0
      %1828 = vmatprep.mubr.f32.mxu0 0.0
      %1829 = vmatmul.mubr.f32.gmra.mrb[0].mxu0 %v713
      %v1830 = vpop.f32.mrb[0].mxu0
      %v1831 = vadd.f32 %v1446, %v1830
      %v1832 = vpop.f32.mrb[0].mxu0
      %1833 = vmatprep.mubr.f32.mxu0 0.0
      %1834 = vmatmul.mubr.f32.gmra.mrb[0].mxu0 %v716
      %v1835 = vpop.f32.mrb[0].mxu0
      %v1836 = vadd.f32 %v1451, %v1835
      %v1837 = vpop.f32.mrb[0].mxu0
      %1838 = vmatprep.mubr.f32.mxu0 0.0
      %1839 = vmatmul.mubr.f32.gmra.mrb[0].mxu0 %v719
      %v1840 = vpop.f32.mrb[0].mxu0
      %v1841 = vadd.f32 %v1456, %v1840
      %v1842 = vpop.f32.mrb[0].mxu0
      %1843 = vmatprep.mubr.f32.mxu0 0.0
      %1844 = vmatmul.mubr.f32.gmra.mrb[0].mxu0 %v722
      %v1845 = vpop.f32.mrb[0].mxu0
      %v1846 = vadd.f32 %v1461, %v1845
      %v1847 = vpop.f32.mrb[0].mxu0
      %1848 = vmatprep.mubr.f32.mxu0 0.0
      %1849 = vmatmul.mubr.f32.gmra.mrb[0].mxu0 %v725
      %v1850 = vpop.f32.mrb[0].mxu0
      %v1851 = vadd.f32 %v1466, %v1850
      %v1852 = vpop.f32.mrb[0].mxu0
      %1853 = vmatprep.mubr.f32.mxu0 0.0
      %1854 = vmatmul.mubr.f32.gmra.mrb[0].mxu0 %v728
      %v1855 = vpop.f32.mrb[0].mxu0
      %v1856 = vadd.f32 %v1471, %v1855
      %v1857 = vpop.f32.mrb[0].mxu0
      %1858 = vmatprep.mubr.f32.mxu0 0.0
      %1859 = vmatmul.mubr.f32.gmra.mrb[0].mxu0 %v731
      %v1860 = vpop.f32.mrb[0].mxu0
      %v1861 = vadd.f32 %v1476, %v1860
      %v1862 = vpop.f32.mrb[0].mxu0
      %1863 = vmatprep.mubr.f32.mxu0 0.0
      %1864 = vmatmul.mubr.f32.gmra.mrb[0].mxu0 %v734
      %v1865 = vpop.f32.mrb[0].mxu0
      %v1866 = vadd.f32 %v1481, %v1865
      %v1867 = vpop.f32.mrb[0].mxu0
      %1868 = vmatprep.mubr.f32.mxu0 0.0
      %1869 = vmatmul.mubr.f32.gmra.mrb[0].mxu0 %v737
      %v1870 = vpop.f32.mrb[0].mxu0
      %v1871 = vadd.f32 %v1486, %v1870
      %v1872 = vpop.f32.mrb[0].mxu0
      %1873 = vmatprep.mubr.f32.mxu0 0.0
      %1874 = vmatmul.mubr.f32.gmra.mrb[0].mxu0 %v740
      %v1875 = vpop.f32.mrb[0].mxu0
      %v1876 = vadd.f32 %v1491, %v1875
      %v1877 = vpop.f32.mrb[0].mxu0
      %1878 = vmatprep.mubr.f32.mxu0 0.0
      %1879 = vmatmul.mubr.f32.gmra.mrb[0].mxu0 %v743
      %v1880 = vpop.f32.mrb[0].mxu0
      %v1881 = vadd.f32 %v1496, %v1880
      %v1882 = vpop.f32.mrb[0].mxu0
      %1883 = vmatprep.mubr.f32.mxu0 0.0
      %1884 = vmatmul.mubr.f32.gmra.mrb[0].mxu0 %v746
      %v1885 = vpop.f32.mrb[0].mxu0
      %v1886 = vadd.f32 %v1501, %v1885
      %v1887 = vpop.f32.mrb[0].mxu0
      %1888 = vmatprep.mubr.f32.mxu0 0.0
      %1889 = vmatmul.mubr.f32.gmra.mrb[0].mxu0 %v749
      %v1890 = vpop.f32.mrb[0].mxu0
      %v1891 = vadd.f32 %v1506, %v1890
      %v1892 = vpop.f32.mrb[0].mxu0
      %1893 = vmatprep.mubr.f32.mxu0 0.0
      %1894 = vmatmul.mubr.f32.gmra.mrb[0].mxu0 %v752
      %v1895 = vpop.f32.mrb[0].mxu0
      %v1896 = vadd.f32 %v1511, %v1895
      %v1897 = vpop.f32.mrb[0].mxu0
      %1898 = vmatprep.mubr.f32.mxu0 0.0
      %1899 = vmatmul.mubr.f32.gmra.mrb[0].mxu0 %v755
      %v1900 = vpop.f32.mrb[0].mxu0
      %v1901 = vadd.f32 %v1516, %v1900
      %v1902 = vpop.f32.mrb[0].mxu0
      %1903 = vmatprep.mubr.f32.mxu0 0.0
      %1904 = vmatmul.mubr.f32.gmra.mrb[0].mxu0 %v758
      %v1905 = vpop.f32.mrb[0].mxu0
      %v1906 = vadd.f32 %v1521, %v1905
      %v1907 = vpop.f32.mrb[0].mxu0
      %1908 = vmatprep.mubr.f32.mxu0 0.0
      %1909 = vmatmul.mubr.f32.gmra.mrb[0].mxu0 %v761
      %v1910 = vpop.f32.mrb[0].mxu0
      %v1911 = vadd.f32 %v1526, %v1910
      %v1912 = vpop.f32.mrb[0].mxu0
      %1913 = vmatprep.mubr.f32.mxu0 0.0
      %1914 = vmatmul.mubr.f32.gmra.mrb[0].mxu0 %v764
      %v1915 = vpop.f32.mrb[0].mxu0
      %v1916 = vadd.f32 %v1531, %v1915
      %v1917 = vpop.f32.mrb[0].mxu0
      %1918 = vmatprep.mubr.f32.mxu0 0.0
      %1919 = vmatmul.mubr.f32.gmra.mrb[0].mxu0 %v767
      %v1920 = vpop.f32.mrb[0].mxu0
      %v1921 = vadd.f32 %v1536, %v1920
      %v1922 = vpop.f32.mrb[0].mxu0
      %1923 = vdwg.mxu0
      %v1924 = vmax.f32 %v1606, 0.0
      %v1925 = vmax.f32 %v1611, 0.0
      %v1926 = vmax.f32 %v1616, 0.0
      %v1927 = vmax.f32 %v1621, 0.0
      %v1928 = vmax.f32 %v1626, 0.0
      %v1929 = vmax.f32 %v1631, 0.0
      %v1930 = vmax.f32 %v1636, 0.0
      %v1931 = vmax.f32 %v1641, 0.0
      %v1932 = vmax.f32 %v1646, 0.0
      %v1933 = vmax.f32 %v1651, 0.0
      %v1934 = vmax.f32 %v1656, 0.0
      %v1935 = vmax.f32 %v1661, 0.0
      %v1936 = vmax.f32 %v1666, 0.0
      %v1937 = vmax.f32 %v1671, 0.0
      %v1938 = vmax.f32 %v1676, 0.0
      %v1939 = vmax.f32 %v1681, 0.0
      %v1940 = vmax.f32 %v1686, 0.0
      %v1941 = vmax.f32 %v1691, 0.0
      %v1942 = vmax.f32 %v1696, 0.0
      %v1943 = vmax.f32 %v1701, 0.0
      %v1944 = vmax.f32 %v1706, 0.0
      %v1945 = vmax.f32 %v1711, 0.0
      %v1946 = vmax.f32 %v1716, 0.0
      %v1947 = vmax.f32 %v1721, 0.0
      %v1948 = vmax.f32 %v1726, 0.0
      %v1949 = vmax.f32 %v1731, 0.0
      %v1950 = vmax.f32 %v1736, 0.0
      %v1951 = vmax.f32 %v1741, 0.0
      %v1952 = vmax.f32 %v1746, 0.0
      %v1953 = vmax.f32 %v1751, 0.0
      %v1954 = vmax.f32 %v1756, 0.0
      %v1955 = vmax.f32 %v1761, 0.0
      %v1956 = vmax.f32 %v1766, 0.0
      %v1957 = vmax.f32 %v1771, 0.0
      %v1958 = vmax.f32 %v1776, 0.0
      %v1959 = vmax.f32 %v1781, 0.0
      %v1960 = vmax.f32 %v1786, 0.0
      %v1961 = vmax.f32 %v1791, 0.0
      %v1962 = vmax.f32 %v1796, 0.0
      %v1963 = vmax.f32 %v1801, 0.0
      %v1964 = vmax.f32 %v1806, 0.0
      %v1965 = vmax.f32 %v1811, 0.0
      %v1966 = vmax.f32 %v1816, 0.0
      %v1967 = vmax.f32 %v1821, 0.0
      %v1968 = vmax.f32 %v1826, 0.0
      %v1969 = vmax.f32 %v1831, 0.0
      %v1970 = vmax.f32 %v1836, 0.0
      %v1971 = vmax.f32 %v1841, 0.0
      %v1972 = vmax.f32 %v1846, 0.0
      %v1973 = vmax.f32 %v1851, 0.0
      %v1974 = vmax.f32 %v1856, 0.0
      %v1975 = vmax.f32 %v1861, 0.0
      %v1976 = vmax.f32 %v1866, 0.0
      %v1977 = vmax.f32 %v1871, 0.0
      %v1978 = vmax.f32 %v1876, 0.0
      %v1979 = vmax.f32 %v1881, 0.0
      %v1980 = vmax.f32 %v1886, 0.0
      %v1981 = vmax.f32 %v1891, 0.0
      %v1982 = vmax.f32 %v1896, 0.0
      %v1983 = vmax.f32 %v1901, 0.0
      %v1984 = vmax.f32 %v1906, 0.0
      %v1985 = vmax.f32 %v1911, 0.0
      %v1986 = vmax.f32 %v1916, 0.0
      %v1987 = vmax.f32 %v1921, 0.0
      %1988 = vst.msk [vmem:[%s175] sm:$0xff] %vm576, %v1924
      %1989 = vst.msk [vmem:[%s175 + $0x8] sm:$0xff] %vm576, %v1925
      %1990 = vst.msk [vmem:[%s175 + $0x10] sm:$0xff] %vm576, %v1926
      %1991 = vst.msk [vmem:[%s175 + $0x18] sm:$0xff] %vm576, %v1927
      %1992 = vst.msk [vmem:[%s175 + $0x20] sm:$0xff] %vm576, %v1928
      %1993 = vst.msk [vmem:[%s175 + $0x28] sm:$0xff] %vm576, %v1929
      %1994 = vst.msk [vmem:[%s175 + $0x30] sm:$0xff] %vm576, %v1930
      %1995 = vst.msk [vmem:[%s175 + $0x38] sm:$0xff] %vm576, %v1931
      %1996 = vst.msk [vmem:[%s175 + $0x40] sm:$0xff] %vm576, %v1932
      %1997 = vst.msk [vmem:[%s175 + $0x48] sm:$0xff] %vm576, %v1933
      %1998 = vst.msk [vmem:[%s175 + $0x50] sm:$0xff] %vm576, %v1934
      %1999 = vst.msk [vmem:[%s175 + $0x58] sm:$0xff] %vm576, %v1935
      %2000 = vst.msk [vmem:[%s175 + $0x60] sm:$0xff] %vm576, %v1936
      %2001 = vst.msk [vmem:[%s175 + $0x68] sm:$0xff] %vm576, %v1937
      %2002 = vst.msk [vmem:[%s175 + $0x70] sm:$0xff] %vm576, %v1938
      %2003 = vst.msk [vmem:[%s175 + $0x78] sm:$0xff] %vm576, %v1939
      %2004 = vst.msk [vmem:[%s175 + $0x80] sm:$0xff] %vm576, %v1940
      %2005 = vst.msk [vmem:[%s175 + $0x88] sm:$0xff] %vm576, %v1941
      %2006 = vst.msk [vmem:[%s175 + $0x90] sm:$0xff] %vm576, %v1942
      %2007 = vst.msk [vmem:[%s175 + $0x98] sm:$0xff] %vm576, %v1943
      %2008 = vst.msk [vmem:[%s175 + $0xa0] sm:$0xff] %vm576, %v1944
      %2009 = vst.msk [vmem:[%s175 + $0xa8] sm:$0xff] %vm576, %v1945
      %2010 = vst.msk [vmem:[%s175 + $0xb0] sm:$0xff] %vm576, %v1946
      %2011 = vst.msk [vmem:[%s175 + $0xb8] sm:$0xff] %vm576, %v1947
      %2012 = vst.msk [vmem:[%s175 + $0xc0] sm:$0xff] %vm576, %v1948
      %2013 = vst.msk [vmem:[%s175 + $0xc8] sm:$0xff] %vm576, %v1949
      %2014 = vst.msk [vmem:[%s175 + $0xd0] sm:$0xff] %vm576, %v1950
      %2015 = vst.msk [vmem:[%s175 + $0xd8] sm:$0xff] %vm576, %v1951
      %2016 = vst.msk [vmem:[%s175 + $0xe0] sm:$0xff] %vm576, %v1952
      %2017 = vst.msk [vmem:[%s175 + $0xe8] sm:$0xff] %vm576, %v1953
      %2018 = vst.msk [vmem:[%s175 + $0xf0] sm:$0xff] %vm576, %v1954
      %2019 = vst.msk [vmem:[%s175 + $0xf8] sm:$0xff] %vm576, %v1955
      %2020 = vst.msk [vmem:[%s175 + $0x100] sm:$0xff] %vm576, %v1956
      %2021 = vst.msk [vmem:[%s175 + $0x108] sm:$0xff] %vm576, %v1957
      %2022 = vst.msk [vmem:[%s175 + $0x110] sm:$0xff] %vm576, %v1958
      %2023 = vst.msk [vmem:[%s175 + $0x118] sm:$0xff] %vm576, %v1959
      %2024 = vst.msk [vmem:[%s175 + $0x120] sm:$0xff] %vm576, %v1960
      %2025 = vst.msk [vmem:[%s175 + $0x128] sm:$0xff] %vm576, %v1961
      %2026 = vst.msk [vmem:[%s175 + $0x130] sm:$0xff] %vm576, %v1962
      %2027 = vst.msk [vmem:[%s175 + $0x138] sm:$0xff] %vm576, %v1963
      %2028 = vst.msk [vmem:[%s175 + $0x140] sm:$0xff] %vm576, %v1964
      %2029 = vst.msk [vmem:[%s175 + $0x148] sm:$0xff] %vm576, %v1965
      %2030 = vst.msk [vmem:[%s175 + $0x150] sm:$0xff] %vm576, %v1966
      %2031 = vst.msk [vmem:[%s175 + $0x158] sm:$0xff] %vm576, %v1967
      %2032 = vst.msk [vmem:[%s175 + $0x160] sm:$0xff] %vm576, %v1968
      %2033 = vst.msk [vmem:[%s175 + $0x168] sm:$0xff] %vm576, %v1969
      %2034 = vst.msk [vmem:[%s175 + $0x170] sm:$0xff] %vm576, %v1970
      %2035 = vst.msk [vmem:[%s175 + $0x178] sm:$0xff] %vm576, %v1971
      %2036 = vst.msk [vmem:[%s175 + $0x180] sm:$0xff] %vm576, %v1972
      %2037 = vst.msk [vmem:[%s175 + $0x188] sm:$0xff] %vm576, %v1973
      %2038 = vst.msk [vmem:[%s175 + $0x190] sm:$0xff] %vm576, %v1974
      %2039 = vst.msk [vmem:[%s175 + $0x198] sm:$0xff] %vm576, %v1975
      %2040 = vst.msk [vmem:[%s175 + $0x1a0] sm:$0xff] %vm576, %v1976
      %2041 = vst.msk [vmem:[%s175 + $0x1a8] sm:$0xff] %vm576, %v1977
      %2042 = vst.msk [vmem:[%s175 + $0x1b0] sm:$0xff] %vm576, %v1978
      %2043 = vst.msk [vmem:[%s175 + $0x1b8] sm:$0xff] %vm576, %v1979
      %2044 = vst.msk [vmem:[%s175 + $0x1c0] sm:$0xff] %vm576, %v1980
      %2045 = vst.msk [vmem:[%s175 + $0x1c8] sm:$0xff] %vm576, %v1981
      %2046 = vst.msk [vmem:[%s175 + $0x1d0] sm:$0xff] %vm576, %v1982
      %2047 = vst.msk [vmem:[%s175 + $0x1d8] sm:$0xff] %vm576, %v1983
      %2048 = vst.msk [vmem:[%s175 + $0x1e0] sm:$0xff] %vm576, %v1984
      %2049 = vst.msk [vmem:[%s175 + $0x1e8] sm:$0xff] %vm576, %v1985
      %2050 = vst.msk [vmem:[%s175 + $0x1f0] sm:$0xff] %vm576, %v1986
      %2051 = vst.msk [vmem:[%s175 + $0x1f8] sm:$0xff] %vm576, %v1987
      %s2052 = smul.u32 64, %s14
      %p2053 = scmp.lt.s32.totalorder %s2052, 191
      %s2054 = scalar_select %p2053, %s2052, 191
      %s2055 = smul.addr %s2054, 8
      %s2056 = scalar_lea.vmem %s3, %s2055
      // Predicated region
      $region33: #{_lambda_.8} parent=31 // pred_check
        %p2057 = pneg %p100
      $region34: #{_lambda_.8} parent=31 // pred_check_branch
        %2059 = sbr.rel (%p2057) target = $region36
      $region35: #{_lambda_.8} parent=31 // pred_region
        %s2060 = smul.u32 64, %s14
      $region36: #{_lambda_.8} parent=31 // pred_fallthru
        _
    $region32: #{_lambda_.8} parent=5 // pred_fallthru
      _
    %p2061 = scmp.le.s32.totalorder 2, %s9
    // Predicated region
    $region37: #{_lambda_.8} parent=5 // pred_check
      %p2062 = pneg %p2061
    $region38: #{_lambda_.8} parent=5 // pred_check_branch
      %2064 = sbr.rel (%p2062) target = $region40
    $region39: #{_lambda_.8} parent=5 // pred_region
      %s2065 = ssub.s32 %s9, 2
      // Predicated region
      $region41: #{_lambda_.8} parent=39 // pred_check
        %p2066 = pneg %p106
      $region42: #{_lambda_.8} parent=39 // pred_check_branch
        %2068 = sbr.rel (%p2066) target = $region44
      $region43: #{_lambda_.8} parent=39 // pred_region
        %s2069 = smul.u32 64, %s15
        %p2070 = scmp.lt.s32.totalorder %s2069, 191
        %s2071 = scalar_select %p2070, %s2069, 191
        %s2072 = smul.addr %s2071, 8
        %s2073 = scalar_lea.vmem %s3, %s2072
      $region44: #{_lambda_.8} parent=39 // pred_fallthru
        _
    $region40: #{_lambda_.8} parent=5 // pred_fallthru
      _
  $region6: #{_lambda_.8} parent=0 // loop_footer
    %s13 = sadd.s32 1, %s9
  $region7: #{_lambda_.8} parent=0 // loop_footer_branch
    %8 = sbr.rel target = $region3
  $region8: #{_lambda_.8} parent=0 // loop_exit
    _

// kernel: _lambda_.9
$region0: #{_lambda_.9}
  #allocation0 [shape = 'u32[]', space=smem, size = 0x4, offset = 0x4, fixed_abs, tag = 'smem constant byte address 0x4 - core index']
  #allocation1 [shape = 'u32[144,128]{1,0:T(1,128)}', space=vmem, size = 0x12000, scoped, tag = 'internal scratch']
  %s0 = inlined_call_operand.vmem [shape: f32[48,2,8,128], index: 0, kind: input, shape index: {}]
  %s1 = inlined_call_operand.vmem [shape: f32[48,8,64], index: 1, kind: output, shape index: {}]
  %s2 = sld [smem:[#allocation0]]
  $region14: #{_lambda_.9} parent=0
    _
  %s4 = ssub.s32 1, %s2
  %s5 = scalar_select 0, %s4, %s2
  // Predicated region
  $region2: #{_lambda_.9} parent=0 // pred_check
    _
  $region3: #{_lambda_.9} parent=0 // pred_check_branch
    %7 = sbr.rel (0) target = $region5
  $region4: #{_lambda_.9} parent=0 // pred_region
    _
  $region5: #{_lambda_.9} parent=0 // pred_fallthru
    _
  %v8 = vld [vmem:[%s0] sm:$0xff]
  %v9 = vld [vmem:[%s0 + $0x10] sm:$0xff]
  %v10 = vld [vmem:[%s0 + $0x20] sm:$0xff]
  %v11 = vld [vmem:[%s0 + $0x30] sm:$0xff]
  %v12 = vld [vmem:[%s0 + $0x40] sm:$0xff]
  %v13 = vld [vmem:[%s0 + $0x50] sm:$0xff]
  %v14 = vld [vmem:[%s0 + $0x60] sm:$0xff]
  %v15 = vld [vmem:[%s0 + $0x70] sm:$0xff]
  %v16 = vld [vmem:[%s0 + $0x80] sm:$0xff]
  %v17 = vld [vmem:[%s0 + $0x90] sm:$0xff]
  %v18 = vld [vmem:[%s0 + $0xa0] sm:$0xff]
  %v19 = vld [vmem:[%s0 + $0xb0] sm:$0xff]
  %v20 = vld [vmem:[%s0 + $0xc0] sm:$0xff]
  %v21 = vld [vmem:[%s0 + $0xd0] sm:$0xff]
  %v22 = vld [vmem:[%s0 + $0xe0] sm:$0xff]
  %v23 = vld [vmem:[%s0 + $0xf0] sm:$0xff]
  %v24 = vld [vmem:[%s0 + $0x100] sm:$0xff]
  %v25 = vld [vmem:[%s0 + $0x110] sm:$0xff]
  %v26 = vld [vmem:[%s0 + $0x120] sm:$0xff]
  %v27 = vld [vmem:[%s0 + $0x130] sm:$0xff]
  %v28 = vld [vmem:[%s0 + $0x140] sm:$0xff]
  %v29 = vld [vmem:[%s0 + $0x150] sm:$0xff]
  %v30 = vld [vmem:[%s0 + $0x160] sm:$0xff]
  %v31 = vld [vmem:[%s0 + $0x170] sm:$0xff]
  %v32 = vld [vmem:[%s0 + $0x180] sm:$0xff]
  %v33 = vld [vmem:[%s0 + $0x190] sm:$0xff]
  %v34 = vld [vmem:[%s0 + $0x1a0] sm:$0xff]
  %v35 = vld [vmem:[%s0 + $0x1b0] sm:$0xff]
  %v36 = vld [vmem:[%s0 + $0x1c0] sm:$0xff]
  %v37 = vld [vmem:[%s0 + $0x1d0] sm:$0xff]
  %v38 = vld [vmem:[%s0 + $0x1e0] sm:$0xff]
  %v39 = vld [vmem:[%s0 + $0x1f0] sm:$0xff]
  %v40 = vld [vmem:[%s0 + $0x200] sm:$0xff]
  %v41 = vld [vmem:[%s0 + $0x210] sm:$0xff]
  %v42 = vld [vmem:[%s0 + $0x220] sm:$0xff]
  %v43 = vld [vmem:[%s0 + $0x230] sm:$0xff]
  %v44 = vld [vmem:[%s0 + $0x240] sm:$0xff]
  %v45 = vld [vmem:[%s0 + $0x250] sm:$0xff]
  %v46 = vld [vmem:[%s0 + $0x260] sm:$0xff]
  %v47 = vld [vmem:[%s0 + $0x270] sm:$0xff]
  %v48 = vld [vmem:[%s0 + $0x280] sm:$0xff]
  %v49 = vld [vmem:[%s0 + $0x290] sm:$0xff]
  %v50 = vld [vmem:[%s0 + $0x2a0] sm:$0xff]
  %v51 = vld [vmem:[%s0 + $0x2b0] sm:$0xff]
  %v52 = vld [vmem:[%s0 + $0x2c0] sm:$0xff]
  %v53 = vld [vmem:[%s0 + $0x2d0] sm:$0xff]
  %v54 = vld [vmem:[%s0 + $0x2e0] sm:$0xff]
  %v55 = vld [vmem:[%s0 + $0x2f0] sm:$0xff]
  %s56 = scalar_lea.vmem %s0, 8
  %v57 = vld [vmem:[%s56] sm:$0xff]
  %v58 = vld [vmem:[%s56 + $0x10] sm:$0xff]
  %v59 = vld [vmem:[%s56 + $0x20] sm:$0xff]
  %v60 = vld [vmem:[%s56 + $0x30] sm:$0xff]
  %v61 = vld [vmem:[%s56 + $0x40] sm:$0xff]
  %v62 = vld [vmem:[%s56 + $0x50] sm:$0xff]
  %v63 = vld [vmem:[%s56 + $0x60] sm:$0xff]
  %v64 = vld [vmem:[%s56 + $0x70] sm:$0xff]
  %v65 = vld [vmem:[%s56 + $0x80] sm:$0xff]
  %v66 = vld [vmem:[%s56 + $0x90] sm:$0xff]
  %v67 = vld [vmem:[%s56 + $0xa0] sm:$0xff]
  %v68 = vld [vmem:[%s56 + $0xb0] sm:$0xff]
  %v69 = vld [vmem:[%s56 + $0xc0] sm:$0xff]
  %v70 = vld [vmem:[%s56 + $0xd0] sm:$0xff]
  %v71 = vld [vmem:[%s56 + $0xe0] sm:$0xff]
  %v72 = vld [vmem:[%s56 + $0xf0] sm:$0xff]
  %v73 = vld [vmem:[%s56 + $0x100] sm:$0xff]
  %v74 = vld [vmem:[%s56 + $0x110] sm:$0xff]
  %v75 = vld [vmem:[%s56 + $0x120] sm:$0xff]
  %v76 = vld [vmem:[%s56 + $0x130] sm:$0xff]
  %v77 = vld [vmem:[%s56 + $0x140] sm:$0xff]
  %v78 = vld [vmem:[%s56 + $0x150] sm:$0xff]
  %v79 = vld [vmem:[%s56 + $0x160] sm:$0xff]
  %v80 = vld [vmem:[%s56 + $0x170] sm:$0xff]
  %v81 = vld [vmem:[%s56 + $0x180] sm:$0xff]
  %v82 = vld [vmem:[%s56 + $0x190] sm:$0xff]
  %v83 = vld [vmem:[%s56 + $0x1a0] sm:$0xff]
  %v84 = vld [vmem:[%s56 + $0x1b0] sm:$0xff]
  %v85 = vld [vmem:[%s56 + $0x1c0] sm:$0xff]
  %v86 = vld [vmem:[%s56 + $0x1d0] sm:$0xff]
  %v87 = vld [vmem:[%s56 + $0x1e0] sm:$0xff]
  %v88 = vld [vmem:[%s56 + $0x1f0] sm:$0xff]
  %v89 = vld [vmem:[%s56 + $0x200] sm:$0xff]
  %v90 = vld [vmem:[%s56 + $0x210] sm:$0xff]
  %v91 = vld [vmem:[%s56 + $0x220] sm:$0xff]
  %v92 = vld [vmem:[%s56 + $0x230] sm:$0xff]
  %v93 = vld [vmem:[%s56 + $0x240] sm:$0xff]
  %v94 = vld [vmem:[%s56 + $0x250] sm:$0xff]
  %v95 = vld [vmem:[%s56 + $0x260] sm:$0xff]
  %v96 = vld [vmem:[%s56 + $0x270] sm:$0xff]
  %v97 = vld [vmem:[%s56 + $0x280] sm:$0xff]
  %v98 = vld [vmem:[%s56 + $0x290] sm:$0xff]
  %v99 = vld [vmem:[%s56 + $0x2a0] sm:$0xff]
  %v100 = vld [vmem:[%s56 + $0x2b0] sm:$0xff]
  %v101 = vld [vmem:[%s56 + $0x2c0] sm:$0xff]
  %v102 = vld [vmem:[%s56 + $0x2d0] sm:$0xff]
  %v103 = vld [vmem:[%s56 + $0x2e0] sm:$0xff]
  %v104 = vld [vmem:[%s56 + $0x2f0] sm:$0xff]
  %v105 = vmax.f32 %v8, %v57
  %v106 = vmax.f32 %v9, %v58
  %v107 = vmax.f32 %v10, %v59
  %v108 = vmax.f32 %v11, %v60
  %v109 = vmax.f32 %v12, %v61
  %v110 = vmax.f32 %v13, %v62
  %v111 = vmax.f32 %v14, %v63
  %v112 = vmax.f32 %v15, %v64
  %v113 = vmax.f32 %v16, %v65
  %v114 = vmax.f32 %v17, %v66
  %v115 = vmax.f32 %v18, %v67
  %v116 = vmax.f32 %v19, %v68
  %v117 = vmax.f32 %v20, %v69
  %v118 = vmax.f32 %v21, %v70
  %v119 = vmax.f32 %v22, %v71
  %v120 = vmax.f32 %v23, %v72
  %v121 = vmax.f32 %v24, %v73
  %v122 = vmax.f32 %v25, %v74
  %v123 = vmax.f32 %v26, %v75
  %v124 = vmax.f32 %v27, %v76
  %v125 = vmax.f32 %v28, %v77
  %v126 = vmax.f32 %v29, %v78
  %v127 = vmax.f32 %v30, %v79
  %v128 = vmax.f32 %v31, %v80
  %v129 = vmax.f32 %v32, %v81
  %v130 = vmax.f32 %v33, %v82
  %v131 = vmax.f32 %v34, %v83
  %v132 = vmax.f32 %v35, %v84
  %v133 = vmax.f32 %v36, %v85
  %v134 = vmax.f32 %v37, %v86
  %v135 = vmax.f32 %v38, %v87
  %v136 = vmax.f32 %v39, %v88
  %v137 = vmax.f32 %v40, %v89
  %v138 = vmax.f32 %v41, %v90
  %v139 = vmax.f32 %v42, %v91
  %v140 = vmax.f32 %v43, %v92
  %v141 = vmax.f32 %v44, %v93
  %v142 = vmax.f32 %v45, %v94
  %v143 = vmax.f32 %v46, %v95
  %v144 = vmax.f32 %v47, %v96
  %v145 = vmax.f32 %v48, %v97
  %v146 = vmax.f32 %v49, %v98
  %v147 = vmax.f32 %v50, %v99
  %v148 = vmax.f32 %v51, %v100
  %v149 = vmax.f32 %v52, %v101
  %v150 = vmax.f32 %v53, %v102
  %v151 = vmax.f32 %v54, %v103
  %v152 = vmax.f32 %v55, %v104
  %201 = vrot.lane.b32.xlu0 %v105, 64
  %v202 = vpop.permute.xlu0 %201
  %203 = vrot.lane.b32.xlu0 %v106, 64
  %v204 = vpop.permute.xlu0 %203
  %205 = vrot.lane.b32.xlu0 %v107, 64
  %v206 = vpop.permute.xlu0 %205
  %207 = vrot.lane.b32.xlu0 %v108, 64
  %v208 = vpop.permute.xlu0 %207
  %209 = vrot.lane.b32.xlu0 %v109, 64
  %v210 = vpop.permute.xlu0 %209
  %211 = vrot.lane.b32.xlu0 %v110, 64
  %v212 = vpop.permute.xlu0 %211
  %213 = vrot.lane.b32.xlu0 %v111, 64
  %v214 = vpop.permute.xlu0 %213
  %215 = vrot.lane.b32.xlu0 %v112, 64
  %v216 = vpop.permute.xlu0 %215
  %217 = vrot.lane.b32.xlu0 %v113, 64
  %v218 = vpop.permute.xlu0 %217
  %219 = vrot.lane.b32.xlu0 %v114, 64
  %v220 = vpop.permute.xlu0 %219
  %221 = vrot.lane.b32.xlu0 %v115, 64
  %v222 = vpop.permute.xlu0 %221
  %223 = vrot.lane.b32.xlu0 %v116, 64
  %v224 = vpop.permute.xlu0 %223
  %225 = vrot.lane.b32.xlu0 %v117, 64
  %v226 = vpop.permute.xlu0 %225
  %227 = vrot.lane.b32.xlu0 %v118, 64
  %v228 = vpop.permute.xlu0 %227
  %229 = vrot.lane.b32.xlu0 %v119, 64
  %v230 = vpop.permute.xlu0 %229
  %231 = vrot.lane.b32.xlu0 %v120, 64
  %v232 = vpop.permute.xlu0 %231
  %233 = vrot.lane.b32.xlu0 %v121, 64
  %v234 = vpop.permute.xlu0 %233
  %235 = vrot.lane.b32.xlu0 %v122, 64
  %v236 = vpop.permute.xlu0 %235
  %237 = vrot.lane.b32.xlu0 %v123, 64
  %v238 = vpop.permute.xlu0 %237
  %239 = vrot.lane.b32.xlu0 %v124, 64
  %v240 = vpop.permute.xlu0 %239
  %241 = vrot.lane.b32.xlu0 %v125, 64
  %v242 = vpop.permute.xlu0 %241
  %243 = vrot.lane.b32.xlu0 %v126, 64
  %v244 = vpop.permute.xlu0 %243
  %245 = vrot.lane.b32.xlu0 %v127, 64
  %v246 = vpop.permute.xlu0 %245
  %247 = vrot.lane.b32.xlu0 %v128, 64
  %v248 = vpop.permute.xlu0 %247
  %249 = vrot.lane.b32.xlu0 %v129, 64
  %v250 = vpop.permute.xlu0 %249
  %251 = vrot.lane.b32.xlu0 %v130, 64
  %v252 = vpop.permute.xlu0 %251
  %253 = vrot.lane.b32.xlu0 %v131, 64
  %v254 = vpop.permute.xlu0 %253
  %255 = vrot.lane.b32.xlu0 %v132, 64
  %v256 = vpop.permute.xlu0 %255
  %257 = vrot.lane.b32.xlu0 %v133, 64
  %v258 = vpop.permute.xlu0 %257
  %259 = vrot.lane.b32.xlu0 %v134, 64
  %v260 = vpop.permute.xlu0 %259
  %261 = vrot.lane.b32.xlu0 %v135, 64
  %v262 = vpop.permute.xlu0 %261
  %263 = vrot.lane.b32.xlu0 %v136, 64
  %v264 = vpop.permute.xlu0 %263
  %265 = vrot.lane.b32.xlu0 %v137, 64
  %v266 = vpop.permute.xlu0 %265
  %267 = vrot.lane.b32.xlu0 %v138, 64
  %v268 = vpop.permute.xlu0 %267
  %269 = vrot.lane.b32.xlu0 %v139, 64
  %v270 = vpop.permute.xlu0 %269
  %271 = vrot.lane.b32.xlu0 %v140, 64
  %v272 = vpop.permute.xlu0 %271
  %273 = vrot.lane.b32.xlu0 %v141, 64
  %v274 = vpop.permute.xlu0 %273
  %275 = vrot.lane.b32.xlu0 %v142, 64
  %v276 = vpop.permute.xlu0 %275
  %277 = vrot.lane.b32.xlu0 %v143, 64
  %v278 = vpop.permute.xlu0 %277
  %279 = vrot.lane.b32.xlu0 %v144, 64
  %v280 = vpop.permute.xlu0 %279
  %281 = vrot.lane.b32.xlu0 %v145, 64
  %v282 = vpop.permute.xlu0 %281
  %283 = vrot.lane.b32.xlu0 %v146, 64
  %v284 = vpop.permute.xlu0 %283
  %285 = vrot.lane.b32.xlu0 %v147, 64
  %v286 = vpop.permute.xlu0 %285
  %287 = vrot.lane.b32.xlu0 %v148, 64
  %v288 = vpop.permute.xlu0 %287
  %289 = vrot.lane.b32.xlu0 %v149, 64
  %v290 = vpop.permute.xlu0 %289
  %291 = vrot.lane.b32.xlu0 %v150, 64
  %v292 = vpop.permute.xlu0 %291
  %293 = vrot.lane.b32.xlu0 %v151, 64
  %v294 = vpop.permute.xlu0 %293
  %295 = vrot.lane.b32.xlu0 %v152, 64
  %v296 = vpop.permute.xlu0 %295
  %v345 = vmax.f32 %v105, %v202
  %v346 = vmax.f32 %v106, %v204
  %v347 = vmax.f32 %v107, %v206
  %v348 = vmax.f32 %v108, %v208
  %v349 = vmax.f32 %v109, %v210
  %v350 = vmax.f32 %v110, %v212
  %v351 = vmax.f32 %v111, %v214
  %v352 = vmax.f32 %v112, %v216
  %v353 = vmax.f32 %v113, %v218
  %v354 = vmax.f32 %v114, %v220
  %v355 = vmax.f32 %v115, %v222
  %v356 = vmax.f32 %v116, %v224
  %v357 = vmax.f32 %v117, %v226
  %v358 = vmax.f32 %v118, %v228
  %v359 = vmax.f32 %v119, %v230
  %v360 = vmax.f32 %v120, %v232
  %v361 = vmax.f32 %v121, %v234
  %v362 = vmax.f32 %v122, %v236
  %v363 = vmax.f32 %v123, %v238
  %v364 = vmax.f32 %v124, %v240
  %v365 = vmax.f32 %v125, %v242
  %v366 = vmax.f32 %v126, %v244
  %v367 = vmax.f32 %v127, %v246
  %v368 = vmax.f32 %v128, %v248
  %v369 = vmax.f32 %v129, %v250
  %v370 = vmax.f32 %v130, %v252
  %v371 = vmax.f32 %v131, %v254
  %v372 = vmax.f32 %v132, %v256
  %v373 = vmax.f32 %v133, %v258
  %v374 = vmax.f32 %v134, %v260
  %v375 = vmax.f32 %v135, %v262
  %v376 = vmax.f32 %v136, %v264
  %v377 = vmax.f32 %v137, %v266
  %v378 = vmax.f32 %v138, %v268
  %v379 = vmax.f32 %v139, %v270
  %v380 = vmax.f32 %v140, %v272
  %v381 = vmax.f32 %v141, %v274
  %v382 = vmax.f32 %v142, %v276
  %v383 = vmax.f32 %v143, %v278
  %v384 = vmax.f32 %v144, %v280
  %v385 = vmax.f32 %v145, %v282
  %v386 = vmax.f32 %v146, %v284
  %v387 = vmax.f32 %v147, %v286
  %v388 = vmax.f32 %v148, %v288
  %v389 = vmax.f32 %v149, %v290
  %v390 = vmax.f32 %v150, %v292
  %v391 = vmax.f32 %v151, %v294
  %v392 = vmax.f32 %v152, %v296
  %vm393 = vcmask 523264
  %394 = vst.msk [vmem:[%s1] sm:$0xff] %vm393, %v345
  %395 = vst.msk [vmem:[%s1 + $0x8] sm:$0xff] %vm393, %v346
  %396 = vst.msk [vmem:[%s1 + $0x10] sm:$0xff] %vm393, %v347
  %397 = vst.msk [vmem:[%s1 + $0x18] sm:$0xff] %vm393, %v348
  %398 = vst.msk [vmem:[%s1 + $0x20] sm:$0xff] %vm393, %v349
  %399 = vst.msk [vmem:[%s1 + $0x28] sm:$0xff] %vm393, %v350
  %400 = vst.msk [vmem:[%s1 + $0x30] sm:$0xff] %vm393, %v351
  %401 = vst.msk [vmem:[%s1 + $0x38] sm:$0xff] %vm393, %v352
  %402 = vst.msk [vmem:[%s1 + $0x40] sm:$0xff] %vm393, %v353
  %403 = vst.msk [vmem:[%s1 + $0x48] sm:$0xff] %vm393, %v354
  %404 = vst.msk [vmem:[%s1 + $0x50] sm:$0xff] %vm393, %v355
  %405 = vst.msk [vmem:[%s1 + $0x58] sm:$0xff] %vm393, %v356
  %406 = vst.msk [vmem:[%s1 + $0x60] sm:$0xff] %vm393, %v357
  %407 = vst.msk [vmem:[%s1 + $0x68] sm:$0xff] %vm393, %v358
  %408 = vst.msk [vmem:[%s1 + $0x70] sm:$0xff] %vm393, %v359
  %409 = vst.msk [vmem:[%s1 + $0x78] sm:$0xff] %vm393, %v360
  %410 = vst.msk [vmem:[%s1 + $0x80] sm:$0xff] %vm393, %v361
  %411 = vst.msk [vmem:[%s1 + $0x88] sm:$0xff] %vm393, %v362
  %412 = vst.msk [vmem:[%s1 + $0x90] sm:$0xff] %vm393, %v363
  %413 = vst.msk [vmem:[%s1 + $0x98] sm:$0xff] %vm393, %v364
  %414 = vst.msk [vmem:[%s1 + $0xa0] sm:$0xff] %vm393, %v365
  %415 = vst.msk [vmem:[%s1 + $0xa8] sm:$0xff] %vm393, %v366
  %416 = vst.msk [vmem:[%s1 + $0xb0] sm:$0xff] %vm393, %v367
  %417 = vst.msk [vmem:[%s1 + $0xb8] sm:$0xff] %vm393, %v368
  %418 = vst.msk [vmem:[%s1 + $0xc0] sm:$0xff] %vm393, %v369
  %419 = vst.msk [vmem:[%s1 + $0xc8] sm:$0xff] %vm393, %v370
  %420 = vst.msk [vmem:[%s1 + $0xd0] sm:$0xff] %vm393, %v371
  %421 = vst.msk [vmem:[%s1 + $0xd8] sm:$0xff] %vm393, %v372
  %422 = vst.msk [vmem:[%s1 + $0xe0] sm:$0xff] %vm393, %v373
  %423 = vst.msk [vmem:[%s1 + $0xe8] sm:$0xff] %vm393, %v374
  %424 = vst.msk [vmem:[%s1 + $0xf0] sm:$0xff] %vm393, %v375
  %425 = vst.msk [vmem:[%s1 + $0xf8] sm:$0xff] %vm393, %v376
  %426 = vst.msk [vmem:[%s1 + $0x100] sm:$0xff] %vm393, %v377
  %427 = vst.msk [vmem:[%s1 + $0x108] sm:$0xff] %vm393, %v378
  %428 = vst.msk [vmem:[%s1 + $0x110] sm:$0xff] %vm393, %v379
  %429 = vst.msk [vmem:[%s1 + $0x118] sm:$0xff] %vm393, %v380
  %430 = vst.msk [vmem:[%s1 + $0x120] sm:$0xff] %vm393, %v381
  %431 = vst.msk [vmem:[%s1 + $0x128] sm:$0xff] %vm393, %v382
  %432 = vst.msk [vmem:[%s1 + $0x130] sm:$0xff] %vm393, %v383
  %433 = vst.msk [vmem:[%s1 + $0x138] sm:$0xff] %vm393, %v384
  %434 = vst.msk [vmem:[%s1 + $0x140] sm:$0xff] %vm393, %v385
  %435 = vst.msk [vmem:[%s1 + $0x148] sm:$0xff] %vm393, %v386
  %436 = vst.msk [vmem:[%s1 + $0x150] sm:$0xff] %vm393, %v387
  %437 = vst.msk [vmem:[%s1 + $0x158] sm:$0xff] %vm393, %v388
  %438 = vst.msk [vmem:[%s1 + $0x160] sm:$0xff] %vm393, %v389
  %439 = vst.msk [vmem:[%s1 + $0x168] sm:$0xff] %vm393, %v390
  %440 = vst.msk [vmem:[%s1 + $0x170] sm:$0xff] %vm393, %v391
  %441 = vst.msk [vmem:[%s1 + $0x178] sm:$0xff] %vm393, %v392
  // Predicated region
  $region6: #{_lambda_.9} parent=0 // pred_check
    _
  $region7: #{_lambda_.9} parent=0 // pred_check_branch
    %443 = sbr.rel (0) target = $region9
  $region8: #{_lambda_.9} parent=0 // pred_region
    _
  $region9: #{_lambda_.9} parent=0 // pred_fallthru
    _
  // Predicated region
  $region10: #{_lambda_.9} parent=0 // pred_check
    _
  $region11: #{_lambda_.9} parent=0 // pred_check_branch
    %445 = sbr.rel (0) target = $region13
  $region12: #{_lambda_.9} parent=0 // pred_region
    _
  $region13: #{_lambda_.9} parent=0 // pred_fallthru
    _

// kernel: _lambda_.10
$region0: #{_lambda_.10}
  #allocation0 [shape = 'u32[]', space=smem, size = 0x4, offset = 0x4, fixed_abs, tag = 'smem constant byte address 0x4 - core index']
  #allocation1 [shape = 'u32[144,128]{1,0:T(1,128)}', space=vmem, size = 0x12000, scoped, tag = 'internal scratch']
  %s0 = inlined_call_operand.vmem [shape: f32[384,576], index: 0, kind: input, shape index: {}]
  %s1 = inlined_call_operand.vmem [shape: f32[576,64], index: 1, kind: input, shape index: {}]
  %s2 = inlined_call_operand.vmem [shape: f32[1,64], index: 2, kind: input, shape index: {}]
  %s3 = inlined_call_operand.vmem [shape: f32[384,64], index: 3, kind: output, shape index: {}]
  %s4 = sld [smem:[#allocation0]]
  $region22: #{_lambda_.10} parent=0
    _
  %s6 = ssub.s32 1, %s4
  %s7 = scalar_select 0, %s6, %s4
  // Predicated region
  $region2: #{_lambda_.10} parent=0 // pred_check
    _
  $region3: #{_lambda_.10} parent=0 // pred_check_branch
    %9 = sbr.rel (0) target = $region5
  $region4: #{_lambda_.10} parent=0 // pred_region
    _
  $region5: #{_lambda_.10} parent=0 // pred_fallthru
    _
  // Predicated region
  $region6: #{_lambda_.10} parent=0 // pred_check
    _
  $region7: #{_lambda_.10} parent=0 // pred_check_branch
    %11 = sbr.rel (0) target = $region9
  $region8: #{_lambda_.10} parent=0 // pred_region
    _
  $region9: #{_lambda_.10} parent=0 // pred_fallthru
    _
  // Predicated region
  $region10: #{_lambda_.10} parent=0 // pred_check
    _
  $region11: #{_lambda_.10} parent=0 // pred_check_branch
    %13 = sbr.rel (0) target = $region13
  $region12: #{_lambda_.10} parent=0 // pred_region
    _
  $region13: #{_lambda_.10} parent=0 // pred_fallthru
    _
  %v14 = vld [vmem:[%s0] sm:$0xff]
  %v15 = vld [vmem:[%s0 + $0x8] sm:$0xff]
  %v16 = vld [vmem:[%s0 + $0x10] sm:$0xff]
  %v17 = vld [vmem:[%s0 + $0x18] sm:$0xff]
  %v18 = vld [vmem:[%s0 + $0x20] sm:$0xff]
  %v19 = vld [vmem:[%s0 + $0x28] sm:$0xff]
  %v20 = vld [vmem:[%s0 + $0x30] sm:$0xff]
  %v21 = vld [vmem:[%s0 + $0x38] sm:$0xff]
  %v22 = vld [vmem:[%s0 + $0x40] sm:$0xff]
  %v23 = vld [vmem:[%s0 + $0x48] sm:$0xff]
  %v24 = vld [vmem:[%s0 + $0x50] sm:$0xff]
  %v25 = vld [vmem:[%s0 + $0x58] sm:$0xff]
  %v26 = vld [vmem:[%s0 + $0x60] sm:$0xff]
  %v27 = vld [vmem:[%s0 + $0x68] sm:$0xff]
  %v28 = vld [vmem:[%s0 + $0x70] sm:$0xff]
  %v29 = vld [vmem:[%s0 + $0x78] sm:$0xff]
  %v30 = vld [vmem:[%s0 + $0x80] sm:$0xff]
  %v31 = vld [vmem:[%s0 + $0x88] sm:$0xff]
  %v32 = vld [vmem:[%s0 + $0x90] sm:$0xff]
  %v33 = vld [vmem:[%s0 + $0x98] sm:$0xff]
  %v34 = vld [vmem:[%s0 + $0xa0] sm:$0xff]
  %v35 = vld [vmem:[%s0 + $0xa8] sm:$0xff]
  %v36 = vld [vmem:[%s0 + $0xb0] sm:$0xff]
  %v37 = vld [vmem:[%s0 + $0xb8] sm:$0xff]
  %v38 = vld [vmem:[%s0 + $0xc0] sm:$0xff]
  %v39 = vld [vmem:[%s0 + $0xc8] sm:$0xff]
  %v40 = vld [vmem:[%s0 + $0xd0] sm:$0xff]
  %v41 = vld [vmem:[%s0 + $0xd8] sm:$0xff]
  %v42 = vld [vmem:[%s0 + $0xe0] sm:$0xff]
  %v43 = vld [vmem:[%s0 + $0xe8] sm:$0xff]
  %v44 = vld [vmem:[%s0 + $0xf0] sm:$0xff]
  %v45 = vld [vmem:[%s0 + $0xf8] sm:$0xff]
  %v46 = vld [vmem:[%s0 + $0x100] sm:$0xff]
  %v47 = vld [vmem:[%s0 + $0x108] sm:$0xff]
  %v48 = vld [vmem:[%s0 + $0x110] sm:$0xff]
  %v49 = vld [vmem:[%s0 + $0x118] sm:$0xff]
  %v50 = vld [vmem:[%s0 + $0x120] sm:$0xff]
  %v51 = vld [vmem:[%s0 + $0x128] sm:$0xff]
  %v52 = vld [vmem:[%s0 + $0x130] sm:$0xff]
  %v53 = vld [vmem:[%s0 + $0x138] sm:$0xff]
  %v54 = vld [vmem:[%s0 + $0x140] sm:$0xff]
  %v55 = vld [vmem:[%s0 + $0x148] sm:$0xff]
  %v56 = vld [vmem:[%s0 + $0x150] sm:$0xff]
  %v57 = vld [vmem:[%s0 + $0x158] sm:$0xff]
  %v58 = vld [vmem:[%s0 + $0x160] sm:$0xff]
  %v59 = vld [vmem:[%s0 + $0x168] sm:$0xff]
  %v60 = vld [vmem:[%s0 + $0x170] sm:$0xff]
  %v61 = vld [vmem:[%s0 + $0x178] sm:$0xff]
  %v62 = vld [vmem:[%s0 + $0x180] sm:$0xff]
  %v63 = vld [vmem:[%s0 + $0x188] sm:$0xff]
  %v64 = vld [vmem:[%s0 + $0x190] sm:$0xff]
  %v65 = vld [vmem:[%s0 + $0x198] sm:$0xff]
  %v66 = vld [vmem:[%s0 + $0x1a0] sm:$0xff]
  %v67 = vld [vmem:[%s0 + $0x1a8] sm:$0xff]
  %v68 = vld [vmem:[%s0 + $0x1b0] sm:$0xff]
  %v69 = vld [vmem:[%s0 + $0x1b8] sm:$0xff]
  %v70 = vld [vmem:[%s0 + $0x1c0] sm:$0xff]
  %v71 = vld [vmem:[%s0 + $0x1c8] sm:$0xff]
  %v72 = vld [vmem:[%s0 + $0x1d0] sm:$0xff]
  %v73 = vld [vmem:[%s0 + $0x1d8] sm:$0xff]
  %v74 = vld [vmem:[%s0 + $0x1e0] sm:$0xff]
  %v75 = vld [vmem:[%s0 + $0x1e8] sm:$0xff]
  %v76 = vld [vmem:[%s0 + $0x1f0] sm:$0xff]
  %v77 = vld [vmem:[%s0 + $0x1f8] sm:$0xff]
  %v78 = vld [vmem:[%s0 + $0x200] sm:$0xff]
  %v79 = vld [vmem:[%s0 + $0x208] sm:$0xff]
  %v80 = vld [vmem:[%s0 + $0x210] sm:$0xff]
  %v81 = vld [vmem:[%s0 + $0x218] sm:$0xff]
  %v82 = vld [vmem:[%s0 + $0x220] sm:$0xff]
  %v83 = vld [vmem:[%s0 + $0x228] sm:$0xff]
  %v84 = vld [vmem:[%s0 + $0x230] sm:$0xff]
  %v85 = vld [vmem:[%s0 + $0x238] sm:$0xff]
  %v86 = vld [vmem:[%s0 + $0x240] sm:$0xff]
  %v87 = vld [vmem:[%s0 + $0x248] sm:$0xff]
  %v88 = vld [vmem:[%s0 + $0x250] sm:$0xff]
  %v89 = vld [vmem:[%s0 + $0x258] sm:$0xff]
  %v90 = vld [vmem:[%s0 + $0x260] sm:$0xff]
  %v91 = vld [vmem:[%s0 + $0x268] sm:$0xff]
  %v92 = vld [vmem:[%s0 + $0x270] sm:$0xff]
  %v93 = vld [vmem:[%s0 + $0x278] sm:$0xff]
  %v94 = vld [vmem:[%s0 + $0x280] sm:$0xff]
  %v95 = vld [vmem:[%s0 + $0x288] sm:$0xff]
  %v96 = vld [vmem:[%s0 + $0x290] sm:$0xff]
  %v97 = vld [vmem:[%s0 + $0x298] sm:$0xff]
  %v98 = vld [vmem:[%s0 + $0x2a0] sm:$0xff]
  %v99 = vld [vmem:[%s0 + $0x2a8] sm:$0xff]
  %v100 = vld [vmem:[%s0 + $0x2b0] sm:$0xff]
  %v101 = vld [vmem:[%s0 + $0x2b8] sm:$0xff]
  %v102 = vld [vmem:[%s0 + $0x2c0] sm:$0xff]
  %v103 = vld [vmem:[%s0 + $0x2c8] sm:$0xff]
  %v104 = vld [vmem:[%s0 + $0x2d0] sm:$0xff]
  %v105 = vld [vmem:[%s0 + $0x2d8] sm:$0xff]
  %v106 = vld [vmem:[%s0 + $0x2e0] sm:$0xff]
  %v107 = vld [vmem:[%s0 + $0x2e8] sm:$0xff]
  %v108 = vld [vmem:[%s0 + $0x2f0] sm:$0xff]
  %v109 = vld [vmem:[%s0 + $0x2f8] sm:$0xff]
  %v110 = vld [vmem:[%s0 + $0x300] sm:$0xff]
  %v111 = vld [vmem:[%s0 + $0x308] sm:$0xff]
  %v112 = vld [vmem:[%s0 + $0x310] sm:$0xff]
  %v113 = vld [vmem:[%s0 + $0x318] sm:$0xff]
  %v114 = vld [vmem:[%s0 + $0x320] sm:$0xff]
  %v115 = vld [vmem:[%s0 + $0x328] sm:$0xff]
  %v116 = vld [vmem:[%s0 + $0x330] sm:$0xff]
  %v117 = vld [vmem:[%s0 + $0x338] sm:$0xff]
  %v118 = vld [vmem:[%s0 + $0x340] sm:$0xff]
  %v119 = vld [vmem:[%s0 + $0x348] sm:$0xff]
  %v120 = vld [vmem:[%s0 + $0x350] sm:$0xff]
  %v121 = vld [vmem:[%s0 + $0x358] sm:$0xff]
  %v122 = vld [vmem:[%s0 + $0x360] sm:$0xff]
  %v123 = vld [vmem:[%s0 + $0x368] sm:$0xff]
  %v124 = vld [vmem:[%s0 + $0x370] sm:$0xff]
  %v125 = vld [vmem:[%s0 + $0x378] sm:$0xff]
  %v126 = vld [vmem:[%s0 + $0x380] sm:$0xff]
  %v127 = vld [vmem:[%s0 + $0x388] sm:$0xff]
  %v128 = vld [vmem:[%s0 + $0x390] sm:$0xff]
  %v129 = vld [vmem:[%s0 + $0x398] sm:$0xff]
  %v130 = vld [vmem:[%s0 + $0x3a0] sm:$0xff]
  %v131 = vld [vmem:[%s0 + $0x3a8] sm:$0xff]
  %v132 = vld [vmem:[%s0 + $0x3b0] sm:$0xff]
  %v133 = vld [vmem:[%s0 + $0x3b8] sm:$0xff]
  %v134 = vld [vmem:[%s0 + $0x3c0] sm:$0xff]
  %v135 = vld [vmem:[%s0 + $0x3c8] sm:$0xff]
  %v136 = vld [vmem:[%s0 + $0x3d0] sm:$0xff]
  %v137 = vld [vmem:[%s0 + $0x3d8] sm:$0xff]
  %v138 = vld [vmem:[%s0 + $0x3e0] sm:$0xff]
  %v139 = vld [vmem:[%s0 + $0x3e8] sm:$0xff]
  %v140 = vld [vmem:[%s0 + $0x3f0] sm:$0xff]
  %v141 = vld [vmem:[%s0 + $0x3f8] sm:$0xff]
  %v142 = vld [vmem:[%s0 + $0x400] sm:$0xff]
  %v143 = vld [vmem:[%s0 + $0x408] sm:$0xff]
  %v144 = vld [vmem:[%s0 + $0x410] sm:$0xff]
  %v145 = vld [vmem:[%s0 + $0x418] sm:$0xff]
  %v146 = vld [vmem:[%s0 + $0x420] sm:$0xff]
  %v147 = vld [vmem:[%s0 + $0x428] sm:$0xff]
  %v148 = vld [vmem:[%s0 + $0x430] sm:$0xff]
  %v149 = vld [vmem:[%s0 + $0x438] sm:$0xff]
  %v150 = vld [vmem:[%s0 + $0x440] sm:$0xff]
  %v151 = vld [vmem:[%s0 + $0x448] sm:$0xff]
  %v152 = vld [vmem:[%s0 + $0x450] sm:$0xff]
  %v153 = vld [vmem:[%s0 + $0x458] sm:$0xff]
  %v154 = vld [vmem:[%s0 + $0x460] sm:$0xff]
  %v155 = vld [vmem:[%s0 + $0x468] sm:$0xff]
  %v156 = vld [vmem:[%s0 + $0x470] sm:$0xff]
  %v157 = vld [vmem:[%s0 + $0x478] sm:$0xff]
  %v158 = vld [vmem:[%s0 + $0x480] sm:$0xff]
  %v159 = vld [vmem:[%s0 + $0x488] sm:$0xff]
  %v160 = vld [vmem:[%s0 + $0x490] sm:$0xff]
  %v161 = vld [vmem:[%s0 + $0x498] sm:$0xff]
  %v162 = vld [vmem:[%s0 + $0x4a0] sm:$0xff]
  %v163 = vld [vmem:[%s0 + $0x4a8] sm:$0xff]
  %v164 = vld [vmem:[%s0 + $0x4b0] sm:$0xff]
  %v165 = vld [vmem:[%s0 + $0x4b8] sm:$0xff]
  %v166 = vld [vmem:[%s0 + $0x4c0] sm:$0xff]
  %v167 = vld [vmem:[%s0 + $0x4c8] sm:$0xff]
  %v168 = vld [vmem:[%s0 + $0x4d0] sm:$0xff]
  %v169 = vld [vmem:[%s0 + $0x4d8] sm:$0xff]
  %v170 = vld [vmem:[%s0 + $0x4e0] sm:$0xff]
  %v171 = vld [vmem:[%s0 + $0x4e8] sm:$0xff]
  %v172 = vld [vmem:[%s0 + $0x4f0] sm:$0xff]
  %v173 = vld [vmem:[%s0 + $0x4f8] sm:$0xff]
  %v174 = vld [vmem:[%s0 + $0x500] sm:$0xff]
  %v175 = vld [vmem:[%s0 + $0x508] sm:$0xff]
  %v176 = vld [vmem:[%s0 + $0x510] sm:$0xff]
  %v177 = vld [vmem:[%s0 + $0x518] sm:$0xff]
  %v178 = vld [vmem:[%s0 + $0x520] sm:$0xff]
  %v179 = vld [vmem:[%s0 + $0x528] sm:$0xff]
  %v180 = vld [vmem:[%s0 + $0x530] sm:$0xff]
  %v181 = vld [vmem:[%s0 + $0x538] sm:$0xff]
  %v182 = vld [vmem:[%s0 + $0x540] sm:$0xff]
  %v183 = vld [vmem:[%s0 + $0x548] sm:$0xff]
  %v184 = vld [vmem:[%s0 + $0x550] sm:$0xff]
  %v185 = vld [vmem:[%s0 + $0x558] sm:$0xff]
  %v186 = vld [vmem:[%s0 + $0x560] sm:$0xff]
  %v187 = vld [vmem:[%s0 + $0x568] sm:$0xff]
  %v188 = vld [vmem:[%s0 + $0x570] sm:$0xff]
  %v189 = vld [vmem:[%s0 + $0x578] sm:$0xff]
  %v190 = vld [vmem:[%s0 + $0x580] sm:$0xff]
  %v191 = vld [vmem:[%s0 + $0x588] sm:$0xff]
  %v192 = vld [vmem:[%s0 + $0x590] sm:$0xff]
  %v193 = vld [vmem:[%s0 + $0x598] sm:$0xff]
  %v194 = vld [vmem:[%s0 + $0x5a0] sm:$0xff]
  %v195 = vld [vmem:[%s0 + $0x5a8] sm:$0xff]
  %v196 = vld [vmem:[%s0 + $0x5b0] sm:$0xff]
  %v197 = vld [vmem:[%s0 + $0x5b8] sm:$0xff]
  %v198 = vld [vmem:[%s0 + $0x5c0] sm:$0xff]
  %v199 = vld [vmem:[%s0 + $0x5c8] sm:$0xff]
  %v200 = vld [vmem:[%s0 + $0x5d0] sm:$0xff]
  %v201 = vld [vmem:[%s0 + $0x5d8] sm:$0xff]
  %v202 = vld [vmem:[%s0 + $0x5e0] sm:$0xff]
  %v203 = vld [vmem:[%s0 + $0x5e8] sm:$0xff]
  %v204 = vld [vmem:[%s0 + $0x5f0] sm:$0xff]
  %v205 = vld [vmem:[%s0 + $0x5f8] sm:$0xff]
  %v206 = vld [vmem:[%s0 + $0x600] sm:$0xff]
  %v207 = vld [vmem:[%s0 + $0x608] sm:$0xff]
  %v208 = vld [vmem:[%s0 + $0x610] sm:$0xff]
  %v209 = vld [vmem:[%s0 + $0x618] sm:$0xff]
  %v210 = vld [vmem:[%s0 + $0x620] sm:$0xff]
  %v211 = vld [vmem:[%s0 + $0x628] sm:$0xff]
  %v212 = vld [vmem:[%s0 + $0x630] sm:$0xff]
  %v213 = vld [vmem:[%s0 + $0x638] sm:$0xff]
  %v214 = vld [vmem:[%s0 + $0x640] sm:$0xff]
  %v215 = vld [vmem:[%s0 + $0x648] sm:$0xff]
  %v216 = vld [vmem:[%s0 + $0x650] sm:$0xff]
  %v217 = vld [vmem:[%s0 + $0x658] sm:$0xff]
  %v218 = vld [vmem:[%s0 + $0x660] sm:$0xff]
  %v219 = vld [vmem:[%s0 + $0x668] sm:$0xff]
  %v220 = vld [vmem:[%s0 + $0x670] sm:$0xff]
  %v221 = vld [vmem:[%s0 + $0x678] sm:$0xff]
  %v222 = vld [vmem:[%s0 + $0x680] sm:$0xff]
  %v223 = vld [vmem:[%s0 + $0x688] sm:$0xff]
  %v224 = vld [vmem:[%s0 + $0x690] sm:$0xff]
  %v225 = vld [vmem:[%s0 + $0x698] sm:$0xff]
  %v226 = vld [vmem:[%s0 + $0x6a0] sm:$0xff]
  %v227 = vld [vmem:[%s0 + $0x6a8] sm:$0xff]
  %v228 = vld [vmem:[%s0 + $0x6b0] sm:$0xff]
  %v229 = vld [vmem:[%s0 + $0x6b8] sm:$0xff]
  %v230 = vld [vmem:[%s0 + $0x6c0] sm:$0xff]
  %v231 = vld [vmem:[%s0 + $0x6c8] sm:$0xff]
  %v232 = vld [vmem:[%s0 + $0x6d0] sm:$0xff]
  %v233 = vld [vmem:[%s0 + $0x6d8] sm:$0xff]
  %v234 = vld [vmem:[%s0 + $0x6e0] sm:$0xff]
  %v235 = vld [vmem:[%s0 + $0x6e8] sm:$0xff]
  %v236 = vld [vmem:[%s0 + $0x6f0] sm:$0xff]
  %v237 = vld [vmem:[%s0 + $0x6f8] sm:$0xff]
  %v238 = vld [vmem:[%s0 + $0x700] sm:$0xff]
  %v239 = vld [vmem:[%s0 + $0x708] sm:$0xff]
  %v240 = vld [vmem:[%s0 + $0x710] sm:$0xff]
  %v241 = vld [vmem:[%s0 + $0x718] sm:$0xff]
  %v242 = vld [vmem:[%s0 + $0x720] sm:$0xff]
  %v243 = vld [vmem:[%s0 + $0x728] sm:$0xff]
  %v244 = vld [vmem:[%s0 + $0x730] sm:$0xff]
  %v245 = vld [vmem:[%s0 + $0x738] sm:$0xff]
  %v246 = vld [vmem:[%s0 + $0x740] sm:$0xff]
  %v247 = vld [vmem:[%s0 + $0x748] sm:$0xff]
  %v248 = vld [vmem:[%s0 + $0x750] sm:$0xff]
  %v249 = vld [vmem:[%s0 + $0x758] sm:$0xff]
  %v250 = vld [vmem:[%s0 + $0x760] sm:$0xff]
  %v251 = vld [vmem:[%s0 + $0x768] sm:$0xff]
  %v252 = vld [vmem:[%s0 + $0x770] sm:$0xff]
  %v253 = vld [vmem:[%s0 + $0x778] sm:$0xff]
  %v254 = vld [vmem:[%s1] sm:$0xff]
  %v255 = vld [vmem:[%s1 + $0x8] sm:$0xff]
  %v256 = vld [vmem:[%s1 + $0x10] sm:$0xff]
  %v257 = vld [vmem:[%s1 + $0x18] sm:$0xff]
  %v258 = vld [vmem:[%s1 + $0x20] sm:$0xff]
  %v259 = vld [vmem:[%s1 + $0x28] sm:$0xff]
  %v260 = vld [vmem:[%s1 + $0x30] sm:$0xff]
  %v261 = vld [vmem:[%s1 + $0x38] sm:$0xff]
  %v262 = vld [vmem:[%s1 + $0x40] sm:$0xff]
  %v263 = vld [vmem:[%s1 + $0x48] sm:$0xff]
  %v264 = vld [vmem:[%s1 + $0x50] sm:$0xff]
  %v265 = vld [vmem:[%s1 + $0x58] sm:$0xff]
  %v266 = vld [vmem:[%s1 + $0x60] sm:$0xff]
  %v267 = vld [vmem:[%s1 + $0x68] sm:$0xff]
  %v268 = vld [vmem:[%s1 + $0x70] sm:$0xff]
  %v269 = vld [vmem:[%s1 + $0x78] sm:$0xff]
  %v270 = vld [vmem:[%s1 + $0x80] sm:$0xff]
  %v271 = vld [vmem:[%s1 + $0x88] sm:$0xff]
  %v272 = vld [vmem:[%s1 + $0x90] sm:$0xff]
  %v273 = vld [vmem:[%s1 + $0x98] sm:$0xff]
  %v274 = vld [vmem:[%s1 + $0xa0] sm:$0xff]
  %v275 = vld [vmem:[%s1 + $0xa8] sm:$0xff]
  %v276 = vld [vmem:[%s1 + $0xb0] sm:$0xff]
  %v277 = vld [vmem:[%s1 + $0xb8] sm:$0xff]
  %v278 = vld [vmem:[%s1 + $0xc0] sm:$0xff]
  %v279 = vld [vmem:[%s1 + $0xc8] sm:$0xff]
  %v280 = vld [vmem:[%s1 + $0xd0] sm:$0xff]
  %v281 = vld [vmem:[%s1 + $0xd8] sm:$0xff]
  %v282 = vld [vmem:[%s1 + $0xe0] sm:$0xff]
  %v283 = vld [vmem:[%s1 + $0xe8] sm:$0xff]
  %v284 = vld [vmem:[%s1 + $0xf0] sm:$0xff]
  %v285 = vld [vmem:[%s1 + $0xf8] sm:$0xff]
  %v286 = vld [vmem:[%s1 + $0x100] sm:$0xff]
  %v287 = vld [vmem:[%s1 + $0x108] sm:$0xff]
  %v288 = vld [vmem:[%s1 + $0x110] sm:$0xff]
  %v289 = vld [vmem:[%s1 + $0x118] sm:$0xff]
  %v290 = vld [vmem:[%s1 + $0x120] sm:$0xff]
  %v291 = vld [vmem:[%s1 + $0x128] sm:$0xff]
  %v292 = vld [vmem:[%s1 + $0x130] sm:$0xff]
  %v293 = vld [vmem:[%s1 + $0x138] sm:$0xff]
  %v294 = vld [vmem:[%s1 + $0x140] sm:$0xff]
  %v295 = vld [vmem:[%s1 + $0x148] sm:$0xff]
  %v296 = vld [vmem:[%s1 + $0x150] sm:$0xff]
  %v297 = vld [vmem:[%s1 + $0x158] sm:$0xff]
  %v298 = vld [vmem:[%s1 + $0x160] sm:$0xff]
  %v299 = vld [vmem:[%s1 + $0x168] sm:$0xff]
  %v300 = vld [vmem:[%s1 + $0x170] sm:$0xff]
  %v301 = vld [vmem:[%s1 + $0x178] sm:$0xff]
  %v302 = vld [vmem:[%s1 + $0x180] sm:$0xff]
  %v303 = vld [vmem:[%s1 + $0x188] sm:$0xff]
  %v304 = vld [vmem:[%s1 + $0x190] sm:$0xff]
  %v305 = vld [vmem:[%s1 + $0x198] sm:$0xff]
  %v306 = vld [vmem:[%s1 + $0x1a0] sm:$0xff]
  %v307 = vld [vmem:[%s1 + $0x1a8] sm:$0xff]
  %v308 = vld [vmem:[%s1 + $0x1b0] sm:$0xff]
  %v309 = vld [vmem:[%s1 + $0x1b8] sm:$0xff]
  %v310 = vld [vmem:[%s1 + $0x1c0] sm:$0xff]
  %v311 = vld [vmem:[%s1 + $0x1c8] sm:$0xff]
  %v312 = vld [vmem:[%s1 + $0x1d0] sm:$0xff]
  %v313 = vld [vmem:[%s1 + $0x1d8] sm:$0xff]
  %v314 = vld [vmem:[%s1 + $0x1e0] sm:$0xff]
  %v315 = vld [vmem:[%s1 + $0x1e8] sm:$0xff]
  %v316 = vld [vmem:[%s1 + $0x1f0] sm:$0xff]
  %v317 = vld [vmem:[%s1 + $0x1f8] sm:$0xff]
  %v318 = vld [vmem:[%s1 + $0x200] sm:$0xff]
  %v319 = vld [vmem:[%s1 + $0x208] sm:$0xff]
  %v320 = vld [vmem:[%s1 + $0x210] sm:$0xff]
  %v321 = vld [vmem:[%s1 + $0x218] sm:$0xff]
  %v322 = vld [vmem:[%s1 + $0x220] sm:$0xff]
  %v323 = vld [vmem:[%s1 + $0x228] sm:$0xff]
  %v324 = vld [vmem:[%s1 + $0x230] sm:$0xff]
  %v325 = vld [vmem:[%s1 + $0x238] sm:$0xff]
  %v326 = vld [vmem:[%s2] sm:$0x1]
  %v328 = vlaneseq
  %v329 = vshrl.u32 %v328, 7
  %v330 = vsub.s32 0, %v329
  %v331 = vrot.slane %v326, %v330
  %vm333 = vcmask 523264
  %v335 = vsel %vm333, %v18, 0
  %v338 = vsel %vm333, %v23, 0
  %v341 = vsel %vm333, %v28, 0
  %v344 = vsel %vm333, %v33, 0
  %v347 = vsel %vm333, %v38, 0
  %v350 = vsel %vm333, %v43, 0
  %v353 = vsel %vm333, %v48, 0
  %v356 = vsel %vm333, %v53, 0
  %v359 = vsel %vm333, %v58, 0
  %v362 = vsel %vm333, %v63, 0
  %v365 = vsel %vm333, %v68, 0
  %v368 = vsel %vm333, %v73, 0
  %v371 = vsel %vm333, %v78, 0
  %v374 = vsel %vm333, %v83, 0
  %v377 = vsel %vm333, %v88, 0
  %v380 = vsel %vm333, %v93, 0
  %v383 = vsel %vm333, %v98, 0
  %v386 = vsel %vm333, %v103, 0
  %v389 = vsel %vm333, %v108, 0
  %v392 = vsel %vm333, %v113, 0
  %v395 = vsel %vm333, %v118, 0
  %v398 = vsel %vm333, %v123, 0
  %v401 = vsel %vm333, %v128, 0
  %v404 = vsel %vm333, %v133, 0
  %v407 = vsel %vm333, %v138, 0
  %v410 = vsel %vm333, %v143, 0
  %v413 = vsel %vm333, %v148, 0
  %v416 = vsel %vm333, %v153, 0
  %v419 = vsel %vm333, %v158, 0
  %v422 = vsel %vm333, %v163, 0
  %v425 = vsel %vm333, %v168, 0
  %v428 = vsel %vm333, %v173, 0
  %v431 = vsel %vm333, %v178, 0
  %v434 = vsel %vm333, %v183, 0
  %v437 = vsel %vm333, %v188, 0
  %v440 = vsel %vm333, %v193, 0
  %v443 = vsel %vm333, %v198, 0
  %v446 = vsel %vm333, %v203, 0
  %v449 = vsel %vm333, %v208, 0
  %v452 = vsel %vm333, %v213, 0
  %v455 = vsel %vm333, %v218, 0
  %v458 = vsel %vm333, %v223, 0
  %v461 = vsel %vm333, %v228, 0
  %v464 = vsel %vm333, %v233, 0
  %v467 = vsel %vm333, %v238, 0
  %v470 = vsel %vm333, %v243, 0
  %v473 = vsel %vm333, %v248, 0
  %v476 = vsel %vm333, %v253, 0
  %478 = vmatprep.subr.mxu0 0.0
  %479 = vmatpush1.msra.mxu0 %v254
  %480 = vmatprep.subr.mxu0 0.0
  %481 = vmatpush1.msra.mxu0 %v255
  %482 = vmatprep.subr.mxu0 0.0
  %483 = vmatpush1.msra.mxu0 %v256
  %484 = vmatprep.subr.mxu0 0.0
  %485 = vmatpush1.msra.mxu0 %v257
  %486 = vmatprep.subr.mxu0 0.0
  %487 = vmatpush1.msra.mxu0 %v258
  %488 = vmatprep.subr.mxu0 0.0
  %489 = vmatpush1.msra.mxu0 %v259
  %490 = vmatprep.subr.mxu0 0.0
  %491 = vmatpush1.msra.mxu0 %v260
  %492 = vmatprep.subr.mxu0 0.0
  %493 = vmatpush1.msra.mxu0 %v261
  %494 = vmatprep.subr.mxu0 0.0
  %495 = vmatpush1.msra.mxu0 %v262
  %496 = vmatprep.subr.mxu0 0.0
  %497 = vmatpush1.msra.mxu0 %v263
  %498 = vmatprep.subr.mxu0 0.0
  %499 = vmatpush1.msra.mxu0 %v264
  %500 = vmatprep.subr.mxu0 0.0
  %501 = vmatpush1.msra.mxu0 %v265
  %502 = vmatprep.subr.mxu0 0.0
  %503 = vmatpush1.msra.mxu0 %v266
  %504 = vmatprep.subr.mxu0 0.0
  %505 = vmatpush1.msra.mxu0 %v267
  %506 = vmatprep.subr.mxu0 0.0
  %507 = vmatpush1.msra.mxu0 %v268
  %508 = vmatprep.subr.mxu0 0.0
  %509 = vmatpush1.msra.mxu0 %v269
  %510 = vmatprep.subr.mxu0 0.0
  %511 = vmatpush1.msra.mxu0 %v270
  %512 = vmatprep.subr.mxu0 0.0
  %513 = vmatpush1.msra.mxu0 %v271
  %514 = vmatprep.subr.mxu0 0.0
  %515 = vmatpush1.msra.mxu0 %v272
  %516 = vmatprep.subr.mxu0 0.0
  %517 = vmatpush1.msra.mxu0 %v273
  %518 = vmatprep.subr.mxu0 0.0
  %519 = vmatpush1.msra.mxu0 %v274
  %520 = vmatprep.subr.mxu0 0.0
  %521 = vmatpush1.msra.mxu0 %v275
  %522 = vmatprep.subr.mxu0 0.0
  %523 = vmatpush1.msra.mxu0 %v276
  %524 = vmatprep.subr.mxu0 0.0
  %525 = vmatpush1.msra.mxu0 %v277
  %526 = vmatprep.subr.mxu0 0.0
  %527 = vmatpush1.msra.mxu0 %v278
  %528 = vmatprep.subr.mxu0 0.0
  %529 = vmatpush1.msra.mxu0 %v279
  %530 = vmatprep.subr.mxu0 0.0
  %531 = vmatpush1.msra.mxu0 %v280
  %532 = vmatprep.subr.mxu0 0.0
  %533 = vmatpush1.msra.mxu0 %v281
  %534 = vmatprep.subr.mxu0 0.0
  %535 = vmatpush1.msra.mxu0 %v282
  %536 = vmatprep.subr.mxu0 0.0
  %537 = vmatpush1.msra.mxu0 %v283
  %538 = vmatprep.subr.mxu0 0.0
  %539 = vmatpush1.msra.mxu0 %v284
  %540 = vmatprep.subr.mxu0 0.0
  %541 = vmatpush1.msra.mxu0 %v285
  %542 = vmatprep.mubr.f32.mxu0 %v15
  %543 = vmatmul.mubr.f32.gmra.mrb[0].mxu0 %v14
  %v544 = vpop.f32.mrb[0].mxu0
  %v545 = vadd.f32 %v331, %v544
  %v546 = vpop.f32.mrb[0].mxu0
  %547 = vmatprep.mubr.f32.mxu0 %v20
  %548 = vmatmul.mubr.f32.gmra.mrb[0].mxu0 %v19
  %v549 = vpop.f32.mrb[0].mxu0
  %v550 = vadd.f32 %v331, %v549
  %v551 = vpop.f32.mrb[0].mxu0
  %552 = vmatprep.mubr.f32.mxu0 %v25
  %553 = vmatmul.mubr.f32.gmra.mrb[0].mxu0 %v24
  %v554 = vpop.f32.mrb[0].mxu0
  %v555 = vadd.f32 %v331, %v554
  %v556 = vpop.f32.mrb[0].mxu0
  %557 = vmatprep.mubr.f32.mxu0 %v30
  %558 = vmatmul.mubr.f32.gmra.mrb[0].mxu0 %v29
  %v559 = vpop.f32.mrb[0].mxu0
  %v560 = vadd.f32 %v331, %v559
  %v561 = vpop.f32.mrb[0].mxu0
  %562 = vmatprep.mubr.f32.mxu0 %v35
  %563 = vmatmul.mubr.f32.gmra.mrb[0].mxu0 %v34
  %v564 = vpop.f32.mrb[0].mxu0
  %v565 = vadd.f32 %v331, %v564
  %v566 = vpop.f32.mrb[0].mxu0
  %567 = vmatprep.mubr.f32.mxu0 %v40
  %568 = vmatmul.mubr.f32.gmra.mrb[0].mxu0 %v39
  %v569 = vpop.f32.mrb[0].mxu0
  %v570 = vadd.f32 %v331, %v569
  %v571 = vpop.f32.mrb[0].mxu0
  %572 = vmatprep.mubr.f32.mxu0 %v45
  %573 = vmatmul.mubr.f32.gmra.mrb[0].mxu0 %v44
  %v574 = vpop.f32.mrb[0].mxu0
  %v575 = vadd.f32 %v331, %v574
  %v576 = vpop.f32.mrb[0].mxu0
  %577 = vmatprep.mubr.f32.mxu0 %v50
  %578 = vmatmul.mubr.f32.gmra.mrb[0].mxu0 %v49
  %v579 = vpop.f32.mrb[0].mxu0
  %v580 = vadd.f32 %v331, %v579
  %v581 = vpop.f32.mrb[0].mxu0
  %582 = vmatprep.mubr.f32.mxu0 %v55
  %583 = vmatmul.mubr.f32.gmra.mrb[0].mxu0 %v54
  %v584 = vpop.f32.mrb[0].mxu0
  %v585 = vadd.f32 %v331, %v584
  %v586 = vpop.f32.mrb[0].mxu0
  %587 = vmatprep.mubr.f32.mxu0 %v60
  %588 = vmatmul.mubr.f32.gmra.mrb[0].mxu0 %v59
  %v589 = vpop.f32.mrb[0].mxu0
  %v590 = vadd.f32 %v331, %v589
  %v591 = vpop.f32.mrb[0].mxu0
  %592 = vmatprep.mubr.f32.mxu0 %v65
  %593 = vmatmul.mubr.f32.gmra.mrb[0].mxu0 %v64
  %v594 = vpop.f32.mrb[0].mxu0
  %v595 = vadd.f32 %v331, %v594
  %v596 = vpop.f32.mrb[0].mxu0
  %597 = vmatprep.mubr.f32.mxu0 %v70
  %598 = vmatmul.mubr.f32.gmra.mrb[0].mxu0 %v69
  %v599 = vpop.f32.mrb[0].mxu0
  %v600 = vadd.f32 %v331, %v599
  %v601 = vpop.f32.mrb[0].mxu0
  %602 = vmatprep.mubr.f32.mxu0 %v75
  %603 = vmatmul.mubr.f32.gmra.mrb[0].mxu0 %v74
  %v604 = vpop.f32.mrb[0].mxu0
  %v605 = vadd.f32 %v331, %v604
  %v606 = vpop.f32.mrb[0].mxu0
  %607 = vmatprep.mubr.f32.mxu0 %v80
  %608 = vmatmul.mubr.f32.gmra.mrb[0].mxu0 %v79
  %v609 = vpop.f32.mrb[0].mxu0
  %v610 = vadd.f32 %v331, %v609
  %v611 = vpop.f32.mrb[0].mxu0
  %612 = vmatprep.mubr.f32.mxu0 %v85
  %613 = vmatmul.mubr.f32.gmra.mrb[0].mxu0 %v84
  %v614 = vpop.f32.mrb[0].mxu0
  %v615 = vadd.f32 %v331, %v614
  %v616 = vpop.f32.mrb[0].mxu0
  %617 = vmatprep.mubr.f32.mxu0 %v90
  %618 = vmatmul.mubr.f32.gmra.mrb[0].mxu0 %v89
  %v619 = vpop.f32.mrb[0].mxu0
  %v620 = vadd.f32 %v331, %v619
  %v621 = vpop.f32.mrb[0].mxu0
  %622 = vmatprep.mubr.f32.mxu0 %v95
  %623 = vmatmul.mubr.f32.gmra.mrb[0].mxu0 %v94
  %v624 = vpop.f32.mrb[0].mxu0
  %v625 = vadd.f32 %v331, %v624
  %v626 = vpop.f32.mrb[0].mxu0
  %627 = vmatprep.mubr.f32.mxu0 %v100
  %628 = vmatmul.mubr.f32.gmra.mrb[0].mxu0 %v99
  %v629 = vpop.f32.mrb[0].mxu0
  %v630 = vadd.f32 %v331, %v629
  %v631 = vpop.f32.mrb[0].mxu0
  %632 = vmatprep.mubr.f32.mxu0 %v105
  %633 = vmatmul.mubr.f32.gmra.mrb[0].mxu0 %v104
  %v634 = vpop.f32.mrb[0].mxu0
  %v635 = vadd.f32 %v331, %v634
  %v636 = vpop.f32.mrb[0].mxu0
  %637 = vmatprep.mubr.f32.mxu0 %v110
  %638 = vmatmul.mubr.f32.gmra.mrb[0].mxu0 %v109
  %v639 = vpop.f32.mrb[0].mxu0
  %v640 = vadd.f32 %v331, %v639
  %v641 = vpop.f32.mrb[0].mxu0
  %642 = vmatprep.mubr.f32.mxu0 %v115
  %643 = vmatmul.mubr.f32.gmra.mrb[0].mxu0 %v114
  %v644 = vpop.f32.mrb[0].mxu0
  %v645 = vadd.f32 %v331, %v644
  %v646 = vpop.f32.mrb[0].mxu0
  %647 = vmatprep.mubr.f32.mxu0 %v120
  %648 = vmatmul.mubr.f32.gmra.mrb[0].mxu0 %v119
  %v649 = vpop.f32.mrb[0].mxu0
  %v650 = vadd.f32 %v331, %v649
  %v651 = vpop.f32.mrb[0].mxu0
  %652 = vmatprep.mubr.f32.mxu0 %v125
  %653 = vmatmul.mubr.f32.gmra.mrb[0].mxu0 %v124
  %v654 = vpop.f32.mrb[0].mxu0
  %v655 = vadd.f32 %v331, %v654
  %v656 = vpop.f32.mrb[0].mxu0
  %657 = vmatprep.mubr.f32.mxu0 %v130
  %658 = vmatmul.mubr.f32.gmra.mrb[0].mxu0 %v129
  %v659 = vpop.f32.mrb[0].mxu0
  %v660 = vadd.f32 %v331, %v659
  %v661 = vpop.f32.mrb[0].mxu0
  %662 = vmatprep.mubr.f32.mxu0 %v135
  %663 = vmatmul.mubr.f32.gmra.mrb[0].mxu0 %v134
  %v664 = vpop.f32.mrb[0].mxu0
  %v665 = vadd.f32 %v331, %v664
  %v666 = vpop.f32.mrb[0].mxu0
  %667 = vmatprep.mubr.f32.mxu0 %v140
  %668 = vmatmul.mubr.f32.gmra.mrb[0].mxu0 %v139
  %v669 = vpop.f32.mrb[0].mxu0
  %v670 = vadd.f32 %v331, %v669
  %v671 = vpop.f32.mrb[0].mxu0
  %672 = vmatprep.mubr.f32.mxu0 %v145
  %673 = vmatmul.mubr.f32.gmra.mrb[0].mxu0 %v144
  %v674 = vpop.f32.mrb[0].mxu0
  %v675 = vadd.f32 %v331, %v674
  %v676 = vpop.f32.mrb[0].mxu0
  %677 = vmatprep.mubr.f32.mxu0 %v150
  %678 = vmatmul.mubr.f32.gmra.mrb[0].mxu0 %v149
  %v679 = vpop.f32.mrb[0].mxu0
  %v680 = vadd.f32 %v331, %v679
  %v681 = vpop.f32.mrb[0].mxu0
  %682 = vmatprep.mubr.f32.mxu0 %v155
  %683 = vmatmul.mubr.f32.gmra.mrb[0].mxu0 %v154
  %v684 = vpop.f32.mrb[0].mxu0
  %v685 = vadd.f32 %v331, %v684
  %v686 = vpop.f32.mrb[0].mxu0
  %687 = vmatprep.mubr.f32.mxu0 %v160
  %688 = vmatmul.mubr.f32.gmra.mrb[0].mxu0 %v159
  %v689 = vpop.f32.mrb[0].mxu0
  %v690 = vadd.f32 %v331, %v689
  %v691 = vpop.f32.mrb[0].mxu0
  %692 = vmatprep.mubr.f32.mxu0 %v165
  %693 = vmatmul.mubr.f32.gmra.mrb[0].mxu0 %v164
  %v694 = vpop.f32.mrb[0].mxu0
  %v695 = vadd.f32 %v331, %v694
  %v696 = vpop.f32.mrb[0].mxu0
  %697 = vmatprep.mubr.f32.mxu0 %v170
  %698 = vmatmul.mubr.f32.gmra.mrb[0].mxu0 %v169
  %v699 = vpop.f32.mrb[0].mxu0
  %v700 = vadd.f32 %v331, %v699
  %v701 = vpop.f32.mrb[0].mxu0
  %702 = vmatprep.mubr.f32.mxu0 %v175
  %703 = vmatmul.mubr.f32.gmra.mrb[0].mxu0 %v174
  %v704 = vpop.f32.mrb[0].mxu0
  %v705 = vadd.f32 %v331, %v704
  %v706 = vpop.f32.mrb[0].mxu0
  %707 = vmatprep.mubr.f32.mxu0 %v180
  %708 = vmatmul.mubr.f32.gmra.mrb[0].mxu0 %v179
  %v709 = vpop.f32.mrb[0].mxu0
  %v710 = vadd.f32 %v331, %v709
  %v711 = vpop.f32.mrb[0].mxu0
  %712 = vmatprep.mubr.f32.mxu0 %v185
  %713 = vmatmul.mubr.f32.gmra.mrb[0].mxu0 %v184
  %v714 = vpop.f32.mrb[0].mxu0
  %v715 = vadd.f32 %v331, %v714
  %v716 = vpop.f32.mrb[0].mxu0
  %717 = vmatprep.mubr.f32.mxu0 %v190
  %718 = vmatmul.mubr.f32.gmra.mrb[0].mxu0 %v189
  %v719 = vpop.f32.mrb[0].mxu0
  %v720 = vadd.f32 %v331, %v719
  %v721 = vpop.f32.mrb[0].mxu0
  %722 = vmatprep.mubr.f32.mxu0 %v195
  %723 = vmatmul.mubr.f32.gmra.mrb[0].mxu0 %v194
  %v724 = vpop.f32.mrb[0].mxu0
  %v725 = vadd.f32 %v331, %v724
  %v726 = vpop.f32.mrb[0].mxu0
  %727 = vmatprep.mubr.f32.mxu0 %v200
  %728 = vmatmul.mubr.f32.gmra.mrb[0].mxu0 %v199
  %v729 = vpop.f32.mrb[0].mxu0
  %v730 = vadd.f32 %v331, %v729
  %v731 = vpop.f32.mrb[0].mxu0
  %732 = vmatprep.mubr.f32.mxu0 %v205
  %733 = vmatmul.mubr.f32.gmra.mrb[0].mxu0 %v204
  %v734 = vpop.f32.mrb[0].mxu0
  %v735 = vadd.f32 %v331, %v734
  %v736 = vpop.f32.mrb[0].mxu0
  %737 = vmatprep.mubr.f32.mxu0 %v210
  %738 = vmatmul.mubr.f32.gmra.mrb[0].mxu0 %v209
  %v739 = vpop.f32.mrb[0].mxu0
  %v740 = vadd.f32 %v331, %v739
  %v741 = vpop.f32.mrb[0].mxu0
  %742 = vmatprep.mubr.f32.mxu0 %v215
  %743 = vmatmul.mubr.f32.gmra.mrb[0].mxu0 %v214
  %v744 = vpop.f32.mrb[0].mxu0
  %v745 = vadd.f32 %v331, %v744
  %v746 = vpop.f32.mrb[0].mxu0
  %747 = vmatprep.mubr.f32.mxu0 %v220
  %748 = vmatmul.mubr.f32.gmra.mrb[0].mxu0 %v219
  %v749 = vpop.f32.mrb[0].mxu0
  %v750 = vadd.f32 %v331, %v749
  %v751 = vpop.f32.mrb[0].mxu0
  %752 = vmatprep.mubr.f32.mxu0 %v225
  %753 = vmatmul.mubr.f32.gmra.mrb[0].mxu0 %v224
  %v754 = vpop.f32.mrb[0].mxu0
  %v755 = vadd.f32 %v331, %v754
  %v756 = vpop.f32.mrb[0].mxu0
  %757 = vmatprep.mubr.f32.mxu0 %v230
  %758 = vmatmul.mubr.f32.gmra.mrb[0].mxu0 %v229
  %v759 = vpop.f32.mrb[0].mxu0
  %v760 = vadd.f32 %v331, %v759
  %v761 = vpop.f32.mrb[0].mxu0
  %762 = vmatprep.mubr.f32.mxu0 %v235
  %763 = vmatmul.mubr.f32.gmra.mrb[0].mxu0 %v234
  %v764 = vpop.f32.mrb[0].mxu0
  %v765 = vadd.f32 %v331, %v764
  %v766 = vpop.f32.mrb[0].mxu0
  %767 = vmatprep.mubr.f32.mxu0 %v240
  %768 = vmatmul.mubr.f32.gmra.mrb[0].mxu0 %v239
  %v769 = vpop.f32.mrb[0].mxu0
  %v770 = vadd.f32 %v331, %v769
  %v771 = vpop.f32.mrb[0].mxu0
  %772 = vmatprep.mubr.f32.mxu0 %v245
  %773 = vmatmul.mubr.f32.gmra.mrb[0].mxu0 %v244
  %v774 = vpop.f32.mrb[0].mxu0
  %v775 = vadd.f32 %v331, %v774
  %v776 = vpop.f32.mrb[0].mxu0
  %777 = vmatprep.mubr.f32.mxu0 %v250
  %778 = vmatmul.mubr.f32.gmra.mrb[0].mxu0 %v249
  %v779 = vpop.f32.mrb[0].mxu0
  %v780 = vadd.f32 %v331, %v779
  %v781 = vpop.f32.mrb[0].mxu0
  %782 = vdwg.mxu0
  %783 = vmatprep.subr.mxu0 0.0
  %784 = vmatpush1.msra.mxu0 %v286
  %785 = vmatprep.subr.mxu0 0.0
  %786 = vmatpush1.msra.mxu0 %v287
  %787 = vmatprep.subr.mxu0 0.0
  %788 = vmatpush1.msra.mxu0 %v288
  %789 = vmatprep.subr.mxu0 0.0
  %790 = vmatpush1.msra.mxu0 %v289
  %791 = vmatprep.subr.mxu0 0.0
  %792 = vmatpush1.msra.mxu0 %v290
  %793 = vmatprep.subr.mxu0 0.0
  %794 = vmatpush1.msra.mxu0 %v291
  %795 = vmatprep.subr.mxu0 0.0
  %796 = vmatpush1.msra.mxu0 %v292
  %797 = vmatprep.subr.mxu0 0.0
  %798 = vmatpush1.msra.mxu0 %v293
  %799 = vmatprep.subr.mxu0 0.0
  %800 = vmatpush1.msra.mxu0 %v294
  %801 = vmatprep.subr.mxu0 0.0
  %802 = vmatpush1.msra.mxu0 %v295
  %803 = vmatprep.subr.mxu0 0.0
  %804 = vmatpush1.msra.mxu0 %v296
  %805 = vmatprep.subr.mxu0 0.0
  %806 = vmatpush1.msra.mxu0 %v297
  %807 = vmatprep.subr.mxu0 0.0
  %808 = vmatpush1.msra.mxu0 %v298
  %809 = vmatprep.subr.mxu0 0.0
  %810 = vmatpush1.msra.mxu0 %v299
  %811 = vmatprep.subr.mxu0 0.0
  %812 = vmatpush1.msra.mxu0 %v300
  %813 = vmatprep.subr.mxu0 0.0
  %814 = vmatpush1.msra.mxu0 %v301
  %815 = vmatprep.subr.mxu0 0.0
  %816 = vmatpush1.msra.mxu0 %v302
  %817 = vmatprep.subr.mxu0 0.0
  %818 = vmatpush1.msra.mxu0 %v303
  %819 = vmatprep.subr.mxu0 0.0
  %820 = vmatpush1.msra.mxu0 %v304
  %821 = vmatprep.subr.mxu0 0.0
  %822 = vmatpush1.msra.mxu0 %v305
  %823 = vmatprep.subr.mxu0 0.0
  %824 = vmatpush1.msra.mxu0 %v306
  %825 = vmatprep.subr.mxu0 0.0
  %826 = vmatpush1.msra.mxu0 %v307
  %827 = vmatprep.subr.mxu0 0.0
  %828 = vmatpush1.msra.mxu0 %v308
  %829 = vmatprep.subr.mxu0 0.0
  %830 = vmatpush1.msra.mxu0 %v309
  %831 = vmatprep.subr.mxu0 0.0
  %832 = vmatpush1.msra.mxu0 %v310
  %833 = vmatprep.subr.mxu0 0.0
  %834 = vmatpush1.msra.mxu0 %v311
  %835 = vmatprep.subr.mxu0 0.0
  %836 = vmatpush1.msra.mxu0 %v312
  %837 = vmatprep.subr.mxu0 0.0
  %838 = vmatpush1.msra.mxu0 %v313
  %839 = vmatprep.subr.mxu0 0.0
  %840 = vmatpush1.msra.mxu0 %v314
  %841 = vmatprep.subr.mxu0 0.0
  %842 = vmatpush1.msra.mxu0 %v315
  %843 = vmatprep.subr.mxu0 0.0
  %844 = vmatpush1.msra.mxu0 %v316
  %845 = vmatprep.subr.mxu0 0.0
  %846 = vmatpush1.msra.mxu0 %v317
  %847 = vmatprep.mubr.f32.mxu0 %v17
  %848 = vmatmul.mubr.f32.gmra.mrb[0].mxu0 %v16
  %v849 = vpop.f32.mrb[0].mxu0
  %v850 = vadd.f32 %v545, %v849
  %v851 = vpop.f32.mrb[0].mxu0
  %852 = vmatprep.mubr.f32.mxu0 %v22
  %853 = vmatmul.mubr.f32.gmra.mrb[0].mxu0 %v21
  %v854 = vpop.f32.mrb[0].mxu0
  %v855 = vadd.f32 %v550, %v854
  %v856 = vpop.f32.mrb[0].mxu0
  %857 = vmatprep.mubr.f32.mxu0 %v27
  %858 = vmatmul.mubr.f32.gmra.mrb[0].mxu0 %v26
  %v859 = vpop.f32.mrb[0].mxu0
  %v860 = vadd.f32 %v555, %v859
  %v861 = vpop.f32.mrb[0].mxu0
  %862 = vmatprep.mubr.f32.mxu0 %v32
  %863 = vmatmul.mubr.f32.gmra.mrb[0].mxu0 %v31
  %v864 = vpop.f32.mrb[0].mxu0
  %v865 = vadd.f32 %v560, %v864
  %v866 = vpop.f32.mrb[0].mxu0
  %867 = vmatprep.mubr.f32.mxu0 %v37
  %868 = vmatmul.mubr.f32.gmra.mrb[0].mxu0 %v36
  %v869 = vpop.f32.mrb[0].mxu0
  %v870 = vadd.f32 %v565, %v869
  %v871 = vpop.f32.mrb[0].mxu0
  %872 = vmatprep.mubr.f32.mxu0 %v42
  %873 = vmatmul.mubr.f32.gmra.mrb[0].mxu0 %v41
  %v874 = vpop.f32.mrb[0].mxu0
  %v875 = vadd.f32 %v570, %v874
  %v876 = vpop.f32.mrb[0].mxu0
  %877 = vmatprep.mubr.f32.mxu0 %v47
  %878 = vmatmul.mubr.f32.gmra.mrb[0].mxu0 %v46
  %v879 = vpop.f32.mrb[0].mxu0
  %v880 = vadd.f32 %v575, %v879
  %v881 = vpop.f32.mrb[0].mxu0
  %882 = vmatprep.mubr.f32.mxu0 %v52
  %883 = vmatmul.mubr.f32.gmra.mrb[0].mxu0 %v51
  %v884 = vpop.f32.mrb[0].mxu0
  %v885 = vadd.f32 %v580, %v884
  %v886 = vpop.f32.mrb[0].mxu0
  %887 = vmatprep.mubr.f32.mxu0 %v57
  %888 = vmatmul.mubr.f32.gmra.mrb[0].mxu0 %v56
  %v889 = vpop.f32.mrb[0].mxu0
  %v890 = vadd.f32 %v585, %v889
  %v891 = vpop.f32.mrb[0].mxu0
  %892 = vmatprep.mubr.f32.mxu0 %v62
  %893 = vmatmul.mubr.f32.gmra.mrb[0].mxu0 %v61
  %v894 = vpop.f32.mrb[0].mxu0
  %v895 = vadd.f32 %v590, %v894
  %v896 = vpop.f32.mrb[0].mxu0
  %897 = vmatprep.mubr.f32.mxu0 %v67
  %898 = vmatmul.mubr.f32.gmra.mrb[0].mxu0 %v66
  %v899 = vpop.f32.mrb[0].mxu0
  %v900 = vadd.f32 %v595, %v899
  %v901 = vpop.f32.mrb[0].mxu0
  %902 = vmatprep.mubr.f32.mxu0 %v72
  %903 = vmatmul.mubr.f32.gmra.mrb[0].mxu0 %v71
  %v904 = vpop.f32.mrb[0].mxu0
  %v905 = vadd.f32 %v600, %v904
  %v906 = vpop.f32.mrb[0].mxu0
  %907 = vmatprep.mubr.f32.mxu0 %v77
  %908 = vmatmul.mubr.f32.gmra.mrb[0].mxu0 %v76
  %v909 = vpop.f32.mrb[0].mxu0
  %v910 = vadd.f32 %v605, %v909
  %v911 = vpop.f32.mrb[0].mxu0
  %912 = vmatprep.mubr.f32.mxu0 %v82
  %913 = vmatmul.mubr.f32.gmra.mrb[0].mxu0 %v81
  %v914 = vpop.f32.mrb[0].mxu0
  %v915 = vadd.f32 %v610, %v914
  %v916 = vpop.f32.mrb[0].mxu0
  %917 = vmatprep.mubr.f32.mxu0 %v87
  %918 = vmatmul.mubr.f32.gmra.mrb[0].mxu0 %v86
  %v919 = vpop.f32.mrb[0].mxu0
  %v920 = vadd.f32 %v615, %v919
  %v921 = vpop.f32.mrb[0].mxu0
  %922 = vmatprep.mubr.f32.mxu0 %v92
  %923 = vmatmul.mubr.f32.gmra.mrb[0].mxu0 %v91
  %v924 = vpop.f32.mrb[0].mxu0
  %v925 = vadd.f32 %v620, %v924
  %v926 = vpop.f32.mrb[0].mxu0
  %927 = vmatprep.mubr.f32.mxu0 %v97
  %928 = vmatmul.mubr.f32.gmra.mrb[0].mxu0 %v96
  %v929 = vpop.f32.mrb[0].mxu0
  %v930 = vadd.f32 %v625, %v929
  %v931 = vpop.f32.mrb[0].mxu0
  %932 = vmatprep.mubr.f32.mxu0 %v102
  %933 = vmatmul.mubr.f32.gmra.mrb[0].mxu0 %v101
  %v934 = vpop.f32.mrb[0].mxu0
  %v935 = vadd.f32 %v630, %v934
  %v936 = vpop.f32.mrb[0].mxu0
  %937 = vmatprep.mubr.f32.mxu0 %v107
  %938 = vmatmul.mubr.f32.gmra.mrb[0].mxu0 %v106
  %v939 = vpop.f32.mrb[0].mxu0
  %v940 = vadd.f32 %v635, %v939
  %v941 = vpop.f32.mrb[0].mxu0
  %942 = vmatprep.mubr.f32.mxu0 %v112
  %943 = vmatmul.mubr.f32.gmra.mrb[0].mxu0 %v111
  %v944 = vpop.f32.mrb[0].mxu0
  %v945 = vadd.f32 %v640, %v944
  %v946 = vpop.f32.mrb[0].mxu0
  %947 = vmatprep.mubr.f32.mxu0 %v117
  %948 = vmatmul.mubr.f32.gmra.mrb[0].mxu0 %v116
  %v949 = vpop.f32.mrb[0].mxu0
  %v950 = vadd.f32 %v645, %v949
  %v951 = vpop.f32.mrb[0].mxu0
  %952 = vmatprep.mubr.f32.mxu0 %v122
  %953 = vmatmul.mubr.f32.gmra.mrb[0].mxu0 %v121
  %v954 = vpop.f32.mrb[0].mxu0
  %v955 = vadd.f32 %v650, %v954
  %v956 = vpop.f32.mrb[0].mxu0
  %957 = vmatprep.mubr.f32.mxu0 %v127
  %958 = vmatmul.mubr.f32.gmra.mrb[0].mxu0 %v126
  %v959 = vpop.f32.mrb[0].mxu0
  %v960 = vadd.f32 %v655, %v959
  %v961 = vpop.f32.mrb[0].mxu0
  %962 = vmatprep.mubr.f32.mxu0 %v132
  %963 = vmatmul.mubr.f32.gmra.mrb[0].mxu0 %v131
  %v964 = vpop.f32.mrb[0].mxu0
  %v965 = vadd.f32 %v660, %v964
  %v966 = vpop.f32.mrb[0].mxu0
  %967 = vmatprep.mubr.f32.mxu0 %v137
  %968 = vmatmul.mubr.f32.gmra.mrb[0].mxu0 %v136
  %v969 = vpop.f32.mrb[0].mxu0
  %v970 = vadd.f32 %v665, %v969
  %v971 = vpop.f32.mrb[0].mxu0
  %972 = vmatprep.mubr.f32.mxu0 %v142
  %973 = vmatmul.mubr.f32.gmra.mrb[0].mxu0 %v141
  %v974 = vpop.f32.mrb[0].mxu0
  %v975 = vadd.f32 %v670, %v974
  %v976 = vpop.f32.mrb[0].mxu0
  %977 = vmatprep.mubr.f32.mxu0 %v147
  %978 = vmatmul.mubr.f32.gmra.mrb[0].mxu0 %v146
  %v979 = vpop.f32.mrb[0].mxu0
  %v980 = vadd.f32 %v675, %v979
  %v981 = vpop.f32.mrb[0].mxu0
  %982 = vmatprep.mubr.f32.mxu0 %v152
  %983 = vmatmul.mubr.f32.gmra.mrb[0].mxu0 %v151
  %v984 = vpop.f32.mrb[0].mxu0
  %v985 = vadd.f32 %v680, %v984
  %v986 = vpop.f32.mrb[0].mxu0
  %987 = vmatprep.mubr.f32.mxu0 %v157
  %988 = vmatmul.mubr.f32.gmra.mrb[0].mxu0 %v156
  %v989 = vpop.f32.mrb[0].mxu0
  %v990 = vadd.f32 %v685, %v989
  %v991 = vpop.f32.mrb[0].mxu0
  %992 = vmatprep.mubr.f32.mxu0 %v162
  %993 = vmatmul.mubr.f32.gmra.mrb[0].mxu0 %v161
  %v994 = vpop.f32.mrb[0].mxu0
  %v995 = vadd.f32 %v690, %v994
  %v996 = vpop.f32.mrb[0].mxu0
  %997 = vmatprep.mubr.f32.mxu0 %v167
  %998 = vmatmul.mubr.f32.gmra.mrb[0].mxu0 %v166
  %v999 = vpop.f32.mrb[0].mxu0
  %v1000 = vadd.f32 %v695, %v999
  %v1001 = vpop.f32.mrb[0].mxu0
  %1002 = vmatprep.mubr.f32.mxu0 %v172
  %1003 = vmatmul.mubr.f32.gmra.mrb[0].mxu0 %v171
  %v1004 = vpop.f32.mrb[0].mxu0
  %v1005 = vadd.f32 %v700, %v1004
  %v1006 = vpop.f32.mrb[0].mxu0
  %1007 = vmatprep.mubr.f32.mxu0 %v177
  %1008 = vmatmul.mubr.f32.gmra.mrb[0].mxu0 %v176
  %v1009 = vpop.f32.mrb[0].mxu0
  %v1010 = vadd.f32 %v705, %v1009
  %v1011 = vpop.f32.mrb[0].mxu0
  %1012 = vmatprep.mubr.f32.mxu0 %v182
  %1013 = vmatmul.mubr.f32.gmra.mrb[0].mxu0 %v181
  %v1014 = vpop.f32.mrb[0].mxu0
  %v1015 = vadd.f32 %v710, %v1014
  %v1016 = vpop.f32.mrb[0].mxu0
  %1017 = vmatprep.mubr.f32.mxu0 %v187
  %1018 = vmatmul.mubr.f32.gmra.mrb[0].mxu0 %v186
  %v1019 = vpop.f32.mrb[0].mxu0
  %v1020 = vadd.f32 %v715, %v1019
  %v1021 = vpop.f32.mrb[0].mxu0
  %1022 = vmatprep.mubr.f32.mxu0 %v192
  %1023 = vmatmul.mubr.f32.gmra.mrb[0].mxu0 %v191
  %v1024 = vpop.f32.mrb[0].mxu0
  %v1025 = vadd.f32 %v720, %v1024
  %v1026 = vpop.f32.mrb[0].mxu0
  %1027 = vmatprep.mubr.f32.mxu0 %v197
  %1028 = vmatmul.mubr.f32.gmra.mrb[0].mxu0 %v196
  %v1029 = vpop.f32.mrb[0].mxu0
  %v1030 = vadd.f32 %v725, %v1029
  %v1031 = vpop.f32.mrb[0].mxu0
  %1032 = vmatprep.mubr.f32.mxu0 %v202
  %1033 = vmatmul.mubr.f32.gmra.mrb[0].mxu0 %v201
  %v1034 = vpop.f32.mrb[0].mxu0
  %v1035 = vadd.f32 %v730, %v1034
  %v1036 = vpop.f32.mrb[0].mxu0
  %1037 = vmatprep.mubr.f32.mxu0 %v207
  %1038 = vmatmul.mubr.f32.gmra.mrb[0].mxu0 %v206
  %v1039 = vpop.f32.mrb[0].mxu0
  %v1040 = vadd.f32 %v735, %v1039
  %v1041 = vpop.f32.mrb[0].mxu0
  %1042 = vmatprep.mubr.f32.mxu0 %v212
  %1043 = vmatmul.mubr.f32.gmra.mrb[0].mxu0 %v211
  %v1044 = vpop.f32.mrb[0].mxu0
  %v1045 = vadd.f32 %v740, %v1044
  %v1046 = vpop.f32.mrb[0].mxu0
  %1047 = vmatprep.mubr.f32.mxu0 %v217
  %1048 = vmatmul.mubr.f32.gmra.mrb[0].mxu0 %v216
  %v1049 = vpop.f32.mrb[0].mxu0
  %v1050 = vadd.f32 %v745, %v1049
  %v1051 = vpop.f32.mrb[0].mxu0
  %1052 = vmatprep.mubr.f32.mxu0 %v222
  %1053 = vmatmul.mubr.f32.gmra.mrb[0].mxu0 %v221
  %v1054 = vpop.f32.mrb[0].mxu0
  %v1055 = vadd.f32 %v750, %v1054
  %v1056 = vpop.f32.mrb[0].mxu0
  %1057 = vmatprep.mubr.f32.mxu0 %v227
  %1058 = vmatmul.mubr.f32.gmra.mrb[0].mxu0 %v226
  %v1059 = vpop.f32.mrb[0].mxu0
  %v1060 = vadd.f32 %v755, %v1059
  %v1061 = vpop.f32.mrb[0].mxu0
  %1062 = vmatprep.mubr.f32.mxu0 %v232
  %1063 = vmatmul.mubr.f32.gmra.mrb[0].mxu0 %v231
  %v1064 = vpop.f32.mrb[0].mxu0
  %v1065 = vadd.f32 %v760, %v1064
  %v1066 = vpop.f32.mrb[0].mxu0
  %1067 = vmatprep.mubr.f32.mxu0 %v237
  %1068 = vmatmul.mubr.f32.gmra.mrb[0].mxu0 %v236
  %v1069 = vpop.f32.mrb[0].mxu0
  %v1070 = vadd.f32 %v765, %v1069
  %v1071 = vpop.f32.mrb[0].mxu0
  %1072 = vmatprep.mubr.f32.mxu0 %v242
  %1073 = vmatmul.mubr.f32.gmra.mrb[0].mxu0 %v241
  %v1074 = vpop.f32.mrb[0].mxu0
  %v1075 = vadd.f32 %v770, %v1074
  %v1076 = vpop.f32.mrb[0].mxu0
  %1077 = vmatprep.mubr.f32.mxu0 %v247
  %1078 = vmatmul.mubr.f32.gmra.mrb[0].mxu0 %v246
  %v1079 = vpop.f32.mrb[0].mxu0
  %v1080 = vadd.f32 %v775, %v1079
  %v1081 = vpop.f32.mrb[0].mxu0
  %1082 = vmatprep.mubr.f32.mxu0 %v252
  %1083 = vmatmul.mubr.f32.gmra.mrb[0].mxu0 %v251
  %v1084 = vpop.f32.mrb[0].mxu0
  %v1085 = vadd.f32 %v780, %v1084
  %v1086 = vpop.f32.mrb[0].mxu0
  %1087 = vdwg.mxu0
  %1088 = vmatprep.subr.mxu0 0.0
  %1089 = vmatpush1.msra.mxu0 %v318
  %1090 = vmatprep.subr.mxu0 0.0
  %1091 = vmatpush1.msra.mxu0 %v319
  %1092 = vmatprep.subr.mxu0 0.0
  %1093 = vmatpush1.msra.mxu0 %v320
  %1094 = vmatprep.subr.mxu0 0.0
  %1095 = vmatpush1.msra.mxu0 %v321
  %1096 = vmatprep.subr.mxu0 0.0
  %1097 = vmatpush1.msra.mxu0 %v322
  %1098 = vmatprep.subr.mxu0 0.0
  %1099 = vmatpush1.msra.mxu0 %v323
  %1100 = vmatprep.subr.mxu0 0.0
  %1101 = vmatpush1.msra.mxu0 %v324
  %1102 = vmatprep.subr.mxu0 0.0
  %1103 = vmatpush1.msra.mxu0 %v325
  %1104 = vmatprep.subr.mxu0 0.0
  %1105 = vmatpush1.msra.mxu0 0.0
  %1106 = vmatprep.subr.mxu0 0.0
  %1107 = vmatpush1.msra.mxu0 0.0
  %1108 = vmatprep.subr.mxu0 0.0
  %1109 = vmatpush1.msra.mxu0 0.0
  %1110 = vmatprep.subr.mxu0 0.0
  %1111 = vmatpush1.msra.mxu0 0.0
  %1112 = vmatprep.subr.mxu0 0.0
  %1113 = vmatpush1.msra.mxu0 0.0
  %1114 = vmatprep.subr.mxu0 0.0
  %1115 = vmatpush1.msra.mxu0 0.0
  %1116 = vmatprep.subr.mxu0 0.0
  %1117 = vmatpush1.msra.mxu0 0.0
  %1118 = vmatprep.subr.mxu0 0.0
  %1119 = vmatpush1.msra.mxu0 0.0
  %1120 = vmatprep.subr.mxu0 0.0
  %1121 = vmatpush1.msra.mxu0 0.0
  %1122 = vmatprep.subr.mxu0 0.0
  %1123 = vmatpush1.msra.mxu0 0.0
  %1124 = vmatprep.subr.mxu0 0.0
  %1125 = vmatpush1.msra.mxu0 0.0
  %1126 = vmatprep.subr.mxu0 0.0
  %1127 = vmatpush1.msra.mxu0 0.0
  %1128 = vmatprep.subr.mxu0 0.0
  %1129 = vmatpush1.msra.mxu0 0.0
  %1130 = vmatprep.subr.mxu0 0.0
  %1131 = vmatpush1.msra.mxu0 0.0
  %1132 = vmatprep.subr.mxu0 0.0
  %1133 = vmatpush1.msra.mxu0 0.0
  %1134 = vmatprep.subr.mxu0 0.0
  %1135 = vmatpush1.msra.mxu0 0.0
  %1136 = vmatprep.subr.mxu0 0.0
  %1137 = vmatpush1.msra.mxu0 0.0
  %1138 = vmatprep.subr.mxu0 0.0
  %1139 = vmatpush1.msra.mxu0 0.0
  %1140 = vmatprep.subr.mxu0 0.0
  %1141 = vmatpush1.msra.mxu0 0.0
  %1142 = vmatprep.subr.mxu0 0.0
  %1143 = vmatpush1.msra.mxu0 0.0
  %1144 = vmatprep.subr.mxu0 0.0
  %1145 = vmatpush1.msra.mxu0 0.0
  %1146 = vmatprep.subr.mxu0 0.0
  %1147 = vmatpush1.msra.mxu0 0.0
  %1148 = vmatprep.subr.mxu0 0.0
  %1149 = vmatpush1.msra.mxu0 0.0
  %1150 = vmatprep.subr.mxu0 0.0
  %1151 = vmatpush1.msra.mxu0 0.0
  %1152 = vmatprep.mubr.f32.mxu0 0.0
  %1153 = vmatmul.mubr.f32.gmra.mrb[0].mxu0 %v335
  %v1154 = vpop.f32.mrb[0].mxu0
  %v1155 = vadd.f32 %v850, %v1154
  %v1156 = vpop.f32.mrb[0].mxu0
  %1157 = vmatprep.mubr.f32.mxu0 0.0
  %1158 = vmatmul.mubr.f32.gmra.mrb[0].mxu0 %v338
  %v1159 = vpop.f32.mrb[0].mxu0
  %v1160 = vadd.f32 %v855, %v1159
  %v1161 = vpop.f32.mrb[0].mxu0
  %1162 = vmatprep.mubr.f32.mxu0 0.0
  %1163 = vmatmul.mubr.f32.gmra.mrb[0].mxu0 %v341
  %v1164 = vpop.f32.mrb[0].mxu0
  %v1165 = vadd.f32 %v860, %v1164
  %v1166 = vpop.f32.mrb[0].mxu0
  %1167 = vmatprep.mubr.f32.mxu0 0.0
  %1168 = vmatmul.mubr.f32.gmra.mrb[0].mxu0 %v344
  %v1169 = vpop.f32.mrb[0].mxu0
  %v1170 = vadd.f32 %v865, %v1169
  %v1171 = vpop.f32.mrb[0].mxu0
  %1172 = vmatprep.mubr.f32.mxu0 0.0
  %1173 = vmatmul.mubr.f32.gmra.mrb[0].mxu0 %v347
  %v1174 = vpop.f32.mrb[0].mxu0
  %v1175 = vadd.f32 %v870, %v1174
  %v1176 = vpop.f32.mrb[0].mxu0
  %1177 = vmatprep.mubr.f32.mxu0 0.0
  %1178 = vmatmul.mubr.f32.gmra.mrb[0].mxu0 %v350
  %v1179 = vpop.f32.mrb[0].mxu0
  %v1180 = vadd.f32 %v875, %v1179
  %v1181 = vpop.f32.mrb[0].mxu0
  %1182 = vmatprep.mubr.f32.mxu0 0.0
  %1183 = vmatmul.mubr.f32.gmra.mrb[0].mxu0 %v353
  %v1184 = vpop.f32.mrb[0].mxu0
  %v1185 = vadd.f32 %v880, %v1184
  %v1186 = vpop.f32.mrb[0].mxu0
  %1187 = vmatprep.mubr.f32.mxu0 0.0
  %1188 = vmatmul.mubr.f32.gmra.mrb[0].mxu0 %v356
  %v1189 = vpop.f32.mrb[0].mxu0
  %v1190 = vadd.f32 %v885, %v1189
  %v1191 = vpop.f32.mrb[0].mxu0
  %1192 = vmatprep.mubr.f32.mxu0 0.0
  %1193 = vmatmul.mubr.f32.gmra.mrb[0].mxu0 %v359
  %v1194 = vpop.f32.mrb[0].mxu0
  %v1195 = vadd.f32 %v890, %v1194
  %v1196 = vpop.f32.mrb[0].mxu0
  %1197 = vmatprep.mubr.f32.mxu0 0.0
  %1198 = vmatmul.mubr.f32.gmra.mrb[0].mxu0 %v362
  %v1199 = vpop.f32.mrb[0].mxu0
  %v1200 = vadd.f32 %v895, %v1199
  %v1201 = vpop.f32.mrb[0].mxu0
  %1202 = vmatprep.mubr.f32.mxu0 0.0
  %1203 = vmatmul.mubr.f32.gmra.mrb[0].mxu0 %v365
  %v1204 = vpop.f32.mrb[0].mxu0
  %v1205 = vadd.f32 %v900, %v1204
  %v1206 = vpop.f32.mrb[0].mxu0
  %1207 = vmatprep.mubr.f32.mxu0 0.0
  %1208 = vmatmul.mubr.f32.gmra.mrb[0].mxu0 %v368
  %v1209 = vpop.f32.mrb[0].mxu0
  %v1210 = vadd.f32 %v905, %v1209
  %v1211 = vpop.f32.mrb[0].mxu0
  %1212 = vmatprep.mubr.f32.mxu0 0.0
  %1213 = vmatmul.mubr.f32.gmra.mrb[0].mxu0 %v371
  %v1214 = vpop.f32.mrb[0].mxu0
  %v1215 = vadd.f32 %v910, %v1214
  %v1216 = vpop.f32.mrb[0].mxu0
  %1217 = vmatprep.mubr.f32.mxu0 0.0
  %1218 = vmatmul.mubr.f32.gmra.mrb[0].mxu0 %v374
  %v1219 = vpop.f32.mrb[0].mxu0
  %v1220 = vadd.f32 %v915, %v1219
  %v1221 = vpop.f32.mrb[0].mxu0
  %1222 = vmatprep.mubr.f32.mxu0 0.0
  %1223 = vmatmul.mubr.f32.gmra.mrb[0].mxu0 %v377
  %v1224 = vpop.f32.mrb[0].mxu0
  %v1225 = vadd.f32 %v920, %v1224
  %v1226 = vpop.f32.mrb[0].mxu0
  %1227 = vmatprep.mubr.f32.mxu0 0.0
  %1228 = vmatmul.mubr.f32.gmra.mrb[0].mxu0 %v380
  %v1229 = vpop.f32.mrb[0].mxu0
  %v1230 = vadd.f32 %v925, %v1229
  %v1231 = vpop.f32.mrb[0].mxu0
  %1232 = vmatprep.mubr.f32.mxu0 0.0
  %1233 = vmatmul.mubr.f32.gmra.mrb[0].mxu0 %v383
  %v1234 = vpop.f32.mrb[0].mxu0
  %v1235 = vadd.f32 %v930, %v1234
  %v1236 = vpop.f32.mrb[0].mxu0
  %1237 = vmatprep.mubr.f32.mxu0 0.0
  %1238 = vmatmul.mubr.f32.gmra.mrb[0].mxu0 %v386
  %v1239 = vpop.f32.mrb[0].mxu0
  %v1240 = vadd.f32 %v935, %v1239
  %v1241 = vpop.f32.mrb[0].mxu0
  %1242 = vmatprep.mubr.f32.mxu0 0.0
  %1243 = vmatmul.mubr.f32.gmra.mrb[0].mxu0 %v389
  %v1244 = vpop.f32.mrb[0].mxu0
  %v1245 = vadd.f32 %v940, %v1244
  %v1246 = vpop.f32.mrb[0].mxu0
  %1247 = vmatprep.mubr.f32.mxu0 0.0
  %1248 = vmatmul.mubr.f32.gmra.mrb[0].mxu0 %v392
  %v1249 = vpop.f32.mrb[0].mxu0
  %v1250 = vadd.f32 %v945, %v1249
  %v1251 = vpop.f32.mrb[0].mxu0
  %1252 = vmatprep.mubr.f32.mxu0 0.0
  %1253 = vmatmul.mubr.f32.gmra.mrb[0].mxu0 %v395
  %v1254 = vpop.f32.mrb[0].mxu0
  %v1255 = vadd.f32 %v950, %v1254
  %v1256 = vpop.f32.mrb[0].mxu0
  %1257 = vmatprep.mubr.f32.mxu0 0.0
  %1258 = vmatmul.mubr.f32.gmra.mrb[0].mxu0 %v398
  %v1259 = vpop.f32.mrb[0].mxu0
  %v1260 = vadd.f32 %v955, %v1259
  %v1261 = vpop.f32.mrb[0].mxu0
  %1262 = vmatprep.mubr.f32.mxu0 0.0
  %1263 = vmatmul.mubr.f32.gmra.mrb[0].mxu0 %v401
  %v1264 = vpop.f32.mrb[0].mxu0
  %v1265 = vadd.f32 %v960, %v1264
  %v1266 = vpop.f32.mrb[0].mxu0
  %1267 = vmatprep.mubr.f32.mxu0 0.0
  %1268 = vmatmul.mubr.f32.gmra.mrb[0].mxu0 %v404
  %v1269 = vpop.f32.mrb[0].mxu0
  %v1270 = vadd.f32 %v965, %v1269
  %v1271 = vpop.f32.mrb[0].mxu0
  %1272 = vmatprep.mubr.f32.mxu0 0.0
  %1273 = vmatmul.mubr.f32.gmra.mrb[0].mxu0 %v407
  %v1274 = vpop.f32.mrb[0].mxu0
  %v1275 = vadd.f32 %v970, %v1274
  %v1276 = vpop.f32.mrb[0].mxu0
  %1277 = vmatprep.mubr.f32.mxu0 0.0
  %1278 = vmatmul.mubr.f32.gmra.mrb[0].mxu0 %v410
  %v1279 = vpop.f32.mrb[0].mxu0
  %v1280 = vadd.f32 %v975, %v1279
  %v1281 = vpop.f32.mrb[0].mxu0
  %1282 = vmatprep.mubr.f32.mxu0 0.0
  %1283 = vmatmul.mubr.f32.gmra.mrb[0].mxu0 %v413
  %v1284 = vpop.f32.mrb[0].mxu0
  %v1285 = vadd.f32 %v980, %v1284
  %v1286 = vpop.f32.mrb[0].mxu0
  %1287 = vmatprep.mubr.f32.mxu0 0.0
  %1288 = vmatmul.mubr.f32.gmra.mrb[0].mxu0 %v416
  %v1289 = vpop.f32.mrb[0].mxu0
  %v1290 = vadd.f32 %v985, %v1289
  %v1291 = vpop.f32.mrb[0].mxu0
  %1292 = vmatprep.mubr.f32.mxu0 0.0
  %1293 = vmatmul.mubr.f32.gmra.mrb[0].mxu0 %v419
  %v1294 = vpop.f32.mrb[0].mxu0
  %v1295 = vadd.f32 %v990, %v1294
  %v1296 = vpop.f32.mrb[0].mxu0
  %1297 = vmatprep.mubr.f32.mxu0 0.0
  %1298 = vmatmul.mubr.f32.gmra.mrb[0].mxu0 %v422
  %v1299 = vpop.f32.mrb[0].mxu0
  %v1300 = vadd.f32 %v995, %v1299
  %v1301 = vpop.f32.mrb[0].mxu0
  %1302 = vmatprep.mubr.f32.mxu0 0.0
  %1303 = vmatmul.mubr.f32.gmra.mrb[0].mxu0 %v425
  %v1304 = vpop.f32.mrb[0].mxu0
  %v1305 = vadd.f32 %v1000, %v1304
  %v1306 = vpop.f32.mrb[0].mxu0
  %1307 = vmatprep.mubr.f32.mxu0 0.0
  %1308 = vmatmul.mubr.f32.gmra.mrb[0].mxu0 %v428
  %v1309 = vpop.f32.mrb[0].mxu0
  %v1310 = vadd.f32 %v1005, %v1309
  %v1311 = vpop.f32.mrb[0].mxu0
  %1312 = vmatprep.mubr.f32.mxu0 0.0
  %1313 = vmatmul.mubr.f32.gmra.mrb[0].mxu0 %v431
  %v1314 = vpop.f32.mrb[0].mxu0
  %v1315 = vadd.f32 %v1010, %v1314
  %v1316 = vpop.f32.mrb[0].mxu0
  %1317 = vmatprep.mubr.f32.mxu0 0.0
  %1318 = vmatmul.mubr.f32.gmra.mrb[0].mxu0 %v434
  %v1319 = vpop.f32.mrb[0].mxu0
  %v1320 = vadd.f32 %v1015, %v1319
  %v1321 = vpop.f32.mrb[0].mxu0
  %1322 = vmatprep.mubr.f32.mxu0 0.0
  %1323 = vmatmul.mubr.f32.gmra.mrb[0].mxu0 %v437
  %v1324 = vpop.f32.mrb[0].mxu0
  %v1325 = vadd.f32 %v1020, %v1324
  %v1326 = vpop.f32.mrb[0].mxu0
  %1327 = vmatprep.mubr.f32.mxu0 0.0
  %1328 = vmatmul.mubr.f32.gmra.mrb[0].mxu0 %v440
  %v1329 = vpop.f32.mrb[0].mxu0
  %v1330 = vadd.f32 %v1025, %v1329
  %v1331 = vpop.f32.mrb[0].mxu0
  %1332 = vmatprep.mubr.f32.mxu0 0.0
  %1333 = vmatmul.mubr.f32.gmra.mrb[0].mxu0 %v443
  %v1334 = vpop.f32.mrb[0].mxu0
  %v1335 = vadd.f32 %v1030, %v1334
  %v1336 = vpop.f32.mrb[0].mxu0
  %1337 = vmatprep.mubr.f32.mxu0 0.0
  %1338 = vmatmul.mubr.f32.gmra.mrb[0].mxu0 %v446
  %v1339 = vpop.f32.mrb[0].mxu0
  %v1340 = vadd.f32 %v1035, %v1339
  %v1341 = vpop.f32.mrb[0].mxu0
  %1342 = vmatprep.mubr.f32.mxu0 0.0
  %1343 = vmatmul.mubr.f32.gmra.mrb[0].mxu0 %v449
  %v1344 = vpop.f32.mrb[0].mxu0
  %v1345 = vadd.f32 %v1040, %v1344
  %v1346 = vpop.f32.mrb[0].mxu0
  %1347 = vmatprep.mubr.f32.mxu0 0.0
  %1348 = vmatmul.mubr.f32.gmra.mrb[0].mxu0 %v452
  %v1349 = vpop.f32.mrb[0].mxu0
  %v1350 = vadd.f32 %v1045, %v1349
  %v1351 = vpop.f32.mrb[0].mxu0
  %1352 = vmatprep.mubr.f32.mxu0 0.0
  %1353 = vmatmul.mubr.f32.gmra.mrb[0].mxu0 %v455
  %v1354 = vpop.f32.mrb[0].mxu0
  %v1355 = vadd.f32 %v1050, %v1354
  %v1356 = vpop.f32.mrb[0].mxu0
  %1357 = vmatprep.mubr.f32.mxu0 0.0
  %1358 = vmatmul.mubr.f32.gmra.mrb[0].mxu0 %v458
  %v1359 = vpop.f32.mrb[0].mxu0
  %v1360 = vadd.f32 %v1055, %v1359
  %v1361 = vpop.f32.mrb[0].mxu0
  %1362 = vmatprep.mubr.f32.mxu0 0.0
  %1363 = vmatmul.mubr.f32.gmra.mrb[0].mxu0 %v461
  %v1364 = vpop.f32.mrb[0].mxu0
  %v1365 = vadd.f32 %v1060, %v1364
  %v1366 = vpop.f32.mrb[0].mxu0
  %1367 = vmatprep.mubr.f32.mxu0 0.0
  %1368 = vmatmul.mubr.f32.gmra.mrb[0].mxu0 %v464
  %v1369 = vpop.f32.mrb[0].mxu0
  %v1370 = vadd.f32 %v1065, %v1369
  %v1371 = vpop.f32.mrb[0].mxu0
  %1372 = vmatprep.mubr.f32.mxu0 0.0
  %1373 = vmatmul.mubr.f32.gmra.mrb[0].mxu0 %v467
  %v1374 = vpop.f32.mrb[0].mxu0
  %v1375 = vadd.f32 %v1070, %v1374
  %v1376 = vpop.f32.mrb[0].mxu0
  %1377 = vmatprep.mubr.f32.mxu0 0.0
  %1378 = vmatmul.mubr.f32.gmra.mrb[0].mxu0 %v470
  %v1379 = vpop.f32.mrb[0].mxu0
  %v1380 = vadd.f32 %v1075, %v1379
  %v1381 = vpop.f32.mrb[0].mxu0
  %1382 = vmatprep.mubr.f32.mxu0 0.0
  %1383 = vmatmul.mubr.f32.gmra.mrb[0].mxu0 %v473
  %v1384 = vpop.f32.mrb[0].mxu0
  %v1385 = vadd.f32 %v1080, %v1384
  %v1386 = vpop.f32.mrb[0].mxu0
  %1387 = vmatprep.mubr.f32.mxu0 0.0
  %1388 = vmatmul.mubr.f32.gmra.mrb[0].mxu0 %v476
  %v1389 = vpop.f32.mrb[0].mxu0
  %v1390 = vadd.f32 %v1085, %v1389
  %v1391 = vpop.f32.mrb[0].mxu0
  %1392 = vdwg.mxu0
  %v1393 = vmax.f32 %v1155, 0.0
  %v1394 = vmax.f32 %v1160, 0.0
  %v1395 = vmax.f32 %v1165, 0.0
  %v1396 = vmax.f32 %v1170, 0.0
  %v1397 = vmax.f32 %v1175, 0.0
  %v1398 = vmax.f32 %v1180, 0.0
  %v1399 = vmax.f32 %v1185, 0.0
  %v1400 = vmax.f32 %v1190, 0.0
  %v1401 = vmax.f32 %v1195, 0.0
  %v1402 = vmax.f32 %v1200, 0.0
  %v1403 = vmax.f32 %v1205, 0.0
  %v1404 = vmax.f32 %v1210, 0.0
  %v1405 = vmax.f32 %v1215, 0.0
  %v1406 = vmax.f32 %v1220, 0.0
  %v1407 = vmax.f32 %v1225, 0.0
  %v1408 = vmax.f32 %v1230, 0.0
  %v1409 = vmax.f32 %v1235, 0.0
  %v1410 = vmax.f32 %v1240, 0.0
  %v1411 = vmax.f32 %v1245, 0.0
  %v1412 = vmax.f32 %v1250, 0.0
  %v1413 = vmax.f32 %v1255, 0.0
  %v1414 = vmax.f32 %v1260, 0.0
  %v1415 = vmax.f32 %v1265, 0.0
  %v1416 = vmax.f32 %v1270, 0.0
  %v1417 = vmax.f32 %v1275, 0.0
  %v1418 = vmax.f32 %v1280, 0.0
  %v1419 = vmax.f32 %v1285, 0.0
  %v1420 = vmax.f32 %v1290, 0.0
  %v1421 = vmax.f32 %v1295, 0.0
  %v1422 = vmax.f32 %v1300, 0.0
  %v1423 = vmax.f32 %v1305, 0.0
  %v1424 = vmax.f32 %v1310, 0.0
  %v1425 = vmax.f32 %v1315, 0.0
  %v1426 = vmax.f32 %v1320, 0.0
  %v1427 = vmax.f32 %v1325, 0.0
  %v1428 = vmax.f32 %v1330, 0.0
  %v1429 = vmax.f32 %v1335, 0.0
  %v1430 = vmax.f32 %v1340, 0.0
  %v1431 = vmax.f32 %v1345, 0.0
  %v1432 = vmax.f32 %v1350, 0.0
  %v1433 = vmax.f32 %v1355, 0.0
  %v1434 = vmax.f32 %v1360, 0.0
  %v1435 = vmax.f32 %v1365, 0.0
  %v1436 = vmax.f32 %v1370, 0.0
  %v1437 = vmax.f32 %v1375, 0.0
  %v1438 = vmax.f32 %v1380, 0.0
  %v1439 = vmax.f32 %v1385, 0.0
  %v1440 = vmax.f32 %v1390, 0.0
  %1441 = vst.msk [vmem:[%s3] sm:$0xff] %vm333, %v1393
  %1442 = vst.msk [vmem:[%s3 + $0x8] sm:$0xff] %vm333, %v1394
  %1443 = vst.msk [vmem:[%s3 + $0x10] sm:$0xff] %vm333, %v1395
  %1444 = vst.msk [vmem:[%s3 + $0x18] sm:$0xff] %vm333, %v1396
  %1445 = vst.msk [vmem:[%s3 + $0x20] sm:$0xff] %vm333, %v1397
  %1446 = vst.msk [vmem:[%s3 + $0x28] sm:$0xff] %vm333, %v1398
  %1447 = vst.msk [vmem:[%s3 + $0x30] sm:$0xff] %vm333, %v1399
  %1448 = vst.msk [vmem:[%s3 + $0x38] sm:$0xff] %vm333, %v1400
  %1449 = vst.msk [vmem:[%s3 + $0x40] sm:$0xff] %vm333, %v1401
  %1450 = vst.msk [vmem:[%s3 + $0x48] sm:$0xff] %vm333, %v1402
  %1451 = vst.msk [vmem:[%s3 + $0x50] sm:$0xff] %vm333, %v1403
  %1452 = vst.msk [vmem:[%s3 + $0x58] sm:$0xff] %vm333, %v1404
  %1453 = vst.msk [vmem:[%s3 + $0x60] sm:$0xff] %vm333, %v1405
  %1454 = vst.msk [vmem:[%s3 + $0x68] sm:$0xff] %vm333, %v1406
  %1455 = vst.msk [vmem:[%s3 + $0x70] sm:$0xff] %vm333, %v1407
  %1456 = vst.msk [vmem:[%s3 + $0x78] sm:$0xff] %vm333, %v1408
  %1457 = vst.msk [vmem:[%s3 + $0x80] sm:$0xff] %vm333, %v1409
  %1458 = vst.msk [vmem:[%s3 + $0x88] sm:$0xff] %vm333, %v1410
  %1459 = vst.msk [vmem:[%s3 + $0x90] sm:$0xff] %vm333, %v1411
  %1460 = vst.msk [vmem:[%s3 + $0x98] sm:$0xff] %vm333, %v1412
  %1461 = vst.msk [vmem:[%s3 + $0xa0] sm:$0xff] %vm333, %v1413
  %1462 = vst.msk [vmem:[%s3 + $0xa8] sm:$0xff] %vm333, %v1414
  %1463 = vst.msk [vmem:[%s3 + $0xb0] sm:$0xff] %vm333, %v1415
  %1464 = vst.msk [vmem:[%s3 + $0xb8] sm:$0xff] %vm333, %v1416
  %1465 = vst.msk [vmem:[%s3 + $0xc0] sm:$0xff] %vm333, %v1417
  %1466 = vst.msk [vmem:[%s3 + $0xc8] sm:$0xff] %vm333, %v1418
  %1467 = vst.msk [vmem:[%s3 + $0xd0] sm:$0xff] %vm333, %v1419
  %1468 = vst.msk [vmem:[%s3 + $0xd8] sm:$0xff] %vm333, %v1420
  %1469 = vst.msk [vmem:[%s3 + $0xe0] sm:$0xff] %vm333, %v1421
  %1470 = vst.msk [vmem:[%s3 + $0xe8] sm:$0xff] %vm333, %v1422
  %1471 = vst.msk [vmem:[%s3 + $0xf0] sm:$0xff] %vm333, %v1423
  %1472 = vst.msk [vmem:[%s3 + $0xf8] sm:$0xff] %vm333, %v1424
  %1473 = vst.msk [vmem:[%s3 + $0x100] sm:$0xff] %vm333, %v1425
  %1474 = vst.msk [vmem:[%s3 + $0x108] sm:$0xff] %vm333, %v1426
  %1475 = vst.msk [vmem:[%s3 + $0x110] sm:$0xff] %vm333, %v1427
  %1476 = vst.msk [vmem:[%s3 + $0x118] sm:$0xff] %vm333, %v1428
  %1477 = vst.msk [vmem:[%s3 + $0x120] sm:$0xff] %vm333, %v1429
  %1478 = vst.msk [vmem:[%s3 + $0x128] sm:$0xff] %vm333, %v1430
  %1479 = vst.msk [vmem:[%s3 + $0x130] sm:$0xff] %vm333, %v1431
  %1480 = vst.msk [vmem:[%s3 + $0x138] sm:$0xff] %vm333, %v1432
  %1481 = vst.msk [vmem:[%s3 + $0x140] sm:$0xff] %vm333, %v1433
  %1482 = vst.msk [vmem:[%s3 + $0x148] sm:$0xff] %vm333, %v1434
  %1483 = vst.msk [vmem:[%s3 + $0x150] sm:$0xff] %vm333, %v1435
  %1484 = vst.msk [vmem:[%s3 + $0x158] sm:$0xff] %vm333, %v1436
  %1485 = vst.msk [vmem:[%s3 + $0x160] sm:$0xff] %vm333, %v1437
  %1486 = vst.msk [vmem:[%s3 + $0x168] sm:$0xff] %vm333, %v1438
  %1487 = vst.msk [vmem:[%s3 + $0x170] sm:$0xff] %vm333, %v1439
  %1488 = vst.msk [vmem:[%s3 + $0x178] sm:$0xff] %vm333, %v1440
  // Predicated region
  $region14: #{_lambda_.10} parent=0 // pred_check
    _
  $region15: #{_lambda_.10} parent=0 // pred_check_branch
    %1490 = sbr.rel (0) target = $region17
  $region16: #{_lambda_.10} parent=0 // pred_region
    _
  $region17: #{_lambda_.10} parent=0 // pred_fallthru
    _
  // Predicated region
  $region18: #{_lambda_.10} parent=0 // pred_check
    _
  $region19: #{_lambda_.10} parent=0 // pred_check_branch
    %1492 = sbr.rel (0) target = $region21
  $region20: #{_lambda_.10} parent=0 // pred_region
    _
  $region21: #{_lambda_.10} parent=0 // pred_fallthru
    _

// kernel: _lambda_.6
$region0: #{_lambda_.6}
  #allocation0 [shape = 'u32[]', space=smem, size = 0x4, offset = 0x4, fixed_abs, tag = 'smem constant byte address 0x4 - core index']
  #allocation1 [shape = 'u32[144,128]{1,0:T(1,128)}', space=vmem, size = 0x12000, scoped, tag = 'internal scratch']
  %s0 = inlined_call_operand.vmem [shape: f32[128,27], index: 0, kind: input, shape index: {}]
  %s1 = inlined_call_operand.vmem [shape: f32[27,64], index: 1, kind: input, shape index: {}]
  %s2 = inlined_call_operand.vmem [shape: f32[1,64], index: 2, kind: input, shape index: {}]
  %s3 = inlined_call_operand.vmem [shape: f32[128,64], index: 3, kind: output, shape index: {}]
  %s4 = sld [smem:[#allocation0]]
  $region22: #{_lambda_.6} parent=0
    _
  %s6 = ssub.s32 1, %s4
  %s7 = scalar_select 0, %s6, %s4
  // Predicated region
  $region2: #{_lambda_.6} parent=0 // pred_check
    _
  $region3: #{_lambda_.6} parent=0 // pred_check_branch
    %9 = sbr.rel (0) target = $region5
  $region4: #{_lambda_.6} parent=0 // pred_region
    _
  $region5: #{_lambda_.6} parent=0 // pred_fallthru
    _
  // Predicated region
  $region6: #{_lambda_.6} parent=0 // pred_check
    _
  $region7: #{_lambda_.6} parent=0 // pred_check_branch
    %11 = sbr.rel (0) target = $region9
  $region8: #{_lambda_.6} parent=0 // pred_region
    _
  $region9: #{_lambda_.6} parent=0 // pred_fallthru
    _
  // Predicated region
  $region10: #{_lambda_.6} parent=0 // pred_check
    _
  $region11: #{_lambda_.6} parent=0 // pred_check_branch
    %13 = sbr.rel (0) target = $region13
  $region12: #{_lambda_.6} parent=0 // pred_region
    _
  $region13: #{_lambda_.6} parent=0 // pred_fallthru
    _
  %v14 = vld [vmem:[%s0] sm:$0xff]
  %v15 = vld [vmem:[%s0 + $0x8] sm:$0xff]
  %v16 = vld [vmem:[%s0 + $0x10] sm:$0xff]
  %v17 = vld [vmem:[%s0 + $0x18] sm:$0xff]
  %v18 = vld [vmem:[%s0 + $0x20] sm:$0xff]
  %v19 = vld [vmem:[%s0 + $0x28] sm:$0xff]
  %v20 = vld [vmem:[%s0 + $0x30] sm:$0xff]
  %v21 = vld [vmem:[%s0 + $0x38] sm:$0xff]
  %v22 = vld [vmem:[%s0 + $0x40] sm:$0xff]
  %v23 = vld [vmem:[%s0 + $0x48] sm:$0xff]
  %v24 = vld [vmem:[%s0 + $0x50] sm:$0xff]
  %v25 = vld [vmem:[%s0 + $0x58] sm:$0xff]
  %v26 = vld [vmem:[%s0 + $0x60] sm:$0xff]
  %v27 = vld [vmem:[%s0 + $0x68] sm:$0xff]
  %v28 = vld [vmem:[%s0 + $0x70] sm:$0xff]
  %v29 = vld [vmem:[%s0 + $0x78] sm:$0xff]
  %v30 = vld [vmem:[%s1] sm:$0xff]
  %v31 = vld [vmem:[%s1 + $0x8] sm:$0xff]
  %v32 = vld [vmem:[%s1 + $0x10] sm:$0xff]
  %v33 = vld [vmem:[%s1 + $0x18] sm:$0x7]
  %v34 = vld [vmem:[%s2] sm:$0x1]
  %v36 = vlaneseq
  %v37 = vshrl.u32 %v36, 7
  %v38 = vsub.s32 0, %v37
  %v39 = vrot.slane %v34, %v38
  %vm41 = vcmask 220160
  %v43 = vsel %vm41, %v14, 0
  %v46 = vsel %vm41, %v15, 0
  %v49 = vsel %vm41, %v16, 0
  %v52 = vsel %vm41, %v17, 0
  %v55 = vsel %vm41, %v18, 0
  %v58 = vsel %vm41, %v19, 0
  %v61 = vsel %vm41, %v20, 0
  %v64 = vsel %vm41, %v21, 0
  %v67 = vsel %vm41, %v22, 0
  %v70 = vsel %vm41, %v23, 0
  %v73 = vsel %vm41, %v24, 0
  %v76 = vsel %vm41, %v25, 0
  %v79 = vsel %vm41, %v26, 0
  %v82 = vsel %vm41, %v27, 0
  %v85 = vsel %vm41, %v28, 0
  %v88 = vsel %vm41, %v29, 0
  %vm90 = vcmask 1042432
  %v92 = vsel %vm90, %v33, 0
  %94 = vmatprep.subr.mxu0 0.0
  %95 = vmatpush1.msra.mxu0 %v30
  %96 = vmatprep.subr.mxu0 0.0
  %97 = vmatpush1.msra.mxu0 %v31
  %98 = vmatprep.subr.mxu0 0.0
  %99 = vmatpush1.msra.mxu0 %v32
  %100 = vmatprep.subr.mxu0 0.0
  %101 = vmatpush1.msra.mxu0 %v92
  %102 = vmatprep.subr.mxu0 0.0
  %103 = vmatpush1.msra.mxu0 0.0
  %104 = vmatprep.subr.mxu0 0.0
  %105 = vmatpush1.msra.mxu0 0.0
  %106 = vmatprep.subr.mxu0 0.0
  %107 = vmatpush1.msra.mxu0 0.0
  %108 = vmatprep.subr.mxu0 0.0
  %109 = vmatpush1.msra.mxu0 0.0
  %110 = vmatprep.subr.mxu0 0.0
  %111 = vmatpush1.msra.mxu0 0.0
  %112 = vmatprep.subr.mxu0 0.0
  %113 = vmatpush1.msra.mxu0 0.0
  %114 = vmatprep.subr.mxu0 0.0
  %115 = vmatpush1.msra.mxu0 0.0
  %116 = vmatprep.subr.mxu0 0.0
  %117 = vmatpush1.msra.mxu0 0.0
  %118 = vmatprep.subr.mxu0 0.0
  %119 = vmatpush1.msra.mxu0 0.0
  %120 = vmatprep.subr.mxu0 0.0
  %121 = vmatpush1.msra.mxu0 0.0
  %122 = vmatprep.subr.mxu0 0.0
  %123 = vmatpush1.msra.mxu0 0.0
  %124 = vmatprep.subr.mxu0 0.0
  %125 = vmatpush1.msra.mxu0 0.0
  %126 = vmatprep.subr.mxu0 0.0
  %127 = vmatpush1.msra.mxu0 0.0
  %128 = vmatprep.subr.mxu0 0.0
  %129 = vmatpush1.msra.mxu0 0.0
  %130 = vmatprep.subr.mxu0 0.0
  %131 = vmatpush1.msra.mxu0 0.0
  %132 = vmatprep.subr.mxu0 0.0
  %133 = vmatpush1.msra.mxu0 0.0
  %134 = vmatprep.subr.mxu0 0.0
  %135 = vmatpush1.msra.mxu0 0.0
  %136 = vmatprep.subr.mxu0 0.0
  %137 = vmatpush1.msra.mxu0 0.0
  %138 = vmatprep.subr.mxu0 0.0
  %139 = vmatpush1.msra.mxu0 0.0
  %140 = vmatprep.subr.mxu0 0.0
  %141 = vmatpush1.msra.mxu0 0.0
  %142 = vmatprep.subr.mxu0 0.0
  %143 = vmatpush1.msra.mxu0 0.0
  %144 = vmatprep.subr.mxu0 0.0
  %145 = vmatpush1.msra.mxu0 0.0
  %146 = vmatprep.subr.mxu0 0.0
  %147 = vmatpush1.msra.mxu0 0.0
  %148 = vmatprep.subr.mxu0 0.0
  %149 = vmatpush1.msra.mxu0 0.0
  %150 = vmatprep.subr.mxu0 0.0
  %151 = vmatpush1.msra.mxu0 0.0
  %152 = vmatprep.subr.mxu0 0.0
  %153 = vmatpush1.msra.mxu0 0.0
  %154 = vmatprep.subr.mxu0 0.0
  %155 = vmatpush1.msra.mxu0 0.0
  %156 = vmatprep.subr.mxu0 0.0
  %157 = vmatpush1.msra.mxu0 0.0
  %158 = vmatprep.mubr.f32.mxu0 0.0
  %159 = vmatmul.mubr.f32.gmra.mrb[0].mxu0 %v43
  %v160 = vpop.f32.mrb[0].mxu0
  %v161 = vadd.f32 %v39, %v160
  %v162 = vpop.f32.mrb[0].mxu0
  %163 = vmatprep.mubr.f32.mxu0 0.0
  %164 = vmatmul.mubr.f32.gmra.mrb[0].mxu0 %v46
  %v165 = vpop.f32.mrb[0].mxu0
  %v166 = vadd.f32 %v39, %v165
  %v167 = vpop.f32.mrb[0].mxu0
  %168 = vmatprep.mubr.f32.mxu0 0.0
  %169 = vmatmul.mubr.f32.gmra.mrb[0].mxu0 %v49
  %v170 = vpop.f32.mrb[0].mxu0
  %v171 = vadd.f32 %v39, %v170
  %v172 = vpop.f32.mrb[0].mxu0
  %173 = vmatprep.mubr.f32.mxu0 0.0
  %174 = vmatmul.mubr.f32.gmra.mrb[0].mxu0 %v52
  %v175 = vpop.f32.mrb[0].mxu0
  %v176 = vadd.f32 %v39, %v175
  %v177 = vpop.f32.mrb[0].mxu0
  %178 = vmatprep.mubr.f32.mxu0 0.0
  %179 = vmatmul.mubr.f32.gmra.mrb[0].mxu0 %v55
  %v180 = vpop.f32.mrb[0].mxu0
  %v181 = vadd.f32 %v39, %v180
  %v182 = vpop.f32.mrb[0].mxu0
  %183 = vmatprep.mubr.f32.mxu0 0.0
  %184 = vmatmul.mubr.f32.gmra.mrb[0].mxu0 %v58
  %v185 = vpop.f32.mrb[0].mxu0
  %v186 = vadd.f32 %v39, %v185
  %v187 = vpop.f32.mrb[0].mxu0
  %188 = vmatprep.mubr.f32.mxu0 0.0
  %189 = vmatmul.mubr.f32.gmra.mrb[0].mxu0 %v61
  %v190 = vpop.f32.mrb[0].mxu0
  %v191 = vadd.f32 %v39, %v190
  %v192 = vpop.f32.mrb[0].mxu0
  %193 = vmatprep.mubr.f32.mxu0 0.0
  %194 = vmatmul.mubr.f32.gmra.mrb[0].mxu0 %v64
  %v195 = vpop.f32.mrb[0].mxu0
  %v196 = vadd.f32 %v39, %v195
  %v197 = vpop.f32.mrb[0].mxu0
  %198 = vmatprep.mubr.f32.mxu0 0.0
  %199 = vmatmul.mubr.f32.gmra.mrb[0].mxu0 %v67
  %v200 = vpop.f32.mrb[0].mxu0
  %v201 = vadd.f32 %v39, %v200
  %v202 = vpop.f32.mrb[0].mxu0
  %203 = vmatprep.mubr.f32.mxu0 0.0
  %204 = vmatmul.mubr.f32.gmra.mrb[0].mxu0 %v70
  %v205 = vpop.f32.mrb[0].mxu0
  %v206 = vadd.f32 %v39, %v205
  %v207 = vpop.f32.mrb[0].mxu0
  %208 = vmatprep.mubr.f32.mxu0 0.0
  %209 = vmatmul.mubr.f32.gmra.mrb[0].mxu0 %v73
  %v210 = vpop.f32.mrb[0].mxu0
  %v211 = vadd.f32 %v39, %v210
  %v212 = vpop.f32.mrb[0].mxu0
  %213 = vmatprep.mubr.f32.mxu0 0.0
  %214 = vmatmul.mubr.f32.gmra.mrb[0].mxu0 %v76
  %v215 = vpop.f32.mrb[0].mxu0
  %v216 = vadd.f32 %v39, %v215
  %v217 = vpop.f32.mrb[0].mxu0
  %218 = vmatprep.mubr.f32.mxu0 0.0
  %219 = vmatmul.mubr.f32.gmra.mrb[0].mxu0 %v79
  %v220 = vpop.f32.mrb[0].mxu0
  %v221 = vadd.f32 %v39, %v220
  %v222 = vpop.f32.mrb[0].mxu0
  %223 = vmatprep.mubr.f32.mxu0 0.0
  %224 = vmatmul.mubr.f32.gmra.mrb[0].mxu0 %v82
  %v225 = vpop.f32.mrb[0].mxu0
  %v226 = vadd.f32 %v39, %v225
  %v227 = vpop.f32.mrb[0].mxu0
  %228 = vmatprep.mubr.f32.mxu0 0.0
  %229 = vmatmul.mubr.f32.gmra.mrb[0].mxu0 %v85
  %v230 = vpop.f32.mrb[0].mxu0
  %v231 = vadd.f32 %v39, %v230
  %v232 = vpop.f32.mrb[0].mxu0
  %233 = vmatprep.mubr.f32.mxu0 0.0
  %234 = vmatmul.mubr.f32.gmra.mrb[0].mxu0 %v88
  %v235 = vpop.f32.mrb[0].mxu0
  %v236 = vadd.f32 %v39, %v235
  %v237 = vpop.f32.mrb[0].mxu0
  %238 = vdwg.mxu0
  %v239 = vmax.f32 %v161, 0.0
  %v240 = vmax.f32 %v166, 0.0
  %v241 = vmax.f32 %v171, 0.0
  %v242 = vmax.f32 %v176, 0.0
  %v243 = vmax.f32 %v181, 0.0
  %v244 = vmax.f32 %v186, 0.0
  %v245 = vmax.f32 %v191, 0.0
  %v246 = vmax.f32 %v196, 0.0
  %v247 = vmax.f32 %v201, 0.0
  %v248 = vmax.f32 %v206, 0.0
  %v249 = vmax.f32 %v211, 0.0
  %v250 = vmax.f32 %v216, 0.0
  %v251 = vmax.f32 %v221, 0.0
  %v252 = vmax.f32 %v226, 0.0
  %v253 = vmax.f32 %v231, 0.0
  %v254 = vmax.f32 %v236, 0.0
  %vm255 = vcmask 523264
  %256 = vst.msk [vmem:[%s3] sm:$0xff] %vm255, %v239
  %257 = vst.msk [vmem:[%s3 + $0x8] sm:$0xff] %vm255, %v240
  %258 = vst.msk [vmem:[%s3 + $0x10] sm:$0xff] %vm255, %v241
  %259 = vst.msk [vmem:[%s3 + $0x18] sm:$0xff] %vm255, %v242
  %260 = vst.msk [vmem:[%s3 + $0x20] sm:$0xff] %vm255, %v243
  %261 = vst.msk [vmem:[%s3 + $0x28] sm:$0xff] %vm255, %v244
  %262 = vst.msk [vmem:[%s3 + $0x30] sm:$0xff] %vm255, %v245
  %263 = vst.msk [vmem:[%s3 + $0x38] sm:$0xff] %vm255, %v246
  %264 = vst.msk [vmem:[%s3 + $0x40] sm:$0xff] %vm255, %v247
  %265 = vst.msk [vmem:[%s3 + $0x48] sm:$0xff] %vm255, %v248
  %266 = vst.msk [vmem:[%s3 + $0x50] sm:$0xff] %vm255, %v249
  %267 = vst.msk [vmem:[%s3 + $0x58] sm:$0xff] %vm255, %v250
  %268 = vst.msk [vmem:[%s3 + $0x60] sm:$0xff] %vm255, %v251
  %269 = vst.msk [vmem:[%s3 + $0x68] sm:$0xff] %vm255, %v252
  %270 = vst.msk [vmem:[%s3 + $0x70] sm:$0xff] %vm255, %v253
  %271 = vst.msk [vmem:[%s3 + $0x78] sm:$0xff] %vm255, %v254
  // Predicated region
  $region14: #{_lambda_.6} parent=0 // pred_check
    _
  $region15: #{_lambda_.6} parent=0 // pred_check_branch
    %273 = sbr.rel (0) target = $region17
  $region16: #{_lambda_.6} parent=0 // pred_region
    _
  $region17: #{_lambda_.6} parent=0 // pred_fallthru
    _
  // Predicated region
  $region18: #{_lambda_.6} parent=0 // pred_check
    _
  $region19: #{_lambda_.6} parent=0 // pred_check_branch
    %275 = sbr.rel (0) target = $region21
  $region20: #{_lambda_.6} parent=0 // pred_region
    _
  $region21: #{_lambda_.6} parent=0 // pred_fallthru
    _

// kernel: _lambda_.11
$region0: #{_lambda_.11}
  #allocation0 [shape = 'u32[]', space=smem, size = 0x4, offset = 0x4, fixed_abs, tag = 'smem constant byte address 0x4 - core index']
  #allocation1 [shape = 'u32[144,128]{1,0:T(1,128)}', space=vmem, size = 0x12000, scoped, tag = 'internal scratch']
  #allocation2 [shape = 'f32[3]{0:T(128)}', space=smem, size = 0x200, scoped, tag = 'scratch operand']
  %s0 = inlined_call_operand.vmem [shape: f32[64,128], index: 0, kind: input, shape index: {}]
  %s1 = inlined_call_operand.vmem [shape: f32[64,128], index: 1, kind: input, shape index: {}]
  %s2 = inlined_call_operand.vmem [shape: f32[64,128], index: 2, kind: input, shape index: {}]
  %s3 = inlined_call_operand.vmem [shape: f32[64,128], index: 3, kind: input, shape index: {}]
  %s4 = inlined_call_operand.hbm [shape: f32[1,1], index: 4, kind: output, shape index: {}]
  %s5 = sld [smem:[#allocation0]]
  $region34: #{_lambda_.11} parent=0
    _
  %s7 = ssub.s32 1, %s5
  %s8 = scalar_select 0, %s7, %s5
  $region1: #{_lambda_.11} parent=0
    #allocation3 [shape = 'u8[512]{0}', space=smem, size = 0x200, scoped, tag = 'output window, operand 0, single buffered']
    #allocation4 [shape = 's32[1]{0}', space=sflag, size = 0x4, scoped, tag = 'scoped memory for _lambda_.11']
    %9 = vsyncpa [#allocation4], 0
    // Predicated region
    $region2: #{_lambda_.11} parent=1 // pred_check
      _
    $region3: #{_lambda_.11} parent=1 // pred_check_branch
      %11 = sbr.rel (0) target = $region5
    $region4: #{_lambda_.11} parent=1 // pred_region
      _
    $region5: #{_lambda_.11} parent=1 // pred_fallthru
      _
    // Predicated region
    $region6: #{_lambda_.11} parent=1 // pred_check
      _
    $region7: #{_lambda_.11} parent=1 // pred_check_branch
      %13 = sbr.rel (0) target = $region9
    $region8: #{_lambda_.11} parent=1 // pred_region
      _
    $region9: #{_lambda_.11} parent=1 // pred_fallthru
      _
    // Predicated region
    $region10: #{_lambda_.11} parent=1 // pred_check
      _
    $region11: #{_lambda_.11} parent=1 // pred_check_branch
      %15 = sbr.rel (0) target = $region13
    $region12: #{_lambda_.11} parent=1 // pred_region
      _
    $region13: #{_lambda_.11} parent=1 // pred_fallthru
      _
    // Predicated region
    $region14: #{_lambda_.11} parent=1 // pred_check
      _
    $region15: #{_lambda_.11} parent=1 // pred_check_branch
      %17 = sbr.rel (0) target = $region17
    $region16: #{_lambda_.11} parent=1 // pred_region
      _
    $region17: #{_lambda_.11} parent=1 // pred_fallthru
      _
    %p18 = scmp.eq.s32.totalorder 0, 0
    // Predicated region
    $region18: #{_lambda_.11} parent=1 // pred_check
      %p19 = pneg %p18
    $region19: #{_lambda_.11} parent=1 // pred_check_branch
      %21 = sbr.rel (%p19) target = $region21
    $region20: #{_lambda_.11} parent=1 // pred_region
      %s22 = scalar_lea.smem [#allocation2], 0
      %23 = sst [smem:[%s22]] 0.0
      %s24 = scalar_lea.smem [#allocation2], 1
      %25 = sst [smem:[%s24]] 0.0
      %s26 = scalar_lea.smem [#allocation2], 2
      %27 = sst [smem:[%s26]] 0.0
    $region21: #{_lambda_.11} parent=1 // pred_fallthru
      _
    %v28 = vld [vmem:[%s0] sm:$0xff]
    %v29 = vld [vmem:[%s0 + $0x8] sm:$0xff]
    %v30 = vld [vmem:[%s0 + $0x10] sm:$0xff]
    %v31 = vld [vmem:[%s0 + $0x18] sm:$0xff]
    %v32 = vld [vmem:[%s0 + $0x20] sm:$0xff]
    %v33 = vld [vmem:[%s0 + $0x28] sm:$0xff]
    %v34 = vld [vmem:[%s0 + $0x30] sm:$0xff]
    %v35 = vld [vmem:[%s0 + $0x38] sm:$0xff]
    %s36 = sld [smem:[#allocation2]]
    %v37 = vld [vmem:[%s1] sm:$0xff]
    %v38 = vld [vmem:[%s1 + $0x8] sm:$0xff]
    %v39 = vld [vmem:[%s1 + $0x10] sm:$0xff]
    %v40 = vld [vmem:[%s1 + $0x18] sm:$0xff]
    %v41 = vld [vmem:[%s1 + $0x20] sm:$0xff]
    %v42 = vld [vmem:[%s1 + $0x28] sm:$0xff]
    %v43 = vld [vmem:[%s1 + $0x30] sm:$0xff]
    %v44 = vld [vmem:[%s1 + $0x38] sm:$0xff]
    %v45 = vsub.f32 %v28, %v37
    %v46 = vsub.f32 %v29, %v38
    %v47 = vsub.f32 %v30, %v39
    %v48 = vsub.f32 %v31, %v40
    %v49 = vsub.f32 %v32, %v41
    %v50 = vsub.f32 %v33, %v42
    %v51 = vsub.f32 %v34, %v43
    %v52 = vsub.f32 %v35, %v44
    %v53 = vand.u32 2147483647, %v45
    %v54 = vand.u32 2147483647, %v46
    %v55 = vand.u32 2147483647, %v47
    %v56 = vand.u32 2147483647, %v48
    %v57 = vand.u32 2147483647, %v49
    %v58 = vand.u32 2147483647, %v50
    %v59 = vand.u32 2147483647, %v51
    %v60 = vand.u32 2147483647, %v52
    %v61 = vadd.f32 %v53, %v54
    %v62 = vadd.f32 %v61, %v55
    %v63 = vadd.f32 %v62, %v56
    %v64 = vadd.f32 %v63, %v57
    %v65 = vadd.f32 %v64, %v58
    %v66 = vadd.f32 %v65, %v59
    %v67 = vadd.f32 %v66, %v60
    %68 = vadd.xlane.f32.xlu0 %v67
    %v69 = vpop.xlane.xlu0 %68
    %v70 = vrot.slane %v69, 4
    %v71 = vadd.f32 %v69, %v70
    %v72 = vrot.slane %v71, 2
    %v73 = vadd.f32 %v71, %v72
    %v74 = vrot.slane %v73, 1
    %v75 = vadd.f32 %v73, %v74
    %s76 = vtos %v75
    %s77 = sadd.f32 %s36, %s76
    %s78 = scalar_lea.smem [#allocation2], 0
    %79 = sst [smem:[%s78]] %s77
    %s80 = sld [smem:[#allocation2 + $0x1]]
    %v81 = vld [vmem:[%s2] sm:$0xff]
    %v82 = vld [vmem:[%s2 + $0x8] sm:$0xff]
    %v83 = vld [vmem:[%s2 + $0x10] sm:$0xff]
    %v84 = vld [vmem:[%s2 + $0x18] sm:$0xff]
    %v85 = vld [vmem:[%s2 + $0x20] sm:$0xff]
    %v86 = vld [vmem:[%s2 + $0x28] sm:$0xff]
    %v87 = vld [vmem:[%s2 + $0x30] sm:$0xff]
    %v88 = vld [vmem:[%s2 + $0x38] sm:$0xff]
    %v89 = vsub.f32 %v28, %v81
    %v90 = vsub.f32 %v29, %v82
    %v91 = vsub.f32 %v30, %v83
    %v92 = vsub.f32 %v31, %v84
    %v93 = vsub.f32 %v32, %v85
    %v94 = vsub.f32 %v33, %v86
    %v95 = vsub.f32 %v34, %v87
    %v96 = vsub.f32 %v35, %v88
    %v97 = vand.u32 2147483647, %v89
    %v98 = vand.u32 2147483647, %v90
    %v99 = vand.u32 2147483647, %v91
    %v100 = vand.u32 2147483647, %v92
    %v101 = vand.u32 2147483647, %v93
    %v102 = vand.u32 2147483647, %v94
    %v103 = vand.u32 2147483647, %v95
    %v104 = vand.u32 2147483647, %v96
    %v105 = vadd.f32 %v97, %v98
    %v106 = vadd.f32 %v105, %v99
    %v107 = vadd.f32 %v106, %v100
    %v108 = vadd.f32 %v107, %v101
    %v109 = vadd.f32 %v108, %v102
    %v110 = vadd.f32 %v109, %v103
    %v111 = vadd.f32 %v110, %v104
    %112 = vadd.xlane.f32.xlu0 %v111
    %v113 = vpop.xlane.xlu0 %112
    %v114 = vrot.slane %v113, 4
    %v115 = vadd.f32 %v113, %v114
    %v116 = vrot.slane %v115, 2
    %v117 = vadd.f32 %v115, %v116
    %v118 = vrot.slane %v117, 1
    %v119 = vadd.f32 %v117, %v118
    %s120 = vtos %v119
    %s121 = sadd.f32 %s80, %s120
    %s122 = scalar_lea.smem [#allocation2], 1
    %123 = sst [smem:[%s122]] %s121
    %s124 = sld [smem:[#allocation2 + $0x2]]
    %v125 = vld [vmem:[%s3] sm:$0xff]
    %v126 = vld [vmem:[%s3 + $0x8] sm:$0xff]
    %v127 = vld [vmem:[%s3 + $0x10] sm:$0xff]
    %v128 = vld [vmem:[%s3 + $0x18] sm:$0xff]
    %v129 = vld [vmem:[%s3 + $0x20] sm:$0xff]
    %v130 = vld [vmem:[%s3 + $0x28] sm:$0xff]
    %v131 = vld [vmem:[%s3 + $0x30] sm:$0xff]
    %v132 = vld [vmem:[%s3 + $0x38] sm:$0xff]
    %v133 = vsub.f32 %v28, %v125
    %v134 = vsub.f32 %v29, %v126
    %v135 = vsub.f32 %v30, %v127
    %v136 = vsub.f32 %v31, %v128
    %v137 = vsub.f32 %v32, %v129
    %v138 = vsub.f32 %v33, %v130
    %v139 = vsub.f32 %v34, %v131
    %v140 = vsub.f32 %v35, %v132
    %v141 = vand.u32 2147483647, %v133
    %v142 = vand.u32 2147483647, %v134
    %v143 = vand.u32 2147483647, %v135
    %v144 = vand.u32 2147483647, %v136
    %v145 = vand.u32 2147483647, %v137
    %v146 = vand.u32 2147483647, %v138
    %v147 = vand.u32 2147483647, %v139
    %v148 = vand.u32 2147483647, %v140
    %v149 = vadd.f32 %v141, %v142
    %v150 = vadd.f32 %v149, %v143
    %v151 = vadd.f32 %v150, %v144
    %v152 = vadd.f32 %v151, %v145
    %v153 = vadd.f32 %v152, %v146
    %v154 = vadd.f32 %v153, %v147
    %v155 = vadd.f32 %v154, %v148
    %156 = vadd.xlane.f32.xlu0 %v155
    %v157 = vpop.xlane.xlu0 %156
    %v158 = vrot.slane %v157, 4
    %v159 = vadd.f32 %v157, %v158
    %v160 = vrot.slane %v159, 2
    %v161 = vadd.f32 %v159, %v160
    %v162 = vrot.slane %v161, 1
    %v163 = vadd.f32 %v161, %v162
    %s164 = vtos %v163
    %s165 = sadd.f32 %s124, %s164
    %s166 = scalar_lea.smem [#allocation2], 2
    %167 = sst [smem:[%s166]] %s165
    // Predicated region
    $region22: #{_lambda_.11} parent=1 // pred_check
      %p168 = pneg %p18
    $region23: #{_lambda_.11} parent=1 // pred_check_branch
      %170 = sbr.rel (%p168) target = $region25
    $region24: #{_lambda_.11} parent=1 // pred_region
      %s171 = sld [smem:[#allocation2]]
      %s172 = smul.f32 %s171, 0.03125
      %s173 = sld [smem:[#allocation2 + $0x1]]
      %s174 = sld [smem:[#allocation2 + $0x2]]
      %s175 = sadd.f32 %s173, %s174
      %v176 = vstv %s175
      %v177 = vrcp.pop %v176
      %s178 = vtos %v177
      %s179 = smul.f32 %s172, %s178
      %s180 = scalar_lea.smem [#allocation3], 0
      %181 = sst [smem:[%s180]] %s179
    $region25: #{_lambda_.11} parent=1 // pred_fallthru
      _
    // Predicated region
    $region26: #{_lambda_.11} parent=1 // pred_check
      _
    $region27: #{_lambda_.11} parent=1 // pred_check_branch
      %183 = sbr.rel (0) target = $region29
    $region28: #{_lambda_.11} parent=1 // pred_region
      %s185 = ssub.s32 16, 16
      %186 = vsyncadd [#allocation4], %s185
      %189 = dma.smem_to_hbm [#allocation3], 16, %s4, [#allocation4]
    $region29: #{_lambda_.11} parent=1 // pred_fallthru
      _
    // Predicated region
    $region30: #{_lambda_.11} parent=1 // pred_check
      _
    $region31: #{_lambda_.11} parent=1 // pred_check_branch
      %191 = sbr.rel (0) target = $region33
    $region32: #{_lambda_.11} parent=1 // pred_region
      %192 = dma.done [#allocation4], 16
    $region33: #{_lambda_.11} parent=1 // pred_fallthru
      _
    %193 = sfence
    %194 = vsyncpa [#allocation4], 1

</llo_original>
